<compile_context>
chip_gen: v7x
topology: tpu7x:2x2x1
jax: 0.10.0
libtpu: 0.0.40
codegen_flags: <defaults>
</compile_context>

<pallas_src>
import jax
import jax.numpy as jnp
from jax.experimental import pallas as pl
from jax.experimental.pallas import tpu as pltpu

LANE = 128


def _round_up(v, m):
    return ((v + m - 1) // m) * m


# ----------------------------- Pallas kernel ------------------------------- #
def _head_kernel(x_ref, w1_ref, b1_ref, w2_ref, b2_ref, o_ref):
    """Fused Head for one padded image.

    x_ref : [1, H+2, W+2, Cin]   bf16  (spatially padded NHWC image)
    w1_ref: [9, Cin, HPAD]       bf16  (3x3 conv, kernel-point major, 128-padded cols)
    b1_ref: [1, HPAD]            f32
    w2_ref: [HPAD, OPAD]         bf16  (1x1 conv, 128-padded rows/cols)
    b2_ref: [1, OPAD]            f32
    o_ref : [H*W, OPAD]          f32
    """
    hp2, wp2, cin = x_ref.shape[1], x_ref.shape[2], x_ref.shape[3]
    H, W = hp2 - 2, wp2 - 2
    hpad = w1_ref.shape[2]

    # conv1 (3x3, pad=1): fused im2col -> 9 shifted-slab GEMMs, f32 accumulation.
    acc = jnp.zeros((H * W, hpad), jnp.float32)
    for k in range(9):
        ki, kj = k // 3, k % 3
        patch = x_ref[0, ki:ki + H, kj:kj + W, :].reshape(H * W, cin)
        acc = acc + jnp.dot(patch, w1_ref[k], preferred_element_type=jnp.float32)

    # bias + ReLU epilogue, then 1x1 conv + bias — all without leaving VMEM.
    hidden = jnp.maximum(acc + b1_ref[...], 0.0).astype(w2_ref.dtype)
    out = jnp.dot(hidden, w2_ref[...], preferred_element_type=jnp.float32) + b2_ref[...]
    o_ref[...] = out.astype(o_ref.dtype)


# ------------------------------ wrapper ------------------------------------ #
@jax.jit
def head_forward(x_nchw, w1, b1, w2, b2):
    """PyTorch Head forward: conv3x3(pad=1)+bias -> ReLU -> conv1x1+bias.

    x_nchw: [N, Cin, H, W] f32
    w1:     [Cin, Cin, 3, 3] f32 (torch OIHW), b1: [Cin]
    w2:     [Cout, Cin, 1, 1] f32 (torch OIHW), b2: [Cout]
    returns [N, Cout, H, W] f32
    """
    N, Cin, H, W = x_nchw.shape
    Cout = w2.shape[0]
    assert (H * W) % 8 == 0, "H*W must be a multiple of 8 for the output tile"
    HPAD = _round_up(Cin, LANE)   # hidden (conv1 output) channels, lane-padded
    OPAD = _round_up(Cout, LANE)  # output channels, lane-padded

    # NCHW -> NHWC, spatial pad for the 3x3 conv, cast to bf16 for the MXU.
    x = jnp.transpose(x_nchw, (0, 2, 3, 1))
    xp = jnp.pad(x, ((0, 0), (1, 1), (1, 1), (0, 0))).astype(jnp.bfloat16)

    # Repack weights: [O, I, kh, kw] -> [kh*kw, I, O_pad]  (kernel-point major).
    w1m = jnp.transpose(w1, (2, 3, 1, 0)).reshape(9, Cin, Cin)
    w1m = jnp.pad(w1m, ((0, 0), (0, 0), (0, HPAD - Cin))).astype(jnp.bfloat16)
    b1p = jnp.pad(b1, (0, HPAD - Cin)).reshape(1, HPAD).astype(jnp.float32)

    w2m = jnp.transpose(w2.reshape(Cout, Cin), (1, 0))            # [Cin, Cout]
    w2m = jnp.pad(w2m, ((0, HPAD - Cin), (0, OPAD - Cout))).astype(jnp.bfloat16)
    b2p = jnp.pad(b2, (0, OPAD - Cout)).reshape(1, OPAD).astype(jnp.float32)

    out = pl.pallas_call(
        _head_kernel,
        out_shape=jax.ShapeDtypeStruct((N * H * W, OPAD), jnp.float32),
        grid=(N,),
        in_specs=[
            pl.BlockSpec((1, H + 2, W + 2, Cin), lambda n: (n, 0, 0, 0)),
            pl.BlockSpec((9, Cin, HPAD), lambda n: (0, 0, 0)),
            pl.BlockSpec((1, HPAD), lambda n: (0, 0)),
            pl.BlockSpec((HPAD, OPAD), lambda n: (0, 0)),
            pl.BlockSpec((1, OPAD), lambda n: (0, 0)),
        ],
        out_specs=pl.BlockSpec((H * W, OPAD), lambda n: (n, 0)),
        compiler_params=pltpu.CompilerParams(
            dimension_semantics=("parallel",)),
    )(xp, w1m, b1p, w2m, b2p)

    out = out[:, :Cout].reshape(N, H, W, Cout)
    return jnp.transpose(out, (0, 3, 1, 2))  # -> NCHW


# ------------------------------ reference ----------------------------------- #
def head_reference(x, w1, b1, w2, b2):
    """Pure-JAX reference mirroring the kernel's numerics (bf16 operands, f32 acc)."""
    bf = lambda a: a.astype(jnp.bfloat16).astype(jnp.float32)
    y = jax.lax.conv_general_dilated(
        bf(x), bf(w1), (1, 1), ((1, 1), (1, 1)),
        dimension_numbers=("NCHW", "OIHW", "NCHW"),
        precision=jax.lax.Precision.HIGHEST)
    y = jnp.maximum(y + b1[None, :, None, None], 0.0)
    z = jax.lax.conv_general_dilated(
        bf(y), bf(w2), (1, 1), ((0, 0), (0, 0)),
        dimension_numbers=("NCHW", "OIHW", "NCHW"),
        precision=jax.lax.Precision.HIGHEST)
    return z + b2[None, :, None, None]


# -------------------------------- main -------------------------------------- #
if __name__ == "__main__":
    N, Cin, Cout, H, W = 2, 4, 2, 16, 16

    key = jax.random.PRNGKey(0)
    k0, k1, k2, k3 = jax.random.split(key, 4)
    x = jax.random.normal(k0, (N, Cin, H, W), jnp.float32)
    w1 = jax.random.normal(k1, (Cin, Cin, 3, 3), jnp.float32) / jnp.sqrt(Cin * 9.0)
    b1 = 0.1 * jax.random.normal(k2, (Cin,), jnp.float32)
    w2 = jax.random.normal(k3, (Cout, Cin, 1, 1), jnp.float32) / jnp.sqrt(float(Cin))
    b2 = jnp.full((Cout,), -2.19, jnp.float32)  # emulates bias_fill=True, bias_value=-2.19

    out = head_forward(x, w1, b1, w2, b2)
    out = jax.block_until_ready(out)
    assert out.shape == (N, Cout, H, W), out.shape

    ref = head_reference(x, w1, b1, w2, b2)
    max_err = float(jnp.max(jnp.abs(out - ref)))
    assert max_err < 1e-2, f"max abs error {max_err}"

    print("KERNEL_OK")
</pallas_src>

<mosaic_0001>
module attributes {stable_mosaic.version = 11 : i64} {
  func.func @_head_kernel(%arg0: i32, %arg1: memref<1x18x18x4xbf16, #tpu.memory_space<vmem>>, %arg2: memref<9x4x128xbf16, #tpu.memory_space<vmem>>, %arg3: memref<1x128xf32, #tpu.memory_space<vmem>>, %arg4: memref<128x128xbf16, #tpu.memory_space<vmem>>, %arg5: memref<1x128xf32, #tpu.memory_space<vmem>>, %arg6: memref<256x128xf32, #tpu.memory_space<vmem>>) attributes {dimension_semantics = [#tpu.dimension_semantics<parallel>], iteration_bounds = array<i64: 2>, scalar_prefetch = 0 : i64, scratch_operands = 0 : i64, tpu.core_type = #tpu.core_type<tc>, window_params = [{transform_indices = @transform_0, window_bounds = array<i64: 1, 18, 18, 4>}, {pipeline_mode = #tpu.pipeline_mode<synchronous>, transform_indices = @transform_1, window_bounds = array<i64: 9, 4, 128>}, {pipeline_mode = #tpu.pipeline_mode<synchronous>, transform_indices = @transform_2, window_bounds = array<i64: 1, 128>}, {pipeline_mode = #tpu.pipeline_mode<synchronous>, transform_indices = @transform_3, window_bounds = array<i64: 128, 128>}, {pipeline_mode = #tpu.pipeline_mode<synchronous>, transform_indices = @transform_4, window_bounds = array<i64: 1, 128>}, {transform_indices = @transform_5, window_bounds = array<i64: 256, 128>}]} {
    %cst = arith.constant 0.000000e+00 : f32
    %0 = vector.broadcast %cst : f32 to vector<256x128xf32>
    %c0 = arith.constant 0 : index
    %c0_0 = arith.constant 0 : index
    %c0_1 = arith.constant 0 : index
    %c0_2 = arith.constant 0 : index
    %1 = vector.load %arg1[%c0, %c0_0, %c0_1, %c0_2] : memref<1x18x18x4xbf16, #tpu.memory_space<vmem>>, vector<1x16x16x4xbf16>
    %2 = vector.shape_cast %1 : vector<1x16x16x4xbf16> to vector<16x16x4xbf16>
    %3 = vector.shape_cast %2 : vector<16x16x4xbf16> to vector<256x4xbf16>
    %c0_3 = arith.constant 0 : index
    %c0_4 = arith.constant 0 : index
    %c0_5 = arith.constant 0 : index
    %4 = vector.load %arg2[%c0_3, %c0_4, %c0_5] : memref<9x4x128xbf16, #tpu.memory_space<vmem>>, vector<1x4x128xbf16>
    %5 = vector.shape_cast %4 : vector<1x4x128xbf16> to vector<4x128xbf16>
    %cst_6 = arith.constant dense<0.000000e+00> : vector<256x128xf32>
    %6 = tpu.matmul %3, %5, %cst_6 {dimension_numbers = #tpu.dot_dimension_numbers<[1], [0], [0], [1], [0, 0, 1, 1], [], []>} : vector<256x4xbf16>, vector<4x128xbf16>, vector<256x128xf32> -> vector<256x128xf32>
    %7 = arith.addf %0, %6 : vector<256x128xf32>
    %c0_7 = arith.constant 0 : index
    %c0_8 = arith.constant 0 : index
    %c1 = arith.constant 1 : index
    %c0_9 = arith.constant 0 : index
    %8 = vector.load %arg1[%c0_7, %c0_8, %c1, %c0_9] : memref<1x18x18x4xbf16, #tpu.memory_space<vmem>>, vector<1x16x16x4xbf16>
    %9 = vector.shape_cast %8 : vector<1x16x16x4xbf16> to vector<16x16x4xbf16>
    %10 = vector.shape_cast %9 : vector<16x16x4xbf16> to vector<256x4xbf16>
    %c1_10 = arith.constant 1 : index
    %c0_11 = arith.constant 0 : index
    %c0_12 = arith.constant 0 : index
    %11 = vector.load %arg2[%c1_10, %c0_11, %c0_12] : memref<9x4x128xbf16, #tpu.memory_space<vmem>>, vector<1x4x128xbf16>
    %12 = vector.shape_cast %11 : vector<1x4x128xbf16> to vector<4x128xbf16>
    %cst_13 = arith.constant dense<0.000000e+00> : vector<256x128xf32>
    %13 = tpu.matmul %10, %12, %cst_13 {dimension_numbers = #tpu.dot_dimension_numbers<[1], [0], [0], [1], [0, 0, 1, 1], [], []>} : vector<256x4xbf16>, vector<4x128xbf16>, vector<256x128xf32> -> vector<256x128xf32>
    %14 = arith.addf %7, %13 : vector<256x128xf32>
    %c0_14 = arith.constant 0 : index
    %c0_15 = arith.constant 0 : index
    %c2 = arith.constant 2 : index
    %c0_16 = arith.constant 0 : index
    %15 = vector.load %arg1[%c0_14, %c0_15, %c2, %c0_16] : memref<1x18x18x4xbf16, #tpu.memory_space<vmem>>, vector<1x16x16x4xbf16>
    %16 = vector.shape_cast %15 : vector<1x16x16x4xbf16> to vector<16x16x4xbf16>
    %17 = vector.shape_cast %16 : vector<16x16x4xbf16> to vector<256x4xbf16>
    %c2_17 = arith.constant 2 : index
    %c0_18 = arith.constant 0 : index
    %c0_19 = arith.constant 0 : index
    %18 = vector.load %arg2[%c2_17, %c0_18, %c0_19] : memref<9x4x128xbf16, #tpu.memory_space<vmem>>, vector<1x4x128xbf16>
    %19 = vector.shape_cast %18 : vector<1x4x128xbf16> to vector<4x128xbf16>
    %cst_20 = arith.constant dense<0.000000e+00> : vector<256x128xf32>
    %20 = tpu.matmul %17, %19, %cst_20 {dimension_numbers = #tpu.dot_dimension_numbers<[1], [0], [0], [1], [0, 0, 1, 1], [], []>} : vector<256x4xbf16>, vector<4x128xbf16>, vector<256x128xf32> -> vector<256x128xf32>
    %21 = arith.addf %14, %20 : vector<256x128xf32>
    %c0_21 = arith.constant 0 : index
    %c1_22 = arith.constant 1 : index
    %c0_23 = arith.constant 0 : index
    %c0_24 = arith.constant 0 : index
    %22 = vector.load %arg1[%c0_21, %c1_22, %c0_23, %c0_24] : memref<1x18x18x4xbf16, #tpu.memory_space<vmem>>, vector<1x16x16x4xbf16>
    %23 = vector.shape_cast %22 : vector<1x16x16x4xbf16> to vector<16x16x4xbf16>
    %24 = vector.shape_cast %23 : vector<16x16x4xbf16> to vector<256x4xbf16>
    %c3 = arith.constant 3 : index
    %c0_25 = arith.constant 0 : index
    %c0_26 = arith.constant 0 : index
    %25 = vector.load %arg2[%c3, %c0_25, %c0_26] : memref<9x4x128xbf16, #tpu.memory_space<vmem>>, vector<1x4x128xbf16>
    %26 = vector.shape_cast %25 : vector<1x4x128xbf16> to vector<4x128xbf16>
    %cst_27 = arith.constant dense<0.000000e+00> : vector<256x128xf32>
    %27 = tpu.matmul %24, %26, %cst_27 {dimension_numbers = #tpu.dot_dimension_numbers<[1], [0], [0], [1], [0, 0, 1, 1], [], []>} : vector<256x4xbf16>, vector<4x128xbf16>, vector<256x128xf32> -> vector<256x128xf32>
    %28 = arith.addf %21, %27 : vector<256x128xf32>
    %c0_28 = arith.constant 0 : index
    %c1_29 = arith.constant 1 : index
    %c1_30 = arith.constant 1 : index
    %c0_31 = arith.constant 0 : index
    %29 = vector.load %arg1[%c0_28, %c1_29, %c1_30, %c0_31] : memref<1x18x18x4xbf16, #tpu.memory_space<vmem>>, vector<1x16x16x4xbf16>
    %30 = vector.shape_cast %29 : vector<1x16x16x4xbf16> to vector<16x16x4xbf16>
    %31 = vector.shape_cast %30 : vector<16x16x4xbf16> to vector<256x4xbf16>
    %c4 = arith.constant 4 : index
    %c0_32 = arith.constant 0 : index
    %c0_33 = arith.constant 0 : index
    %32 = vector.load %arg2[%c4, %c0_32, %c0_33] : memref<9x4x128xbf16, #tpu.memory_space<vmem>>, vector<1x4x128xbf16>
    %33 = vector.shape_cast %32 : vector<1x4x128xbf16> to vector<4x128xbf16>
    %cst_34 = arith.constant dense<0.000000e+00> : vector<256x128xf32>
    %34 = tpu.matmul %31, %33, %cst_34 {dimension_numbers = #tpu.dot_dimension_numbers<[1], [0], [0], [1], [0, 0, 1, 1], [], []>} : vector<256x4xbf16>, vector<4x128xbf16>, vector<256x128xf32> -> vector<256x128xf32>
    %35 = arith.addf %28, %34 : vector<256x128xf32>
    %c0_35 = arith.constant 0 : index
    %c1_36 = arith.constant 1 : index
    %c2_37 = arith.constant 2 : index
    %c0_38 = arith.constant 0 : index
    %36 = vector.load %arg1[%c0_35, %c1_36, %c2_37, %c0_38] : memref<1x18x18x4xbf16, #tpu.memory_space<vmem>>, vector<1x16x16x4xbf16>
    %37 = vector.shape_cast %36 : vector<1x16x16x4xbf16> to vector<16x16x4xbf16>
    %38 = vector.shape_cast %37 : vector<16x16x4xbf16> to vector<256x4xbf16>
    %c5 = arith.constant 5 : index
    %c0_39 = arith.constant 0 : index
    %c0_40 = arith.constant 0 : index
    %39 = vector.load %arg2[%c5, %c0_39, %c0_40] : memref<9x4x128xbf16, #tpu.memory_space<vmem>>, vector<1x4x128xbf16>
    %40 = vector.shape_cast %39 : vector<1x4x128xbf16> to vector<4x128xbf16>
    %cst_41 = arith.constant dense<0.000000e+00> : vector<256x128xf32>
    %41 = tpu.matmul %38, %40, %cst_41 {dimension_numbers = #tpu.dot_dimension_numbers<[1], [0], [0], [1], [0, 0, 1, 1], [], []>} : vector<256x4xbf16>, vector<4x128xbf16>, vector<256x128xf32> -> vector<256x128xf32>
    %42 = arith.addf %35, %41 : vector<256x128xf32>
    %c0_42 = arith.constant 0 : index
    %c2_43 = arith.constant 2 : index
    %c0_44 = arith.constant 0 : index
    %c0_45 = arith.constant 0 : index
    %43 = vector.load %arg1[%c0_42, %c2_43, %c0_44, %c0_45] : memref<1x18x18x4xbf16, #tpu.memory_space<vmem>>, vector<1x16x16x4xbf16>
    %44 = vector.shape_cast %43 : vector<1x16x16x4xbf16> to vector<16x16x4xbf16>
    %45 = vector.shape_cast %44 : vector<16x16x4xbf16> to vector<256x4xbf16>
    %c6 = arith.constant 6 : index
    %c0_46 = arith.constant 0 : index
    %c0_47 = arith.constant 0 : index
    %46 = vector.load %arg2[%c6, %c0_46, %c0_47] : memref<9x4x128xbf16, #tpu.memory_space<vmem>>, vector<1x4x128xbf16>
    %47 = vector.shape_cast %46 : vector<1x4x128xbf16> to vector<4x128xbf16>
    %cst_48 = arith.constant dense<0.000000e+00> : vector<256x128xf32>
    %48 = tpu.matmul %45, %47, %cst_48 {dimension_numbers = #tpu.dot_dimension_numbers<[1], [0], [0], [1], [0, 0, 1, 1], [], []>} : vector<256x4xbf16>, vector<4x128xbf16>, vector<256x128xf32> -> vector<256x128xf32>
    %49 = arith.addf %42, %48 : vector<256x128xf32>
    %c0_49 = arith.constant 0 : index
    %c2_50 = arith.constant 2 : index
    %c1_51 = arith.constant 1 : index
    %c0_52 = arith.constant 0 : index
    %50 = vector.load %arg1[%c0_49, %c2_50, %c1_51, %c0_52] : memref<1x18x18x4xbf16, #tpu.memory_space<vmem>>, vector<1x16x16x4xbf16>
    %51 = vector.shape_cast %50 : vector<1x16x16x4xbf16> to vector<16x16x4xbf16>
    %52 = vector.shape_cast %51 : vector<16x16x4xbf16> to vector<256x4xbf16>
    %c7 = arith.constant 7 : index
    %c0_53 = arith.constant 0 : index
    %c0_54 = arith.constant 0 : index
    %53 = vector.load %arg2[%c7, %c0_53, %c0_54] : memref<9x4x128xbf16, #tpu.memory_space<vmem>>, vector<1x4x128xbf16>
    %54 = vector.shape_cast %53 : vector<1x4x128xbf16> to vector<4x128xbf16>
    %cst_55 = arith.constant dense<0.000000e+00> : vector<256x128xf32>
    %55 = tpu.matmul %52, %54, %cst_55 {dimension_numbers = #tpu.dot_dimension_numbers<[1], [0], [0], [1], [0, 0, 1, 1], [], []>} : vector<256x4xbf16>, vector<4x128xbf16>, vector<256x128xf32> -> vector<256x128xf32>
    %56 = arith.addf %49, %55 : vector<256x128xf32>
    %c0_56 = arith.constant 0 : index
    %c2_57 = arith.constant 2 : index
    %c2_58 = arith.constant 2 : index
    %c0_59 = arith.constant 0 : index
    %57 = vector.load %arg1[%c0_56, %c2_57, %c2_58, %c0_59] : memref<1x18x18x4xbf16, #tpu.memory_space<vmem>>, vector<1x16x16x4xbf16>
    %58 = vector.shape_cast %57 : vector<1x16x16x4xbf16> to vector<16x16x4xbf16>
    %59 = vector.shape_cast %58 : vector<16x16x4xbf16> to vector<256x4xbf16>
    %c8 = arith.constant 8 : index
    %c0_60 = arith.constant 0 : index
    %c0_61 = arith.constant 0 : index
    %60 = vector.load %arg2[%c8, %c0_60, %c0_61] : memref<9x4x128xbf16, #tpu.memory_space<vmem>>, vector<1x4x128xbf16>
    %61 = vector.shape_cast %60 : vector<1x4x128xbf16> to vector<4x128xbf16>
    %cst_62 = arith.constant dense<0.000000e+00> : vector<256x128xf32>
    %62 = tpu.matmul %59, %61, %cst_62 {dimension_numbers = #tpu.dot_dimension_numbers<[1], [0], [0], [1], [0, 0, 1, 1], [], []>} : vector<256x4xbf16>, vector<4x128xbf16>, vector<256x128xf32> -> vector<256x128xf32>
    %63 = arith.addf %56, %62 : vector<256x128xf32>
    %c0_63 = arith.constant 0 : index
    %c0_64 = arith.constant 0 : index
    %64 = vector.load %arg3[%c0_63, %c0_64] : memref<1x128xf32, #tpu.memory_space<vmem>>, vector<1x128xf32>
    %65 = vector.broadcast %64 : vector<1x128xf32> to vector<256x128xf32>
    %66 = arith.addf %63, %65 : vector<256x128xf32>
    %cst_65 = arith.constant 0.000000e+00 : f32
    %67 = vector.broadcast %cst_65 : f32 to vector<256x128xf32>
    %68 = arith.maximumf %66, %67 : vector<256x128xf32>
    %69 = arith.truncf %68 : vector<256x128xf32> to vector<256x128xbf16>
    %c0_66 = arith.constant 0 : index
    %c0_67 = arith.constant 0 : index
    %70 = vector.load %arg4[%c0_66, %c0_67] : memref<128x128xbf16, #tpu.memory_space<vmem>>, vector<128x128xbf16>
    %cst_68 = arith.constant dense<0.000000e+00> : vector<256x128xf32>
    %71 = tpu.matmul %69, %70, %cst_68 {dimension_numbers = #tpu.dot_dimension_numbers<[1], [0], [0], [1], [0, 0, 1, 1], [], []>} : vector<256x128xbf16>, vector<128x128xbf16>, vector<256x128xf32> -> vector<256x128xf32>
    %c0_69 = arith.constant 0 : index
    %c0_70 = arith.constant 0 : index
    %72 = vector.load %arg5[%c0_69, %c0_70] : memref<1x128xf32, #tpu.memory_space<vmem>>, vector<1x128xf32>
    %73 = vector.broadcast %72 : vector<1x128xf32> to vector<256x128xf32>
    %74 = arith.addf %71, %73 : vector<256x128xf32>
    %c0_71 = arith.constant 0 : index
    %c0_72 = arith.constant 0 : index
    %75 = vector.load %arg6[%c0_71, %c0_72] : memref<256x128xf32, #tpu.memory_space<vmem>>, vector<256x128xf32>
    tpu.vector_store %arg6[%c0_71, %c0_72], %74 {strides = array<i32>} : memref<256x128xf32, #tpu.memory_space<vmem>>, vector<256x128xf32>,
    return
  }
  func.func @transform_0(%arg0: i32) -> (i32, i32, i32, i32) {
    %c0_i32 = arith.constant 0 : i32
    %c0_i32_0 = arith.constant 0 : i32
    %c0_i32_1 = arith.constant 0 : i32
    %c0_i32_2 = arith.constant 0 : i32
    return %arg0, %c0_i32, %c0_i32_0, %c0_i32_1 : i32, i32, i32, i32
  }
  func.func @transform_1(%arg0: i32) -> (i32, i32, i32) {
    %c0_i32 = arith.constant 0 : i32
    %c0_i32_0 = arith.constant 0 : i32
    %c0_i32_1 = arith.constant 0 : i32
    %c0_i32_2 = arith.constant 0 : i32
    return %c0_i32, %c0_i32_0, %c0_i32_1 : i32, i32, i32
  }
  func.func @transform_2(%arg0: i32) -> (i32, i32) {
    %c0_i32 = arith.constant 0 : i32
    %c0_i32_0 = arith.constant 0 : i32
    %c0_i32_1 = arith.constant 0 : i32
    return %c0_i32, %c0_i32_0 : i32, i32
  }
  func.func @transform_3(%arg0: i32) -> (i32, i32) {
    %c0_i32 = arith.constant 0 : i32
    %c0_i32_0 = arith.constant 0 : i32
    %c0_i32_1 = arith.constant 0 : i32
    return %c0_i32, %c0_i32_0 : i32, i32
  }
  func.func @transform_4(%arg0: i32) -> (i32, i32) {
    %c0_i32 = arith.constant 0 : i32
    %c0_i32_0 = arith.constant 0 : i32
    %c0_i32_1 = arith.constant 0 : i32
    return %c0_i32, %c0_i32_0 : i32, i32
  }
  func.func @transform_5(%arg0: i32) -> (i32, i32) {
    %c0_i32 = arith.constant 0 : i32
    %c0_i32_0 = arith.constant 0 : i32
    return %arg0, %c0_i32 : i32, i32
  }
}

</mosaic_0001>

<llo_original>
// kernel: head_forward.1
$region0: #{head_forward.1}
  #allocation0 [shape = 'u32[]', space=smem, size = 0x4, offset = 0x4, fixed_abs, tag = 'smem constant byte address 0x4 - core index']
  #allocation1 [shape = 'u32[144,128]{1,0:T(1,128)}', space=vmem, size = 0x12000, scoped, tag = 'internal scratch']
  %s0 = inlined_call_operand.vmem [shape: bf16[2,18,18,4], index: 0, kind: input, shape index: {}]
  %s1 = inlined_call_operand.vmem [shape: bf16[9,4,128], index: 1, kind: input, shape index: {}]
  %s2 = inlined_call_operand.vmem [shape: f32[1,128], index: 2, kind: input, shape index: {}]
  %s3 = inlined_call_operand.vmem [shape: bf16[128,128], index: 3, kind: input, shape index: {}]
  %s4 = inlined_call_operand.vmem [shape: f32[1,128], index: 4, kind: input, shape index: {}]
  %s5 = inlined_call_operand.vmem [shape: f32[512,128], index: 5, kind: output, shape index: {}]
  %s6 = sld [smem:[#allocation0]]
  $region53: #{head_forward.1} parent=0
    _
  %s8 = ssub.s32 1, %s6
  %s9 = scalar_select 0, %s8, %s6
  loop: start=0, step=1, limit=4
  $region2: #{head_forward.1} parent=0 // loop_pre_header
    _
  $region3: #{head_forward.1} parent=0 // loop_header
    %s11 = sphi 0, %s15
    %p12 = scmp.ge.s32.totalorder %s11, 4
    %s21 = sphi 0, %s23
    %s24 = sphi 0, %s21
    %s25 = sphi 0, %s24
    %s41 = sphi 0, %s25
    %s45 = sphi 0, %s45
    %s47 = sphi 0, %s45
    %s48 = sphi 0, %s47
    %s62 = sphi 0, %s48
    %s66 = sphi 0, %s66
    %s68 = sphi 0, %s66
    %s69 = sphi 0, %s68
    %s83 = sphi 0, %s69
    %s87 = sphi 0, %s87
    %s89 = sphi 0, %s87
    %s90 = sphi 0, %s89
    %s104 = sphi 0, %s90
    %s108 = sphi 0, %s108
    %s110 = sphi 0, %s108
    %s111 = sphi 0, %s110
    %s125 = sphi 0, %s111
    %s131 = sphi 0, %s133
    %s134 = sphi 0, %s131
    %s135 = sphi 0, %s134
    %s151 = sphi 0, %s135
  $region4: #{head_forward.1} parent=0 // loop_header_branch
    %14 = sbr.rel (%p12) target = $region8
  $region5: #{head_forward.1} parent=0 // loop_body
    %s16 = ssub.s32 %s11, 1
    %s17 = ssub.s32 %s11, 2
    %s18 = sadd.s32 %s11, 1
    %s19 = ssub.s32 %s11, %s18
    %p20 = scmp.eq.s32.totalorder %s19, 0
    %s22 = sadd.s32 %s21, 1
    %s23 = scalar_select %p20, %s21, %s22
    %p26 = pneg %p20
    %p27 = scmp.eq.s32.totalorder %s11, 1
    %p28 = por %p26, %p27
    %p29 = scmp.ne.s32.totalorder %s21, %s24
    %p30 = scmp.eq.s32.totalorder %s11, 0
    %p31 = por %p29, %p30
    %p32 = scmp.ne.s32.totalorder %s21, %s24
    %p33 = scmp.eq.s32.totalorder %s16, 1
    %p34 = por %p32, %p33
    %p35 = scmp.ne.s32.totalorder %s24, %s25
    %p36 = scmp.eq.s32.totalorder %s16, 0
    %p37 = por %p35, %p36
    %p38 = scmp.ne.s32.totalorder %s24, %s25
    %p39 = scmp.eq.s32.totalorder %s17, 1
    %p40 = por %p38, %p39
    %p42 = scmp.ne.s32.totalorder %s25, %s41
    %p43 = scmp.eq.s32.totalorder %s17, 0
    %p44 = por %p42, %p43
    %s46 = sadd.s32 %s45, 1
    %p49 = scmp.eq.s32.totalorder %s11, 1
    %p50 = scmp.ne.s32.totalorder %s45, %s47
    %p51 = scmp.eq.s32.totalorder %s11, 0
    %p52 = por %p50, %p51
    %p53 = scmp.ne.s32.totalorder %s45, %s47
    %p54 = scmp.eq.s32.totalorder %s16, 1
    %p55 = por %p53, %p54
    %p56 = scmp.ne.s32.totalorder %s47, %s48
    %p57 = scmp.eq.s32.totalorder %s16, 0
    %p58 = por %p56, %p57
    %p59 = scmp.ne.s32.totalorder %s47, %s48
    %p60 = scmp.eq.s32.totalorder %s17, 1
    %p61 = por %p59, %p60
    %p63 = scmp.ne.s32.totalorder %s48, %s62
    %p64 = scmp.eq.s32.totalorder %s17, 0
    %p65 = por %p63, %p64
    %s67 = sadd.s32 %s66, 1
    %p70 = scmp.eq.s32.totalorder %s11, 1
    %p71 = scmp.ne.s32.totalorder %s66, %s68
    %p72 = scmp.eq.s32.totalorder %s11, 0
    %p73 = por %p71, %p72
    %p74 = scmp.ne.s32.totalorder %s66, %s68
    %p75 = scmp.eq.s32.totalorder %s16, 1
    %p76 = por %p74, %p75
    %p77 = scmp.ne.s32.totalorder %s68, %s69
    %p78 = scmp.eq.s32.totalorder %s16, 0
    %p79 = por %p77, %p78
    %p80 = scmp.ne.s32.totalorder %s68, %s69
    %p81 = scmp.eq.s32.totalorder %s17, 1
    %p82 = por %p80, %p81
    %p84 = scmp.ne.s32.totalorder %s69, %s83
    %p85 = scmp.eq.s32.totalorder %s17, 0
    %p86 = por %p84, %p85
    %s88 = sadd.s32 %s87, 1
    %p91 = scmp.eq.s32.totalorder %s11, 1
    %p92 = scmp.ne.s32.totalorder %s87, %s89
    %p93 = scmp.eq.s32.totalorder %s11, 0
    %p94 = por %p92, %p93
    %p95 = scmp.ne.s32.totalorder %s87, %s89
    %p96 = scmp.eq.s32.totalorder %s16, 1
    %p97 = por %p95, %p96
    %p98 = scmp.ne.s32.totalorder %s89, %s90
    %p99 = scmp.eq.s32.totalorder %s16, 0
    %p100 = por %p98, %p99
    %p101 = scmp.ne.s32.totalorder %s89, %s90
    %p102 = scmp.eq.s32.totalorder %s17, 1
    %p103 = por %p101, %p102
    %p105 = scmp.ne.s32.totalorder %s90, %s104
    %p106 = scmp.eq.s32.totalorder %s17, 0
    %p107 = por %p105, %p106
    %s109 = sadd.s32 %s108, 1
    %p112 = scmp.eq.s32.totalorder %s11, 1
    %p113 = scmp.ne.s32.totalorder %s108, %s110
    %p114 = scmp.eq.s32.totalorder %s11, 0
    %p115 = por %p113, %p114
    %p116 = scmp.ne.s32.totalorder %s108, %s110
    %p117 = scmp.eq.s32.totalorder %s16, 1
    %p118 = por %p116, %p117
    %p119 = scmp.ne.s32.totalorder %s110, %s111
    %p120 = scmp.eq.s32.totalorder %s16, 0
    %p121 = por %p119, %p120
    %p122 = scmp.ne.s32.totalorder %s110, %s111
    %p123 = scmp.eq.s32.totalorder %s17, 1
    %p124 = por %p122, %p123
    %p126 = scmp.ne.s32.totalorder %s111, %s125
    %p127 = scmp.eq.s32.totalorder %s17, 0
    %p128 = por %p126, %p127
    %s129 = ssub.s32 %s11, %s18
    %p130 = scmp.eq.s32.totalorder %s129, 0
    %s132 = sadd.s32 %s131, 1
    %s133 = scalar_select %p130, %s131, %s132
    %p136 = pneg %p130
    %p137 = scmp.eq.s32.totalorder %s11, 1
    %p138 = por %p136, %p137
    %p139 = scmp.ne.s32.totalorder %s131, %s134
    %p140 = scmp.eq.s32.totalorder %s11, 0
    %p141 = por %p139, %p140
    %p142 = scmp.ne.s32.totalorder %s131, %s134
    %p143 = scmp.eq.s32.totalorder %s16, 1
    %p144 = por %p142, %p143
    %p145 = scmp.ne.s32.totalorder %s134, %s135
    %p146 = scmp.eq.s32.totalorder %s16, 0
    %p147 = por %p145, %p146
    %p148 = scmp.ne.s32.totalorder %s134, %s135
    %p149 = scmp.eq.s32.totalorder %s17, 1
    %p150 = por %p148, %p149
    %p152 = scmp.ne.s32.totalorder %s135, %s151
    %p153 = scmp.eq.s32.totalorder %s17, 0
    %p154 = por %p152, %p153
    %p155 = scmp.le.s32.totalorder 1, %s11
    %p156 = scmp.lt.s32.totalorder %s11, 3
    %p157 = pnand %p155, %p156
    %p158 = pneg %p157
    // Predicated region
    $region9: #{head_forward.1} parent=5 // pred_check
      _
    $region10: #{head_forward.1} parent=5 // pred_check_branch
      %160 = sbr.rel (%p157) target = $region12
    $region11: #{head_forward.1} parent=5 // pred_region
      %s161 = ssub.s32 %s11, 1
      // Predicated region
      $region13: #{head_forward.1} parent=11 // pred_check
        %p162 = pneg %p58
      $region14: #{head_forward.1} parent=11 // pred_check_branch
        %164 = sbr.rel (%p162) target = $region16
      $region15: #{head_forward.1} parent=11 // pred_region
        _
      $region16: #{head_forward.1} parent=11 // pred_fallthru
        _
      // Predicated region
      $region17: #{head_forward.1} parent=11 // pred_check
        %p165 = pneg %p79
      $region18: #{head_forward.1} parent=11 // pred_check_branch
        %167 = sbr.rel (%p165) target = $region20
      $region19: #{head_forward.1} parent=11 // pred_region
        _
      $region20: #{head_forward.1} parent=11 // pred_fallthru
        _
      // Predicated region
      $region21: #{head_forward.1} parent=11 // pred_check
        %p168 = pneg %p100
      $region22: #{head_forward.1} parent=11 // pred_check_branch
        %170 = sbr.rel (%p168) target = $region24
      $region23: #{head_forward.1} parent=11 // pred_region
        _
      $region24: #{head_forward.1} parent=11 // pred_fallthru
        _
      // Predicated region
      $region25: #{head_forward.1} parent=11 // pred_check
        %p171 = pneg %p121
      $region26: #{head_forward.1} parent=11 // pred_check_branch
        %173 = sbr.rel (%p171) target = $region28
      $region27: #{head_forward.1} parent=11 // pred_region
        _
      $region28: #{head_forward.1} parent=11 // pred_fallthru
        _
    $region12: #{head_forward.1} parent=5 // pred_fallthru
      _
    %p174 = scmp.lt.s32.totalorder %s11, 2
    // Predicated region
    $region29: #{head_forward.1} parent=5 // pred_check
      %p175 = pneg %p174
    $region30: #{head_forward.1} parent=5 // pred_check_branch
      %177 = sbr.rel (%p175) target = $region32
    $region31: #{head_forward.1} parent=5 // pred_region
      // Predicated region
      $region33: #{head_forward.1} parent=31 // pred_check
        %p178 = pneg %p31
      $region34: #{head_forward.1} parent=31 // pred_check_branch
        %180 = sbr.rel (%p178) target = $region36
      $region35: #{head_forward.1} parent=31 // pred_region
        %p181 = scmp.lt.s32.totalorder %s11, 1
        %s182 = scalar_select %p181, %s11, 1
        %s183 = smul.addr %s182, 54
        %s184 = smul.addr %s183, 4
        %s185 = scalar_lea.vmem %s0, %s184
      $region36: #{head_forward.1} parent=31 // pred_fallthru
        _
    $region32: #{head_forward.1} parent=5 // pred_fallthru
      _
    %p186 = scmp.le.s32.totalorder 1, %s11
    %p187 = scmp.lt.s32.totalorder %s11, 3
    %p188 = pnand %p186, %p187
    %p189 = pneg %p188
    // Predicated region
    $region37: #{head_forward.1} parent=5 // pred_check
      _
    $region38: #{head_forward.1} parent=5 // pred_check_branch
      %191 = sbr.rel (%p188) target = $region40
    $region39: #{head_forward.1} parent=5 // pred_region
      %s192 = ssub.s32 %s11, 1
      %p193 = scmp.lt.s32.totalorder %s16, 1
      %s194 = scalar_select %p193, %s16, 1
      %s195 = smul.addr %s194, 54
      %s196 = smul.addr %s195, 4
      %s197 = scalar_lea.vmem %s0, %s196
      %p198 = pneg %p37
      %p199 = pneg %p34
      %p200 = pneg %p58
      %p201 = pneg %p55
      %p202 = pneg %p79
      %p203 = pneg %p76
      %p204 = pneg %p100
      %p205 = pneg %p97
      %p206 = pneg %p121
      %p207 = pneg %p118
      %p208 = pneg %p147
      %p209 = pneg %p144
      %s210 = smul.u32 32, %s16
      %p211 = scmp.lt.s32.totalorder %s210, 63
      %s212 = scalar_select %p211, %s210, 63
      %s213 = smul.addr %s212, 8
      %s214 = scalar_lea.vmem %s5, %s213
      %p215 = scmp.lt.s32.totalorder %s16, 1
      %s216 = scalar_select %p215, %s16, 1
      %s217 = smul.addr %s216, 54
      %s218 = smul.addr %s217, 4
      %s219 = scalar_lea.vmem %s0, %s218
      %s220 = smul.u32 32, %s16
      %p221 = scmp.lt.s32.totalorder %s220, 63
      %s222 = scalar_select %p221, %s220, 63
      %s223 = smul.addr %s222, 8
      %s224 = scalar_lea.vmem %s5, %s223
      %s225 = smul.u32 32, %s16
      %v227 = vld [vmem:[%s219] sm:$0xf]
      %v228 = vld [vmem:[%s219 + $0x4] sm:$0xf]
      %v229 = vld [vmem:[%s219 + $0xc] sm:$0xf]
      %v230 = vld [vmem:[%s219 + $0x10] sm:$0xf]
      %v231 = vld [vmem:[%s219 + $0x18] sm:$0xf]
      %v232 = vld [vmem:[%s219 + $0x1c] sm:$0xf]
      %v233 = vld [vmem:[%s219 + $0x24] sm:$0xf]
      %v234 = vld [vmem:[%s219 + $0x28] sm:$0xf]
      %v235 = vld [vmem:[%s219 + $0x30] sm:$0xf]
      %v236 = vld [vmem:[%s219 + $0x34] sm:$0xf]
      %v237 = vld [vmem:[%s219 + $0x3c] sm:$0xf]
      %v238 = vld [vmem:[%s219 + $0x40] sm:$0xf]
      %v239 = vld [vmem:[%s219 + $0x48] sm:$0xf]
      %v240 = vld [vmem:[%s219 + $0x4c] sm:$0xf]
      %v241 = vld [vmem:[%s219 + $0x54] sm:$0xf]
      %v242 = vld [vmem:[%s219 + $0x58] sm:$0xf]
      %v243 = vld [vmem:[%s219 + $0x60] sm:$0xf]
      %v244 = vld [vmem:[%s219 + $0x64] sm:$0xf]
      %v245 = vld [vmem:[%s219 + $0x6c] sm:$0xf]
      %v246 = vld [vmem:[%s219 + $0x70] sm:$0xf]
      %v247 = vld [vmem:[%s219 + $0x78] sm:$0xf]
      %v248 = vld [vmem:[%s219 + $0x7c] sm:$0xf]
      %v249 = vld [vmem:[%s219 + $0x84] sm:$0xf]
      %v250 = vld [vmem:[%s219 + $0x88] sm:$0xf]
      %v251 = vld [vmem:[%s219 + $0x90] sm:$0xf]
      %v252 = vld [vmem:[%s219 + $0x94] sm:$0xf]
      %v253 = vld [vmem:[%s219 + $0x9c] sm:$0xf]
      %v254 = vld [vmem:[%s219 + $0xa0] sm:$0xf]
      %v255 = vld [vmem:[%s219 + $0xa8] sm:$0xf]
      %v256 = vld [vmem:[%s219 + $0xac] sm:$0xf]
      %v257 = vld [vmem:[%s219 + $0xb4] sm:$0xf]
      %v258 = vld [vmem:[%s219 + $0xb8] sm:$0xf]
      %v259 = vld [vmem:[%s1] sm:$0x3]
      %v260 = vld [vmem:[%s219 + $0x8] sm:$0x1]
      %v261 = vld [vmem:[%s219 + $0x14] sm:$0x1]
      %v262 = vld [vmem:[%s219 + $0x20] sm:$0x1]
      %v263 = vld [vmem:[%s219 + $0x2c] sm:$0x1]
      %v264 = vld [vmem:[%s219 + $0x38] sm:$0x1]
      %v265 = vld [vmem:[%s219 + $0x44] sm:$0x1]
      %v266 = vld [vmem:[%s219 + $0x50] sm:$0x1]
      %v267 = vld [vmem:[%s219 + $0x5c] sm:$0x1]
      %v268 = vld [vmem:[%s219 + $0x68] sm:$0x1]
      %v269 = vld [vmem:[%s219 + $0x74] sm:$0x1]
      %v270 = vld [vmem:[%s219 + $0x80] sm:$0x1]
      %v271 = vld [vmem:[%s219 + $0x8c] sm:$0x1]
      %v272 = vld [vmem:[%s219 + $0x98] sm:$0x1]
      %v273 = vld [vmem:[%s219 + $0xa4] sm:$0x1]
      %v274 = vld [vmem:[%s219 + $0xb0] sm:$0x1]
      %v275 = vld [vmem:[%s219 + $0xbc] sm:$0x1]
      %vm276 = vsmask.f32 3328
      %vm277 = vsmask.f32 7440
      %vm278 = vmor %vm276, %vm277
      %v280 = vshrl.u32 %v227, 16
      %v282 = vrot.slane %v280, 4
      %v283 = vshll.u32 %v227, 16
      %v285 = vrot.slane %v283, 5
      %v286 = vor.u32 %v282, %v285
      %v287 = vrot.slane %v286, 4
      %v289 = vshll.u32 %v228, 16
      %v291 = vrot.slane %v289, 5
      %v292 = vsel %vm278, %v287, %v291
      %v293 = vshrl.u32 %v228, 16
      %v295 = vrot.slane %v293, 4
      %v296 = vor.u32 %v295, %v291
      %v297 = vrot.slane %v296, 4
      %v299 = vshll.u32 %v260, 16
      %v301 = vrot.slane %v299, 5
      %v302 = vsel %vm278, %v297, %v301
      %v304 = vshrl.u32 %v229, 16
      %v306 = vrot.slane %v304, 4
      %v307 = vshll.u32 %v229, 16
      %v309 = vrot.slane %v307, 5
      %v310 = vor.u32 %v306, %v309
      %v311 = vrot.slane %v310, 4
      %v313 = vshll.u32 %v230, 16
      %v315 = vrot.slane %v313, 5
      %v316 = vsel %vm278, %v311, %v315
      %v317 = vshrl.u32 %v230, 16
      %v319 = vrot.slane %v317, 4
      %v320 = vor.u32 %v319, %v315
      %v321 = vrot.slane %v320, 4
      %v323 = vshll.u32 %v261, 16
      %v325 = vrot.slane %v323, 5
      %v326 = vsel %vm278, %v321, %v325
      %v328 = vshrl.u32 %v231, 16
      %v330 = vrot.slane %v328, 4
      %v331 = vshll.u32 %v231, 16
      %v333 = vrot.slane %v331, 5
      %v334 = vor.u32 %v330, %v333
      %v335 = vrot.slane %v334, 4
      %v337 = vshll.u32 %v232, 16
      %v339 = vrot.slane %v337, 5
      %v340 = vsel %vm278, %v335, %v339
      %v341 = vshrl.u32 %v232, 16
      %v343 = vrot.slane %v341, 4
      %v344 = vor.u32 %v343, %v339
      %v345 = vrot.slane %v344, 4
      %v347 = vshll.u32 %v262, 16
      %v349 = vrot.slane %v347, 5
      %v350 = vsel %vm278, %v345, %v349
      %v352 = vshrl.u32 %v233, 16
      %v354 = vrot.slane %v352, 4
      %v355 = vshll.u32 %v233, 16
      %v357 = vrot.slane %v355, 5
      %v358 = vor.u32 %v354, %v357
      %v359 = vrot.slane %v358, 4
      %v361 = vshll.u32 %v234, 16
      %v363 = vrot.slane %v361, 5
      %v364 = vsel %vm278, %v359, %v363
      %v365 = vshrl.u32 %v234, 16
      %v367 = vrot.slane %v365, 4
      %v368 = vor.u32 %v367, %v363
      %v369 = vrot.slane %v368, 4
      %v371 = vshll.u32 %v263, 16
      %v373 = vrot.slane %v371, 5
      %v374 = vsel %vm278, %v369, %v373
      %v376 = vshrl.u32 %v235, 16
      %v378 = vrot.slane %v376, 4
      %v379 = vshll.u32 %v235, 16
      %v381 = vrot.slane %v379, 5
      %v382 = vor.u32 %v378, %v381
      %v383 = vrot.slane %v382, 4
      %v385 = vshll.u32 %v236, 16
      %v387 = vrot.slane %v385, 5
      %v388 = vsel %vm278, %v383, %v387
      %v389 = vshrl.u32 %v236, 16
      %v391 = vrot.slane %v389, 4
      %v392 = vor.u32 %v391, %v387
      %v393 = vrot.slane %v392, 4
      %v395 = vshll.u32 %v264, 16
      %v397 = vrot.slane %v395, 5
      %v398 = vsel %vm278, %v393, %v397
      %v400 = vshrl.u32 %v237, 16
      %v402 = vrot.slane %v400, 4
      %v403 = vshll.u32 %v237, 16
      %v405 = vrot.slane %v403, 5
      %v406 = vor.u32 %v402, %v405
      %v407 = vrot.slane %v406, 4
      %v409 = vshll.u32 %v238, 16
      %v411 = vrot.slane %v409, 5
      %v412 = vsel %vm278, %v407, %v411
      %v413 = vshrl.u32 %v238, 16
      %v415 = vrot.slane %v413, 4
      %v416 = vor.u32 %v415, %v411
      %v417 = vrot.slane %v416, 4
      %v419 = vshll.u32 %v265, 16
      %v421 = vrot.slane %v419, 5
      %v422 = vsel %vm278, %v417, %v421
      %v424 = vshrl.u32 %v239, 16
      %v426 = vrot.slane %v424, 4
      %v427 = vshll.u32 %v239, 16
      %v429 = vrot.slane %v427, 5
      %v430 = vor.u32 %v426, %v429
      %v431 = vrot.slane %v430, 4
      %v433 = vshll.u32 %v240, 16
      %v435 = vrot.slane %v433, 5
      %v436 = vsel %vm278, %v431, %v435
      %v437 = vshrl.u32 %v240, 16
      %v439 = vrot.slane %v437, 4
      %v440 = vor.u32 %v439, %v435
      %v441 = vrot.slane %v440, 4
      %v443 = vshll.u32 %v266, 16
      %v445 = vrot.slane %v443, 5
      %v446 = vsel %vm278, %v441, %v445
      %v448 = vshrl.u32 %v241, 16
      %v450 = vrot.slane %v448, 4
      %v451 = vshll.u32 %v241, 16
      %v453 = vrot.slane %v451, 5
      %v454 = vor.u32 %v450, %v453
      %v455 = vrot.slane %v454, 4
      %v457 = vshll.u32 %v242, 16
      %v459 = vrot.slane %v457, 5
      %v460 = vsel %vm278, %v455, %v459
      %v461 = vshrl.u32 %v242, 16
      %v463 = vrot.slane %v461, 4
      %v464 = vor.u32 %v463, %v459
      %v465 = vrot.slane %v464, 4
      %v467 = vshll.u32 %v267, 16
      %v469 = vrot.slane %v467, 5
      %v470 = vsel %vm278, %v465, %v469
      %v472 = vshrl.u32 %v243, 16
      %v474 = vrot.slane %v472, 4
      %v475 = vshll.u32 %v243, 16
      %v477 = vrot.slane %v475, 5
      %v478 = vor.u32 %v474, %v477
      %v479 = vrot.slane %v478, 4
      %v481 = vshll.u32 %v244, 16
      %v483 = vrot.slane %v481, 5
      %v484 = vsel %vm278, %v479, %v483
      %v485 = vshrl.u32 %v244, 16
      %v487 = vrot.slane %v485, 4
      %v488 = vor.u32 %v487, %v483
      %v489 = vrot.slane %v488, 4
      %v491 = vshll.u32 %v268, 16
      %v493 = vrot.slane %v491, 5
      %v494 = vsel %vm278, %v489, %v493
      %v496 = vshrl.u32 %v245, 16
      %v498 = vrot.slane %v496, 4
      %v499 = vshll.u32 %v245, 16
      %v501 = vrot.slane %v499, 5
      %v502 = vor.u32 %v498, %v501
      %v503 = vrot.slane %v502, 4
      %v505 = vshll.u32 %v246, 16
      %v507 = vrot.slane %v505, 5
      %v508 = vsel %vm278, %v503, %v507
      %v509 = vshrl.u32 %v246, 16
      %v511 = vrot.slane %v509, 4
      %v512 = vor.u32 %v511, %v507
      %v513 = vrot.slane %v512, 4
      %v515 = vshll.u32 %v269, 16
      %v517 = vrot.slane %v515, 5
      %v518 = vsel %vm278, %v513, %v517
      %v520 = vshrl.u32 %v247, 16
      %v522 = vrot.slane %v520, 4
      %v523 = vshll.u32 %v247, 16
      %v525 = vrot.slane %v523, 5
      %v526 = vor.u32 %v522, %v525
      %v527 = vrot.slane %v526, 4
      %v529 = vshll.u32 %v248, 16
      %v531 = vrot.slane %v529, 5
      %v532 = vsel %vm278, %v527, %v531
      %v533 = vshrl.u32 %v248, 16
      %v535 = vrot.slane %v533, 4
      %v536 = vor.u32 %v535, %v531
      %v537 = vrot.slane %v536, 4
      %v539 = vshll.u32 %v270, 16
      %v541 = vrot.slane %v539, 5
      %v542 = vsel %vm278, %v537, %v541
      %v544 = vshrl.u32 %v249, 16
      %v546 = vrot.slane %v544, 4
      %v547 = vshll.u32 %v249, 16
      %v549 = vrot.slane %v547, 5
      %v550 = vor.u32 %v546, %v549
      %v551 = vrot.slane %v550, 4
      %v553 = vshll.u32 %v250, 16
      %v555 = vrot.slane %v553, 5
      %v556 = vsel %vm278, %v551, %v555
      %v557 = vshrl.u32 %v250, 16
      %v559 = vrot.slane %v557, 4
      %v560 = vor.u32 %v559, %v555
      %v561 = vrot.slane %v560, 4
      %v563 = vshll.u32 %v271, 16
      %v565 = vrot.slane %v563, 5
      %v566 = vsel %vm278, %v561, %v565
      %v568 = vshrl.u32 %v251, 16
      %v570 = vrot.slane %v568, 4
      %v571 = vshll.u32 %v251, 16
      %v573 = vrot.slane %v571, 5
      %v574 = vor.u32 %v570, %v573
      %v575 = vrot.slane %v574, 4
      %v577 = vshll.u32 %v252, 16
      %v579 = vrot.slane %v577, 5
      %v580 = vsel %vm278, %v575, %v579
      %v581 = vshrl.u32 %v252, 16
      %v583 = vrot.slane %v581, 4
      %v584 = vor.u32 %v583, %v579
      %v585 = vrot.slane %v584, 4
      %v587 = vshll.u32 %v272, 16
      %v589 = vrot.slane %v587, 5
      %v590 = vsel %vm278, %v585, %v589
      %v592 = vshrl.u32 %v253, 16
      %v594 = vrot.slane %v592, 4
      %v595 = vshll.u32 %v253, 16
      %v597 = vrot.slane %v595, 5
      %v598 = vor.u32 %v594, %v597
      %v599 = vrot.slane %v598, 4
      %v601 = vshll.u32 %v254, 16
      %v603 = vrot.slane %v601, 5
      %v604 = vsel %vm278, %v599, %v603
      %v605 = vshrl.u32 %v254, 16
      %v607 = vrot.slane %v605, 4
      %v608 = vor.u32 %v607, %v603
      %v609 = vrot.slane %v608, 4
      %v611 = vshll.u32 %v273, 16
      %v613 = vrot.slane %v611, 5
      %v614 = vsel %vm278, %v609, %v613
      %v616 = vshrl.u32 %v255, 16
      %v618 = vrot.slane %v616, 4
      %v619 = vshll.u32 %v255, 16
      %v621 = vrot.slane %v619, 5
      %v622 = vor.u32 %v618, %v621
      %v623 = vrot.slane %v622, 4
      %v625 = vshll.u32 %v256, 16
      %v627 = vrot.slane %v625, 5
      %v628 = vsel %vm278, %v623, %v627
      %v629 = vshrl.u32 %v256, 16
      %v631 = vrot.slane %v629, 4
      %v632 = vor.u32 %v631, %v627
      %v633 = vrot.slane %v632, 4
      %v635 = vshll.u32 %v274, 16
      %v637 = vrot.slane %v635, 5
      %v638 = vsel %vm278, %v633, %v637
      %v640 = vshrl.u32 %v257, 16
      %v642 = vrot.slane %v640, 4
      %v643 = vshll.u32 %v257, 16
      %v645 = vrot.slane %v643, 5
      %v646 = vor.u32 %v642, %v645
      %v647 = vrot.slane %v646, 4
      %v649 = vshll.u32 %v258, 16
      %v651 = vrot.slane %v649, 5
      %v652 = vsel %vm278, %v647, %v651
      %v653 = vshrl.u32 %v258, 16
      %v655 = vrot.slane %v653, 4
      %v656 = vor.u32 %v655, %v651
      %v657 = vrot.slane %v656, 4
      %v659 = vshll.u32 %v275, 16
      %v661 = vrot.slane %v659, 5
      %v662 = vsel %vm278, %v657, %v661
      %s663 = scalar_lea.vmem %s1, 2
      %v664 = vld [vmem:[%s663] sm:$0x3]
      %v665 = vunpack.c.l.b16 %v292
      %v666 = vunpack.c.l.b16 %v302
      %v667 = vunpack.c.l.b16 %v316
      %v668 = vunpack.c.l.b16 %v326
      %v669 = vunpack.c.l.b16 %v340
      %v670 = vunpack.c.l.b16 %v350
      %v671 = vunpack.c.l.b16 %v364
      %v672 = vunpack.c.l.b16 %v374
      %v673 = vunpack.c.l.b16 %v388
      %v674 = vunpack.c.l.b16 %v398
      %v675 = vunpack.c.l.b16 %v412
      %v676 = vunpack.c.l.b16 %v422
      %v677 = vunpack.c.l.b16 %v436
      %v678 = vunpack.c.l.b16 %v446
      %v679 = vunpack.c.l.b16 %v460
      %v680 = vunpack.c.l.b16 %v470
      %v681 = vunpack.c.l.b16 %v484
      %v682 = vunpack.c.l.b16 %v494
      %v683 = vunpack.c.l.b16 %v508
      %v684 = vunpack.c.l.b16 %v518
      %v685 = vunpack.c.l.b16 %v532
      %v686 = vunpack.c.l.b16 %v542
      %v687 = vunpack.c.l.b16 %v556
      %v688 = vunpack.c.l.b16 %v566
      %v689 = vunpack.c.l.b16 %v580
      %v690 = vunpack.c.l.b16 %v590
      %v691 = vunpack.c.l.b16 %v604
      %v692 = vunpack.c.l.b16 %v614
      %v693 = vunpack.c.l.b16 %v628
      %v694 = vunpack.c.l.b16 %v638
      %v695 = vunpack.c.l.b16 %v652
      %v696 = vunpack.c.l.b16 %v662
      %v697 = vpack.c.b16 %v666, %v665
      %v698 = vpack.c.b16 %v668, %v667
      %v699 = vpack.c.b16 %v670, %v669
      %v700 = vpack.c.b16 %v672, %v671
      %v701 = vpack.c.b16 %v674, %v673
      %v702 = vpack.c.b16 %v676, %v675
      %v703 = vpack.c.b16 %v678, %v677
      %v704 = vpack.c.b16 %v680, %v679
      %v705 = vpack.c.b16 %v682, %v681
      %v706 = vpack.c.b16 %v684, %v683
      %v707 = vpack.c.b16 %v686, %v685
      %v708 = vpack.c.b16 %v688, %v687
      %v709 = vpack.c.b16 %v690, %v689
      %v710 = vpack.c.b16 %v692, %v691
      %v711 = vpack.c.b16 %v694, %v693
      %v712 = vpack.c.b16 %v696, %v695
      %vm713 = vcmask 31744
      %v715 = vsel %vm713, %v697, 0
      %v718 = vsel %vm713, %v698, 0
      %v721 = vsel %vm713, %v699, 0
      %v724 = vsel %vm713, %v700, 0
      %v727 = vsel %vm713, %v701, 0
      %v730 = vsel %vm713, %v702, 0
      %v733 = vsel %vm713, %v703, 0
      %v736 = vsel %vm713, %v704, 0
      %v739 = vsel %vm713, %v705, 0
      %v742 = vsel %vm713, %v706, 0
      %v745 = vsel %vm713, %v707, 0
      %v748 = vsel %vm713, %v708, 0
      %v751 = vsel %vm713, %v709, 0
      %v754 = vsel %vm713, %v710, 0
      %v757 = vsel %vm713, %v711, 0
      %v760 = vsel %vm713, %v712, 0
      %vm762 = vcmask 1041408
      %v764 = vsel %vm762, %v664, 0
      %766 = vmatprep.subr.bf16.mxu0 0
      %767 = vmatpush1.bf16.msra.mxu0 %v764
      %768 = vmatprep.subr.bf16.mxu0 0
      %769 = vmatpush1.bf16.msra.mxu0 0
      %770 = vmatprep.subr.bf16.mxu0 0
      %771 = vmatpush1.bf16.msra.mxu0 0
      %772 = vmatprep.subr.bf16.mxu0 0
      %773 = vmatpush1.bf16.msra.mxu0 0
      %774 = vmatprep.subr.bf16.mxu0 0
      %775 = vmatpush1.bf16.msra.mxu0 0
      %776 = vmatprep.subr.bf16.mxu0 0
      %777 = vmatpush1.bf16.msra.mxu0 0
      %778 = vmatprep.subr.bf16.mxu0 0
      %779 = vmatpush1.bf16.msra.mxu0 0
      %780 = vmatprep.subr.bf16.mxu0 0
      %781 = vmatpush1.bf16.msra.mxu0 0
      %782 = vmatprep.subr.bf16.mxu0 0
      %783 = vmatpush1.bf16.msra.mxu0 0
      %784 = vmatprep.subr.bf16.mxu0 0
      %785 = vmatpush1.bf16.msra.mxu0 0
      %786 = vmatprep.subr.bf16.mxu0 0
      %787 = vmatpush1.bf16.msra.mxu0 0
      %788 = vmatprep.subr.bf16.mxu0 0
      %789 = vmatpush1.bf16.msra.mxu0 0
      %790 = vmatprep.subr.bf16.mxu0 0
      %791 = vmatpush1.bf16.msra.mxu0 0
      %792 = vmatprep.subr.bf16.mxu0 0
      %793 = vmatpush1.bf16.msra.mxu0 0
      %794 = vmatprep.subr.bf16.mxu0 0
      %795 = vmatpush1.bf16.msra.mxu0 0
      %796 = vmatprep.subr.bf16.mxu0 0
      %797 = vmatpush1.bf16.msra.mxu0 0
      %798 = vmatprep.mubr.bf16.mxu0 0
      %799 = vmatmul.mubr.bf16.gmra.mrb[0].mxu0 %v715
      %v800 = vpop.f32.mrb[0].mxu0
      %v801 = vadd.f32 0.0, %v800
      %v802 = vpop.f32.mrb[0].mxu0
      %v803 = vpop.f32.mrb[0].mxu0
      %v804 = vadd.f32 0.0, %v803
      %v805 = vpop.f32.mrb[0].mxu0
      %806 = vmatprep.mubr.bf16.mxu0 0
      %807 = vmatmul.mubr.bf16.gmra.mrb[0].mxu0 %v718
      %v808 = vpop.f32.mrb[0].mxu0
      %v809 = vadd.f32 0.0, %v808
      %v810 = vpop.f32.mrb[0].mxu0
      %v811 = vpop.f32.mrb[0].mxu0
      %v812 = vadd.f32 0.0, %v811
      %v813 = vpop.f32.mrb[0].mxu0
      %814 = vmatprep.mubr.bf16.mxu0 0
      %815 = vmatmul.mubr.bf16.gmra.mrb[0].mxu0 %v721
      %v816 = vpop.f32.mrb[0].mxu0
      %v817 = vadd.f32 0.0, %v816
      %v818 = vpop.f32.mrb[0].mxu0
      %v819 = vpop.f32.mrb[0].mxu0
      %v820 = vadd.f32 0.0, %v819
      %v821 = vpop.f32.mrb[0].mxu0
      %822 = vmatprep.mubr.bf16.mxu0 0
      %823 = vmatmul.mubr.bf16.gmra.mrb[0].mxu0 %v724
      %v824 = vpop.f32.mrb[0].mxu0
      %v825 = vadd.f32 0.0, %v824
      %v826 = vpop.f32.mrb[0].mxu0
      %v827 = vpop.f32.mrb[0].mxu0
      %v828 = vadd.f32 0.0, %v827
      %v829 = vpop.f32.mrb[0].mxu0
      %830 = vmatprep.mubr.bf16.mxu0 0
      %831 = vmatmul.mubr.bf16.gmra.mrb[0].mxu0 %v727
      %v832 = vpop.f32.mrb[0].mxu0
      %v833 = vadd.f32 0.0, %v832
      %v834 = vpop.f32.mrb[0].mxu0
      %v835 = vpop.f32.mrb[0].mxu0
      %v836 = vadd.f32 0.0, %v835
      %v837 = vpop.f32.mrb[0].mxu0
      %838 = vmatprep.mubr.bf16.mxu0 0
      %839 = vmatmul.mubr.bf16.gmra.mrb[0].mxu0 %v730
      %v840 = vpop.f32.mrb[0].mxu0
      %v841 = vadd.f32 0.0, %v840
      %v842 = vpop.f32.mrb[0].mxu0
      %v843 = vpop.f32.mrb[0].mxu0
      %v844 = vadd.f32 0.0, %v843
      %v845 = vpop.f32.mrb[0].mxu0
      %846 = vmatprep.mubr.bf16.mxu0 0
      %847 = vmatmul.mubr.bf16.gmra.mrb[0].mxu0 %v733
      %v848 = vpop.f32.mrb[0].mxu0
      %v849 = vadd.f32 0.0, %v848
      %v850 = vpop.f32.mrb[0].mxu0
      %v851 = vpop.f32.mrb[0].mxu0
      %v852 = vadd.f32 0.0, %v851
      %v853 = vpop.f32.mrb[0].mxu0
      %854 = vmatprep.mubr.bf16.mxu0 0
      %855 = vmatmul.mubr.bf16.gmra.mrb[0].mxu0 %v736
      %v856 = vpop.f32.mrb[0].mxu0
      %v857 = vadd.f32 0.0, %v856
      %v858 = vpop.f32.mrb[0].mxu0
      %v859 = vpop.f32.mrb[0].mxu0
      %v860 = vadd.f32 0.0, %v859
      %v861 = vpop.f32.mrb[0].mxu0
      %862 = vmatprep.mubr.bf16.mxu0 0
      %863 = vmatmul.mubr.bf16.gmra.mrb[0].mxu0 %v739
      %v864 = vpop.f32.mrb[0].mxu0
      %v865 = vadd.f32 0.0, %v864
      %v866 = vpop.f32.mrb[0].mxu0
      %v867 = vpop.f32.mrb[0].mxu0
      %v868 = vadd.f32 0.0, %v867
      %v869 = vpop.f32.mrb[0].mxu0
      %870 = vmatprep.mubr.bf16.mxu0 0
      %871 = vmatmul.mubr.bf16.gmra.mrb[0].mxu0 %v742
      %v872 = vpop.f32.mrb[0].mxu0
      %v873 = vadd.f32 0.0, %v872
      %v874 = vpop.f32.mrb[0].mxu0
      %v875 = vpop.f32.mrb[0].mxu0
      %v876 = vadd.f32 0.0, %v875
      %v877 = vpop.f32.mrb[0].mxu0
      %878 = vmatprep.mubr.bf16.mxu0 0
      %879 = vmatmul.mubr.bf16.gmra.mrb[0].mxu0 %v745
      %v880 = vpop.f32.mrb[0].mxu0
      %v881 = vadd.f32 0.0, %v880
      %v882 = vpop.f32.mrb[0].mxu0
      %v883 = vpop.f32.mrb[0].mxu0
      %v884 = vadd.f32 0.0, %v883
      %v885 = vpop.f32.mrb[0].mxu0
      %886 = vmatprep.mubr.bf16.mxu0 0
      %887 = vmatmul.mubr.bf16.gmra.mrb[0].mxu0 %v748
      %v888 = vpop.f32.mrb[0].mxu0
      %v889 = vadd.f32 0.0, %v888
      %v890 = vpop.f32.mrb[0].mxu0
      %v891 = vpop.f32.mrb[0].mxu0
      %v892 = vadd.f32 0.0, %v891
      %v893 = vpop.f32.mrb[0].mxu0
      %894 = vmatprep.mubr.bf16.mxu0 0
      %895 = vmatmul.mubr.bf16.gmra.mrb[0].mxu0 %v751
      %v896 = vpop.f32.mrb[0].mxu0
      %v897 = vadd.f32 0.0, %v896
      %v898 = vpop.f32.mrb[0].mxu0
      %v899 = vpop.f32.mrb[0].mxu0
      %v900 = vadd.f32 0.0, %v899
      %v901 = vpop.f32.mrb[0].mxu0
      %902 = vmatprep.mubr.bf16.mxu0 0
      %903 = vmatmul.mubr.bf16.gmra.mrb[0].mxu0 %v754
      %v904 = vpop.f32.mrb[0].mxu0
      %v905 = vadd.f32 0.0, %v904
      %v906 = vpop.f32.mrb[0].mxu0
      %v907 = vpop.f32.mrb[0].mxu0
      %v908 = vadd.f32 0.0, %v907
      %v909 = vpop.f32.mrb[0].mxu0
      %910 = vmatprep.mubr.bf16.mxu0 0
      %911 = vmatmul.mubr.bf16.gmra.mrb[0].mxu0 %v757
      %v912 = vpop.f32.mrb[0].mxu0
      %v913 = vadd.f32 0.0, %v912
      %v914 = vpop.f32.mrb[0].mxu0
      %v915 = vpop.f32.mrb[0].mxu0
      %v916 = vadd.f32 0.0, %v915
      %v917 = vpop.f32.mrb[0].mxu0
      %918 = vmatprep.mubr.bf16.mxu0 0
      %919 = vmatmul.mubr.bf16.gmra.mrb[0].mxu0 %v760
      %v920 = vpop.f32.mrb[0].mxu0
      %v921 = vadd.f32 0.0, %v920
      %v922 = vpop.f32.mrb[0].mxu0
      %v923 = vpop.f32.mrb[0].mxu0
      %v924 = vadd.f32 0.0, %v923
      %v925 = vpop.f32.mrb[0].mxu0
      %926 = vdwg.mxu0
      %v959 = vunpack.c.l.b16 %v227
      %v960 = vunpack.c.l.b16 %v228
      %v961 = vunpack.c.l.b16 %v229
      %v962 = vunpack.c.l.b16 %v230
      %v963 = vunpack.c.l.b16 %v231
      %v964 = vunpack.c.l.b16 %v232
      %v965 = vunpack.c.l.b16 %v233
      %v966 = vunpack.c.l.b16 %v234
      %v967 = vunpack.c.l.b16 %v235
      %v968 = vunpack.c.l.b16 %v236
      %v969 = vunpack.c.l.b16 %v237
      %v970 = vunpack.c.l.b16 %v238
      %v971 = vunpack.c.l.b16 %v239
      %v972 = vunpack.c.l.b16 %v240
      %v973 = vunpack.c.l.b16 %v241
      %v974 = vunpack.c.l.b16 %v242
      %v975 = vunpack.c.l.b16 %v243
      %v976 = vunpack.c.l.b16 %v244
      %v977 = vunpack.c.l.b16 %v245
      %v978 = vunpack.c.l.b16 %v246
      %v979 = vunpack.c.l.b16 %v247
      %v980 = vunpack.c.l.b16 %v248
      %v981 = vunpack.c.l.b16 %v249
      %v982 = vunpack.c.l.b16 %v250
      %v983 = vunpack.c.l.b16 %v251
      %v984 = vunpack.c.l.b16 %v252
      %v985 = vunpack.c.l.b16 %v253
      %v986 = vunpack.c.l.b16 %v254
      %v987 = vunpack.c.l.b16 %v255
      %v988 = vunpack.c.l.b16 %v256
      %v989 = vunpack.c.l.b16 %v257
      %v990 = vunpack.c.l.b16 %v258
      %v991 = vpack.c.b16 %v960, %v959
      %v992 = vpack.c.b16 %v962, %v961
      %v993 = vpack.c.b16 %v964, %v963
      %v994 = vpack.c.b16 %v966, %v965
      %v995 = vpack.c.b16 %v968, %v967
      %v996 = vpack.c.b16 %v970, %v969
      %v997 = vpack.c.b16 %v972, %v971
      %v998 = vpack.c.b16 %v974, %v973
      %v999 = vpack.c.b16 %v976, %v975
      %v1000 = vpack.c.b16 %v978, %v977
      %v1001 = vpack.c.b16 %v980, %v979
      %v1002 = vpack.c.b16 %v982, %v981
      %v1003 = vpack.c.b16 %v984, %v983
      %v1004 = vpack.c.b16 %v986, %v985
      %v1005 = vpack.c.b16 %v988, %v987
      %v1006 = vpack.c.b16 %v990, %v989
      %v1008 = vsel %vm713, %v991, 0
      %v1011 = vsel %vm713, %v992, 0
      %v1014 = vsel %vm713, %v993, 0
      %v1017 = vsel %vm713, %v994, 0
      %v1020 = vsel %vm713, %v995, 0
      %v1023 = vsel %vm713, %v996, 0
      %v1026 = vsel %vm713, %v997, 0
      %v1029 = vsel %vm713, %v998, 0
      %v1032 = vsel %vm713, %v999, 0
      %v1035 = vsel %vm713, %v1000, 0
      %v1038 = vsel %vm713, %v1001, 0
      %v1041 = vsel %vm713, %v1002, 0
      %v1044 = vsel %vm713, %v1003, 0
      %v1047 = vsel %vm713, %v1004, 0
      %v1050 = vsel %vm713, %v1005, 0
      %v1053 = vsel %vm713, %v1006, 0
      %v1056 = vsel %vm762, %v259, 0
      %1058 = vmatprep.subr.bf16.mxu0 0
      %1059 = vmatpush1.bf16.msra.mxu0 %v1056
      %1060 = vmatprep.subr.bf16.mxu0 0
      %1061 = vmatpush1.bf16.msra.mxu0 0
      %1062 = vmatprep.subr.bf16.mxu0 0
      %1063 = vmatpush1.bf16.msra.mxu0 0
      %1064 = vmatprep.subr.bf16.mxu0 0
      %1065 = vmatpush1.bf16.msra.mxu0 0
      %1066 = vmatprep.subr.bf16.mxu0 0
      %1067 = vmatpush1.bf16.msra.mxu0 0
      %1068 = vmatprep.subr.bf16.mxu0 0
      %1069 = vmatpush1.bf16.msra.mxu0 0
      %1070 = vmatprep.subr.bf16.mxu0 0
      %1071 = vmatpush1.bf16.msra.mxu0 0
      %1072 = vmatprep.subr.bf16.mxu0 0
      %1073 = vmatpush1.bf16.msra.mxu0 0
      %1074 = vmatprep.subr.bf16.mxu0 0
      %1075 = vmatpush1.bf16.msra.mxu0 0
      %1076 = vmatprep.subr.bf16.mxu0 0
      %1077 = vmatpush1.bf16.msra.mxu0 0
      %1078 = vmatprep.subr.bf16.mxu0 0
      %1079 = vmatpush1.bf16.msra.mxu0 0
      %1080 = vmatprep.subr.bf16.mxu0 0
      %1081 = vmatpush1.bf16.msra.mxu0 0
      %1082 = vmatprep.subr.bf16.mxu0 0
      %1083 = vmatpush1.bf16.msra.mxu0 0
      %1084 = vmatprep.subr.bf16.mxu0 0
      %1085 = vmatpush1.bf16.msra.mxu0 0
      %1086 = vmatprep.subr.bf16.mxu0 0
      %1087 = vmatpush1.bf16.msra.mxu0 0
      %1088 = vmatprep.subr.bf16.mxu0 0
      %1089 = vmatpush1.bf16.msra.mxu0 0
      %1090 = vmatprep.mubr.bf16.mxu0 0
      %1091 = vmatmul.mubr.bf16.gmra.mrb[0].mxu0 %v1008
      %v1092 = vpop.f32.mrb[0].mxu0
      %v1093 = vadd.f32 %v801, %v1092
      %v1094 = vpop.f32.mrb[0].mxu0
      %v1095 = vpop.f32.mrb[0].mxu0
      %v1096 = vadd.f32 %v804, %v1095
      %v1097 = vpop.f32.mrb[0].mxu0
      %1098 = vmatprep.mubr.bf16.mxu0 0
      %1099 = vmatmul.mubr.bf16.gmra.mrb[0].mxu0 %v1011
      %v1100 = vpop.f32.mrb[0].mxu0
      %v1101 = vadd.f32 %v809, %v1100
      %v1102 = vpop.f32.mrb[0].mxu0
      %v1103 = vpop.f32.mrb[0].mxu0
      %v1104 = vadd.f32 %v812, %v1103
      %v1105 = vpop.f32.mrb[0].mxu0
      %1106 = vmatprep.mubr.bf16.mxu0 0
      %1107 = vmatmul.mubr.bf16.gmra.mrb[0].mxu0 %v1014
      %v1108 = vpop.f32.mrb[0].mxu0
      %v1109 = vadd.f32 %v817, %v1108
      %v1110 = vpop.f32.mrb[0].mxu0
      %v1111 = vpop.f32.mrb[0].mxu0
      %v1112 = vadd.f32 %v820, %v1111
      %v1113 = vpop.f32.mrb[0].mxu0
      %1114 = vmatprep.mubr.bf16.mxu0 0
      %1115 = vmatmul.mubr.bf16.gmra.mrb[0].mxu0 %v1017
      %v1116 = vpop.f32.mrb[0].mxu0
      %v1117 = vadd.f32 %v825, %v1116
      %v1118 = vpop.f32.mrb[0].mxu0
      %v1119 = vpop.f32.mrb[0].mxu0
      %v1120 = vadd.f32 %v828, %v1119
      %v1121 = vpop.f32.mrb[0].mxu0
      %1122 = vmatprep.mubr.bf16.mxu0 0
      %1123 = vmatmul.mubr.bf16.gmra.mrb[0].mxu0 %v1020
      %v1124 = vpop.f32.mrb[0].mxu0
      %v1125 = vadd.f32 %v833, %v1124
      %v1126 = vpop.f32.mrb[0].mxu0
      %v1127 = vpop.f32.mrb[0].mxu0
      %v1128 = vadd.f32 %v836, %v1127
      %v1129 = vpop.f32.mrb[0].mxu0
      %1130 = vmatprep.mubr.bf16.mxu0 0
      %1131 = vmatmul.mubr.bf16.gmra.mrb[0].mxu0 %v1023
      %v1132 = vpop.f32.mrb[0].mxu0
      %v1133 = vadd.f32 %v841, %v1132
      %v1134 = vpop.f32.mrb[0].mxu0
      %v1135 = vpop.f32.mrb[0].mxu0
      %v1136 = vadd.f32 %v844, %v1135
      %v1137 = vpop.f32.mrb[0].mxu0
      %1138 = vmatprep.mubr.bf16.mxu0 0
      %1139 = vmatmul.mubr.bf16.gmra.mrb[0].mxu0 %v1026
      %v1140 = vpop.f32.mrb[0].mxu0
      %v1141 = vadd.f32 %v849, %v1140
      %v1142 = vpop.f32.mrb[0].mxu0
      %v1143 = vpop.f32.mrb[0].mxu0
      %v1144 = vadd.f32 %v852, %v1143
      %v1145 = vpop.f32.mrb[0].mxu0
      %1146 = vmatprep.mubr.bf16.mxu0 0
      %1147 = vmatmul.mubr.bf16.gmra.mrb[0].mxu0 %v1029
      %v1148 = vpop.f32.mrb[0].mxu0
      %v1149 = vadd.f32 %v857, %v1148
      %v1150 = vpop.f32.mrb[0].mxu0
      %v1151 = vpop.f32.mrb[0].mxu0
      %v1152 = vadd.f32 %v860, %v1151
      %v1153 = vpop.f32.mrb[0].mxu0
      %1154 = vmatprep.mubr.bf16.mxu0 0
      %1155 = vmatmul.mubr.bf16.gmra.mrb[0].mxu0 %v1032
      %v1156 = vpop.f32.mrb[0].mxu0
      %v1157 = vadd.f32 %v865, %v1156
      %v1158 = vpop.f32.mrb[0].mxu0
      %v1159 = vpop.f32.mrb[0].mxu0
      %v1160 = vadd.f32 %v868, %v1159
      %v1161 = vpop.f32.mrb[0].mxu0
      %1162 = vmatprep.mubr.bf16.mxu0 0
      %1163 = vmatmul.mubr.bf16.gmra.mrb[0].mxu0 %v1035
      %v1164 = vpop.f32.mrb[0].mxu0
      %v1165 = vadd.f32 %v873, %v1164
      %v1166 = vpop.f32.mrb[0].mxu0
      %v1167 = vpop.f32.mrb[0].mxu0
      %v1168 = vadd.f32 %v876, %v1167
      %v1169 = vpop.f32.mrb[0].mxu0
      %1170 = vmatprep.mubr.bf16.mxu0 0
      %1171 = vmatmul.mubr.bf16.gmra.mrb[0].mxu0 %v1038
      %v1172 = vpop.f32.mrb[0].mxu0
      %v1173 = vadd.f32 %v881, %v1172
      %v1174 = vpop.f32.mrb[0].mxu0
      %v1175 = vpop.f32.mrb[0].mxu0
      %v1176 = vadd.f32 %v884, %v1175
      %v1177 = vpop.f32.mrb[0].mxu0
      %1178 = vmatprep.mubr.bf16.mxu0 0
      %1179 = vmatmul.mubr.bf16.gmra.mrb[0].mxu0 %v1041
      %v1180 = vpop.f32.mrb[0].mxu0
      %v1181 = vadd.f32 %v889, %v1180
      %v1182 = vpop.f32.mrb[0].mxu0
      %v1183 = vpop.f32.mrb[0].mxu0
      %v1184 = vadd.f32 %v892, %v1183
      %v1185 = vpop.f32.mrb[0].mxu0
      %1186 = vmatprep.mubr.bf16.mxu0 0
      %1187 = vmatmul.mubr.bf16.gmra.mrb[0].mxu0 %v1044
      %v1188 = vpop.f32.mrb[0].mxu0
      %v1189 = vadd.f32 %v897, %v1188
      %v1190 = vpop.f32.mrb[0].mxu0
      %v1191 = vpop.f32.mrb[0].mxu0
      %v1192 = vadd.f32 %v900, %v1191
      %v1193 = vpop.f32.mrb[0].mxu0
      %1194 = vmatprep.mubr.bf16.mxu0 0
      %1195 = vmatmul.mubr.bf16.gmra.mrb[0].mxu0 %v1047
      %v1196 = vpop.f32.mrb[0].mxu0
      %v1197 = vadd.f32 %v905, %v1196
      %v1198 = vpop.f32.mrb[0].mxu0
      %v1199 = vpop.f32.mrb[0].mxu0
      %v1200 = vadd.f32 %v908, %v1199
      %v1201 = vpop.f32.mrb[0].mxu0
      %1202 = vmatprep.mubr.bf16.mxu0 0
      %1203 = vmatmul.mubr.bf16.gmra.mrb[0].mxu0 %v1050
      %v1204 = vpop.f32.mrb[0].mxu0
      %v1205 = vadd.f32 %v913, %v1204
      %v1206 = vpop.f32.mrb[0].mxu0
      %v1207 = vpop.f32.mrb[0].mxu0
      %v1208 = vadd.f32 %v916, %v1207
      %v1209 = vpop.f32.mrb[0].mxu0
      %1210 = vmatprep.mubr.bf16.mxu0 0
      %1211 = vmatmul.mubr.bf16.gmra.mrb[0].mxu0 %v1053
      %v1212 = vpop.f32.mrb[0].mxu0
      %v1213 = vadd.f32 %v921, %v1212
      %v1214 = vpop.f32.mrb[0].mxu0
      %v1215 = vpop.f32.mrb[0].mxu0
      %v1216 = vadd.f32 %v924, %v1215
      %v1217 = vpop.f32.mrb[0].mxu0
      %1218 = vdwg.mxu0
      %v1219 = vld [vmem:[%s219] sm:$0xe]
      %v1220 = vld [vmem:[%s219 + $0xc] sm:$0xe]
      %v1221 = vld [vmem:[%s219 + $0x18] sm:$0xe]
      %v1222 = vld [vmem:[%s219 + $0x24] sm:$0xe]
      %v1223 = vld [vmem:[%s219 + $0x30] sm:$0xe]
      %v1224 = vld [vmem:[%s219 + $0x3c] sm:$0xe]
      %v1225 = vld [vmem:[%s219 + $0x48] sm:$0xe]
      %v1226 = vld [vmem:[%s219 + $0x54] sm:$0xe]
      %v1227 = vld [vmem:[%s219 + $0x60] sm:$0xe]
      %v1228 = vld [vmem:[%s219 + $0x6c] sm:$0xe]
      %v1229 = vld [vmem:[%s219 + $0x78] sm:$0xe]
      %v1230 = vld [vmem:[%s219 + $0x84] sm:$0xe]
      %v1231 = vld [vmem:[%s219 + $0x90] sm:$0xe]
      %v1232 = vld [vmem:[%s219 + $0x9c] sm:$0xe]
      %v1233 = vld [vmem:[%s219 + $0xa8] sm:$0xe]
      %v1234 = vld [vmem:[%s219 + $0xb4] sm:$0xe]
      %vm1267 = vcmask 1042432
      %vm1268 = vcmask 1046532
      %vm1269 = vmor %vm1267, %vm1268
      %v1270 = vrot.slane %v1219, 5
      %v1271 = vrot.slane %v1270, 4
      %v1272 = vrot.slane %v228, 5
      %v1273 = vsel %vm1269, %v1271, %v1272
      %v1274 = vrot.slane %v1272, 4
      %v1275 = vrot.slane %v260, 5
      %v1276 = vsel %vm1269, %v1274, %v1275
      %v1277 = vrot.slane %v1220, 5
      %v1278 = vrot.slane %v1277, 4
      %v1279 = vrot.slane %v230, 5
      %v1280 = vsel %vm1269, %v1278, %v1279
      %v1281 = vrot.slane %v1279, 4
      %v1282 = vrot.slane %v261, 5
      %v1283 = vsel %vm1269, %v1281, %v1282
      %v1284 = vrot.slane %v1221, 5
      %v1285 = vrot.slane %v1284, 4
      %v1286 = vrot.slane %v232, 5
      %v1287 = vsel %vm1269, %v1285, %v1286
      %v1288 = vrot.slane %v1286, 4
      %v1289 = vrot.slane %v262, 5
      %v1290 = vsel %vm1269, %v1288, %v1289
      %v1291 = vrot.slane %v1222, 5
      %v1292 = vrot.slane %v1291, 4
      %v1293 = vrot.slane %v234, 5
      %v1294 = vsel %vm1269, %v1292, %v1293
      %v1295 = vrot.slane %v1293, 4
      %v1296 = vrot.slane %v263, 5
      %v1297 = vsel %vm1269, %v1295, %v1296
      %v1298 = vrot.slane %v1223, 5
      %v1299 = vrot.slane %v1298, 4
      %v1300 = vrot.slane %v236, 5
      %v1301 = vsel %vm1269, %v1299, %v1300
      %v1302 = vrot.slane %v1300, 4
      %v1303 = vrot.slane %v264, 5
      %v1304 = vsel %vm1269, %v1302, %v1303
      %v1305 = vrot.slane %v1224, 5
      %v1306 = vrot.slane %v1305, 4
      %v1307 = vrot.slane %v238, 5
      %v1308 = vsel %vm1269, %v1306, %v1307
      %v1309 = vrot.slane %v1307, 4
      %v1310 = vrot.slane %v265, 5
      %v1311 = vsel %vm1269, %v1309, %v1310
      %v1312 = vrot.slane %v1225, 5
      %v1313 = vrot.slane %v1312, 4
      %v1314 = vrot.slane %v240, 5
      %v1315 = vsel %vm1269, %v1313, %v1314
      %v1316 = vrot.slane %v1314, 4
      %v1317 = vrot.slane %v266, 5
      %v1318 = vsel %vm1269, %v1316, %v1317
      %v1319 = vrot.slane %v1226, 5
      %v1320 = vrot.slane %v1319, 4
      %v1321 = vrot.slane %v242, 5
      %v1322 = vsel %vm1269, %v1320, %v1321
      %v1323 = vrot.slane %v1321, 4
      %v1324 = vrot.slane %v267, 5
      %v1325 = vsel %vm1269, %v1323, %v1324
      %v1326 = vrot.slane %v1227, 5
      %v1327 = vrot.slane %v1326, 4
      %v1328 = vrot.slane %v244, 5
      %v1329 = vsel %vm1269, %v1327, %v1328
      %v1330 = vrot.slane %v1328, 4
      %v1331 = vrot.slane %v268, 5
      %v1332 = vsel %vm1269, %v1330, %v1331
      %v1333 = vrot.slane %v1228, 5
      %v1334 = vrot.slane %v1333, 4
      %v1335 = vrot.slane %v246, 5
      %v1336 = vsel %vm1269, %v1334, %v1335
      %v1337 = vrot.slane %v1335, 4
      %v1338 = vrot.slane %v269, 5
      %v1339 = vsel %vm1269, %v1337, %v1338
      %v1340 = vrot.slane %v1229, 5
      %v1341 = vrot.slane %v1340, 4
      %v1342 = vrot.slane %v248, 5
      %v1343 = vsel %vm1269, %v1341, %v1342
      %v1344 = vrot.slane %v1342, 4
      %v1345 = vrot.slane %v270, 5
      %v1346 = vsel %vm1269, %v1344, %v1345
      %v1347 = vrot.slane %v1230, 5
      %v1348 = vrot.slane %v1347, 4
      %v1349 = vrot.slane %v250, 5
      %v1350 = vsel %vm1269, %v1348, %v1349
      %v1351 = vrot.slane %v1349, 4
      %v1352 = vrot.slane %v271, 5
      %v1353 = vsel %vm1269, %v1351, %v1352
      %v1354 = vrot.slane %v1231, 5
      %v1355 = vrot.slane %v1354, 4
      %v1356 = vrot.slane %v252, 5
      %v1357 = vsel %vm1269, %v1355, %v1356
      %v1358 = vrot.slane %v1356, 4
      %v1359 = vrot.slane %v272, 5
      %v1360 = vsel %vm1269, %v1358, %v1359
      %v1361 = vrot.slane %v1232, 5
      %v1362 = vrot.slane %v1361, 4
      %v1363 = vrot.slane %v254, 5
      %v1364 = vsel %vm1269, %v1362, %v1363
      %v1365 = vrot.slane %v1363, 4
      %v1366 = vrot.slane %v273, 5
      %v1367 = vsel %vm1269, %v1365, %v1366
      %v1368 = vrot.slane %v1233, 5
      %v1369 = vrot.slane %v1368, 4
      %v1370 = vrot.slane %v256, 5
      %v1371 = vsel %vm1269, %v1369, %v1370
      %v1372 = vrot.slane %v1370, 4
      %v1373 = vrot.slane %v274, 5
      %v1374 = vsel %vm1269, %v1372, %v1373
      %v1375 = vrot.slane %v1234, 5
      %v1376 = vrot.slane %v1375, 4
      %v1377 = vrot.slane %v258, 5
      %v1378 = vsel %vm1269, %v1376, %v1377
      %v1379 = vrot.slane %v1377, 4
      %v1380 = vrot.slane %v275, 5
      %v1381 = vsel %vm1269, %v1379, %v1380
      %s1382 = scalar_lea.vmem %s1, 4
      %v1383 = vld [vmem:[%s1382] sm:$0x3]
      %v1384 = vunpack.c.l.b16 %v1273
      %v1385 = vunpack.c.l.b16 %v1276
      %v1386 = vunpack.c.l.b16 %v1280
      %v1387 = vunpack.c.l.b16 %v1283
      %v1388 = vunpack.c.l.b16 %v1287
      %v1389 = vunpack.c.l.b16 %v1290
      %v1390 = vunpack.c.l.b16 %v1294
      %v1391 = vunpack.c.l.b16 %v1297
      %v1392 = vunpack.c.l.b16 %v1301
      %v1393 = vunpack.c.l.b16 %v1304
      %v1394 = vunpack.c.l.b16 %v1308
      %v1395 = vunpack.c.l.b16 %v1311
      %v1396 = vunpack.c.l.b16 %v1315
      %v1397 = vunpack.c.l.b16 %v1318
      %v1398 = vunpack.c.l.b16 %v1322
      %v1399 = vunpack.c.l.b16 %v1325
      %v1400 = vunpack.c.l.b16 %v1329
      %v1401 = vunpack.c.l.b16 %v1332
      %v1402 = vunpack.c.l.b16 %v1336
      %v1403 = vunpack.c.l.b16 %v1339
      %v1404 = vunpack.c.l.b16 %v1343
      %v1405 = vunpack.c.l.b16 %v1346
      %v1406 = vunpack.c.l.b16 %v1350
      %v1407 = vunpack.c.l.b16 %v1353
      %v1408 = vunpack.c.l.b16 %v1357
      %v1409 = vunpack.c.l.b16 %v1360
      %v1410 = vunpack.c.l.b16 %v1364
      %v1411 = vunpack.c.l.b16 %v1367
      %v1412 = vunpack.c.l.b16 %v1371
      %v1413 = vunpack.c.l.b16 %v1374
      %v1414 = vunpack.c.l.b16 %v1378
      %v1415 = vunpack.c.l.b16 %v1381
      %v1416 = vpack.c.b16 %v1385, %v1384
      %v1417 = vpack.c.b16 %v1387, %v1386
      %v1418 = vpack.c.b16 %v1389, %v1388
      %v1419 = vpack.c.b16 %v1391, %v1390
      %v1420 = vpack.c.b16 %v1393, %v1392
      %v1421 = vpack.c.b16 %v1395, %v1394
      %v1422 = vpack.c.b16 %v1397, %v1396
      %v1423 = vpack.c.b16 %v1399, %v1398
      %v1424 = vpack.c.b16 %v1401, %v1400
      %v1425 = vpack.c.b16 %v1403, %v1402
      %v1426 = vpack.c.b16 %v1405, %v1404
      %v1427 = vpack.c.b16 %v1407, %v1406
      %v1428 = vpack.c.b16 %v1409, %v1408
      %v1429 = vpack.c.b16 %v1411, %v1410
      %v1430 = vpack.c.b16 %v1413, %v1412
      %v1431 = vpack.c.b16 %v1415, %v1414
      %v1433 = vsel %vm713, %v1416, 0
      %v1436 = vsel %vm713, %v1417, 0
      %v1439 = vsel %vm713, %v1418, 0
      %v1442 = vsel %vm713, %v1419, 0
      %v1445 = vsel %vm713, %v1420, 0
      %v1448 = vsel %vm713, %v1421, 0
      %v1451 = vsel %vm713, %v1422, 0
      %v1454 = vsel %vm713, %v1423, 0
      %v1457 = vsel %vm713, %v1424, 0
      %v1460 = vsel %vm713, %v1425, 0
      %v1463 = vsel %vm713, %v1426, 0
      %v1466 = vsel %vm713, %v1427, 0
      %v1469 = vsel %vm713, %v1428, 0
      %v1472 = vsel %vm713, %v1429, 0
      %v1475 = vsel %vm713, %v1430, 0
      %v1478 = vsel %vm713, %v1431, 0
      %v1481 = vsel %vm762, %v1383, 0
      %1483 = vmatprep.subr.bf16.mxu0 0
      %1484 = vmatpush1.bf16.msra.mxu0 %v1481
      %1485 = vmatprep.subr.bf16.mxu0 0
      %1486 = vmatpush1.bf16.msra.mxu0 0
      %1487 = vmatprep.subr.bf16.mxu0 0
      %1488 = vmatpush1.bf16.msra.mxu0 0
      %1489 = vmatprep.subr.bf16.mxu0 0
      %1490 = vmatpush1.bf16.msra.mxu0 0
      %1491 = vmatprep.subr.bf16.mxu0 0
      %1492 = vmatpush1.bf16.msra.mxu0 0
      %1493 = vmatprep.subr.bf16.mxu0 0
      %1494 = vmatpush1.bf16.msra.mxu0 0
      %1495 = vmatprep.subr.bf16.mxu0 0
      %1496 = vmatpush1.bf16.msra.mxu0 0
      %1497 = vmatprep.subr.bf16.mxu0 0
      %1498 = vmatpush1.bf16.msra.mxu0 0
      %1499 = vmatprep.subr.bf16.mxu0 0
      %1500 = vmatpush1.bf16.msra.mxu0 0
      %1501 = vmatprep.subr.bf16.mxu0 0
      %1502 = vmatpush1.bf16.msra.mxu0 0
      %1503 = vmatprep.subr.bf16.mxu0 0
      %1504 = vmatpush1.bf16.msra.mxu0 0
      %1505 = vmatprep.subr.bf16.mxu0 0
      %1506 = vmatpush1.bf16.msra.mxu0 0
      %1507 = vmatprep.subr.bf16.mxu0 0
      %1508 = vmatpush1.bf16.msra.mxu0 0
      %1509 = vmatprep.subr.bf16.mxu0 0
      %1510 = vmatpush1.bf16.msra.mxu0 0
      %1511 = vmatprep.subr.bf16.mxu0 0
      %1512 = vmatpush1.bf16.msra.mxu0 0
      %1513 = vmatprep.subr.bf16.mxu0 0
      %1514 = vmatpush1.bf16.msra.mxu0 0
      %1515 = vmatprep.mubr.bf16.mxu0 0
      %1516 = vmatmul.mubr.bf16.gmra.mrb[0].mxu0 %v1433
      %v1517 = vpop.f32.mrb[0].mxu0
      %v1518 = vadd.f32 0.0, %v1517
      %v1519 = vpop.f32.mrb[0].mxu0
      %v1520 = vpop.f32.mrb[0].mxu0
      %v1521 = vadd.f32 0.0, %v1520
      %v1522 = vpop.f32.mrb[0].mxu0
      %1523 = vmatprep.mubr.bf16.mxu0 0
      %1524 = vmatmul.mubr.bf16.gmra.mrb[0].mxu0 %v1436
      %v1525 = vpop.f32.mrb[0].mxu0
      %v1526 = vadd.f32 0.0, %v1525
      %v1527 = vpop.f32.mrb[0].mxu0
      %v1528 = vpop.f32.mrb[0].mxu0
      %v1529 = vadd.f32 0.0, %v1528
      %v1530 = vpop.f32.mrb[0].mxu0
      %1531 = vmatprep.mubr.bf16.mxu0 0
      %1532 = vmatmul.mubr.bf16.gmra.mrb[0].mxu0 %v1439
      %v1533 = vpop.f32.mrb[0].mxu0
      %v1534 = vadd.f32 0.0, %v1533
      %v1535 = vpop.f32.mrb[0].mxu0
      %v1536 = vpop.f32.mrb[0].mxu0
      %v1537 = vadd.f32 0.0, %v1536
      %v1538 = vpop.f32.mrb[0].mxu0
      %1539 = vmatprep.mubr.bf16.mxu0 0
      %1540 = vmatmul.mubr.bf16.gmra.mrb[0].mxu0 %v1442
      %v1541 = vpop.f32.mrb[0].mxu0
      %v1542 = vadd.f32 0.0, %v1541
      %v1543 = vpop.f32.mrb[0].mxu0
      %v1544 = vpop.f32.mrb[0].mxu0
      %v1545 = vadd.f32 0.0, %v1544
      %v1546 = vpop.f32.mrb[0].mxu0
      %1547 = vmatprep.mubr.bf16.mxu0 0
      %1548 = vmatmul.mubr.bf16.gmra.mrb[0].mxu0 %v1445
      %v1549 = vpop.f32.mrb[0].mxu0
      %v1550 = vadd.f32 0.0, %v1549
      %v1551 = vpop.f32.mrb[0].mxu0
      %v1552 = vpop.f32.mrb[0].mxu0
      %v1553 = vadd.f32 0.0, %v1552
      %v1554 = vpop.f32.mrb[0].mxu0
      %1555 = vmatprep.mubr.bf16.mxu0 0
      %1556 = vmatmul.mubr.bf16.gmra.mrb[0].mxu0 %v1448
      %v1557 = vpop.f32.mrb[0].mxu0
      %v1558 = vadd.f32 0.0, %v1557
      %v1559 = vpop.f32.mrb[0].mxu0
      %v1560 = vpop.f32.mrb[0].mxu0
      %v1561 = vadd.f32 0.0, %v1560
      %v1562 = vpop.f32.mrb[0].mxu0
      %1563 = vmatprep.mubr.bf16.mxu0 0
      %1564 = vmatmul.mubr.bf16.gmra.mrb[0].mxu0 %v1451
      %v1565 = vpop.f32.mrb[0].mxu0
      %v1566 = vadd.f32 0.0, %v1565
      %v1567 = vpop.f32.mrb[0].mxu0
      %v1568 = vpop.f32.mrb[0].mxu0
      %v1569 = vadd.f32 0.0, %v1568
      %v1570 = vpop.f32.mrb[0].mxu0
      %1571 = vmatprep.mubr.bf16.mxu0 0
      %1572 = vmatmul.mubr.bf16.gmra.mrb[0].mxu0 %v1454
      %v1573 = vpop.f32.mrb[0].mxu0
      %v1574 = vadd.f32 0.0, %v1573
      %v1575 = vpop.f32.mrb[0].mxu0
      %v1576 = vpop.f32.mrb[0].mxu0
      %v1577 = vadd.f32 0.0, %v1576
      %v1578 = vpop.f32.mrb[0].mxu0
      %1579 = vmatprep.mubr.bf16.mxu0 0
      %1580 = vmatmul.mubr.bf16.gmra.mrb[0].mxu0 %v1457
      %v1581 = vpop.f32.mrb[0].mxu0
      %v1582 = vadd.f32 0.0, %v1581
      %v1583 = vpop.f32.mrb[0].mxu0
      %v1584 = vpop.f32.mrb[0].mxu0
      %v1585 = vadd.f32 0.0, %v1584
      %v1586 = vpop.f32.mrb[0].mxu0
      %1587 = vmatprep.mubr.bf16.mxu0 0
      %1588 = vmatmul.mubr.bf16.gmra.mrb[0].mxu0 %v1460
      %v1589 = vpop.f32.mrb[0].mxu0
      %v1590 = vadd.f32 0.0, %v1589
      %v1591 = vpop.f32.mrb[0].mxu0
      %v1592 = vpop.f32.mrb[0].mxu0
      %v1593 = vadd.f32 0.0, %v1592
      %v1594 = vpop.f32.mrb[0].mxu0
      %1595 = vmatprep.mubr.bf16.mxu0 0
      %1596 = vmatmul.mubr.bf16.gmra.mrb[0].mxu0 %v1463
      %v1597 = vpop.f32.mrb[0].mxu0
      %v1598 = vadd.f32 0.0, %v1597
      %v1599 = vpop.f32.mrb[0].mxu0
      %v1600 = vpop.f32.mrb[0].mxu0
      %v1601 = vadd.f32 0.0, %v1600
      %v1602 = vpop.f32.mrb[0].mxu0
      %1603 = vmatprep.mubr.bf16.mxu0 0
      %1604 = vmatmul.mubr.bf16.gmra.mrb[0].mxu0 %v1466
      %v1605 = vpop.f32.mrb[0].mxu0
      %v1606 = vadd.f32 0.0, %v1605
      %v1607 = vpop.f32.mrb[0].mxu0
      %v1608 = vpop.f32.mrb[0].mxu0
      %v1609 = vadd.f32 0.0, %v1608
      %v1610 = vpop.f32.mrb[0].mxu0
      %1611 = vmatprep.mubr.bf16.mxu0 0
      %1612 = vmatmul.mubr.bf16.gmra.mrb[0].mxu0 %v1469
      %v1613 = vpop.f32.mrb[0].mxu0
      %v1614 = vadd.f32 0.0, %v1613
      %v1615 = vpop.f32.mrb[0].mxu0
      %v1616 = vpop.f32.mrb[0].mxu0
      %v1617 = vadd.f32 0.0, %v1616
      %v1618 = vpop.f32.mrb[0].mxu0
      %1619 = vmatprep.mubr.bf16.mxu0 0
      %1620 = vmatmul.mubr.bf16.gmra.mrb[0].mxu0 %v1472
      %v1621 = vpop.f32.mrb[0].mxu0
      %v1622 = vadd.f32 0.0, %v1621
      %v1623 = vpop.f32.mrb[0].mxu0
      %v1624 = vpop.f32.mrb[0].mxu0
      %v1625 = vadd.f32 0.0, %v1624
      %v1626 = vpop.f32.mrb[0].mxu0
      %1627 = vmatprep.mubr.bf16.mxu0 0
      %1628 = vmatmul.mubr.bf16.gmra.mrb[0].mxu0 %v1475
      %v1629 = vpop.f32.mrb[0].mxu0
      %v1630 = vadd.f32 0.0, %v1629
      %v1631 = vpop.f32.mrb[0].mxu0
      %v1632 = vpop.f32.mrb[0].mxu0
      %v1633 = vadd.f32 0.0, %v1632
      %v1634 = vpop.f32.mrb[0].mxu0
      %1635 = vmatprep.mubr.bf16.mxu0 0
      %1636 = vmatmul.mubr.bf16.gmra.mrb[0].mxu0 %v1478
      %v1637 = vpop.f32.mrb[0].mxu0
      %v1638 = vadd.f32 0.0, %v1637
      %v1639 = vpop.f32.mrb[0].mxu0
      %v1640 = vpop.f32.mrb[0].mxu0
      %v1641 = vadd.f32 0.0, %v1640
      %v1642 = vpop.f32.mrb[0].mxu0
      %1643 = vdwg.mxu0
      %v1644 = vadd.f32 %v1093, %v1518
      %v1645 = vadd.f32 %v1096, %v1521
      %v1646 = vadd.f32 %v1101, %v1526
      %v1647 = vadd.f32 %v1104, %v1529
      %v1648 = vadd.f32 %v1109, %v1534
      %v1649 = vadd.f32 %v1112, %v1537
      %v1650 = vadd.f32 %v1117, %v1542
      %v1651 = vadd.f32 %v1120, %v1545
      %v1652 = vadd.f32 %v1125, %v1550
      %v1653 = vadd.f32 %v1128, %v1553
      %v1654 = vadd.f32 %v1133, %v1558
      %v1655 = vadd.f32 %v1136, %v1561
      %v1656 = vadd.f32 %v1141, %v1566
      %v1657 = vadd.f32 %v1144, %v1569
      %v1658 = vadd.f32 %v1149, %v1574
      %v1659 = vadd.f32 %v1152, %v1577
      %v1660 = vadd.f32 %v1157, %v1582
      %v1661 = vadd.f32 %v1160, %v1585
      %v1662 = vadd.f32 %v1165, %v1590
      %v1663 = vadd.f32 %v1168, %v1593
      %v1664 = vadd.f32 %v1173, %v1598
      %v1665 = vadd.f32 %v1176, %v1601
      %v1666 = vadd.f32 %v1181, %v1606
      %v1667 = vadd.f32 %v1184, %v1609
      %v1668 = vadd.f32 %v1189, %v1614
      %v1669 = vadd.f32 %v1192, %v1617
      %v1670 = vadd.f32 %v1197, %v1622
      %v1671 = vadd.f32 %v1200, %v1625
      %v1672 = vadd.f32 %v1205, %v1630
      %v1673 = vadd.f32 %v1208, %v1633
      %v1674 = vadd.f32 %v1213, %v1638
      %v1675 = vadd.f32 %v1216, %v1641
      %s1676 = scalar_lea.vmem %s219, 12
      %v1677 = vld [vmem:[%s1676] sm:$0xf]
      %v1678 = vld [vmem:[%s1676 + $0x4] sm:$0xf]
      %v1679 = vld [vmem:[%s1676 + $0xc] sm:$0xf]
      %v1680 = vld [vmem:[%s1676 + $0x10] sm:$0xf]
      %v1681 = vld [vmem:[%s1676 + $0x18] sm:$0xf]
      %v1682 = vld [vmem:[%s1676 + $0x1c] sm:$0xf]
      %v1683 = vld [vmem:[%s1676 + $0x24] sm:$0xf]
      %v1684 = vld [vmem:[%s1676 + $0x28] sm:$0xf]
      %v1685 = vld [vmem:[%s1676 + $0x30] sm:$0xf]
      %v1686 = vld [vmem:[%s1676 + $0x34] sm:$0xf]
      %v1687 = vld [vmem:[%s1676 + $0x3c] sm:$0xf]
      %v1688 = vld [vmem:[%s1676 + $0x40] sm:$0xf]
      %v1689 = vld [vmem:[%s1676 + $0x48] sm:$0xf]
      %v1690 = vld [vmem:[%s1676 + $0x4c] sm:$0xf]
      %v1691 = vld [vmem:[%s1676 + $0x54] sm:$0xf]
      %v1692 = vld [vmem:[%s1676 + $0x58] sm:$0xf]
      %v1693 = vld [vmem:[%s1676 + $0x60] sm:$0xf]
      %v1694 = vld [vmem:[%s1676 + $0x64] sm:$0xf]
      %v1695 = vld [vmem:[%s1676 + $0x6c] sm:$0xf]
      %v1696 = vld [vmem:[%s1676 + $0x70] sm:$0xf]
      %v1697 = vld [vmem:[%s1676 + $0x78] sm:$0xf]
      %v1698 = vld [vmem:[%s1676 + $0x7c] sm:$0xf]
      %v1699 = vld [vmem:[%s1676 + $0x84] sm:$0xf]
      %v1700 = vld [vmem:[%s1676 + $0x88] sm:$0xf]
      %v1701 = vld [vmem:[%s1676 + $0x90] sm:$0xf]
      %v1702 = vld [vmem:[%s1676 + $0x94] sm:$0xf]
      %v1703 = vld [vmem:[%s1676 + $0x9c] sm:$0xf]
      %v1704 = vld [vmem:[%s1676 + $0xa0] sm:$0xf]
      %v1705 = vld [vmem:[%s1676 + $0xa8] sm:$0xf]
      %v1706 = vld [vmem:[%s1676 + $0xac] sm:$0xf]
      %v1707 = vld [vmem:[%s1676 + $0xb4] sm:$0xf]
      %v1708 = vld [vmem:[%s1676 + $0xb8] sm:$0xf]
      %s1709 = scalar_lea.vmem %s1, 6
      %v1710 = vld [vmem:[%s1709] sm:$0x3]
      %v1743 = vunpack.c.l.b16 %v1677
      %v1744 = vunpack.c.l.b16 %v1678
      %v1745 = vunpack.c.l.b16 %v1679
      %v1746 = vunpack.c.l.b16 %v1680
      %v1747 = vunpack.c.l.b16 %v1681
      %v1748 = vunpack.c.l.b16 %v1682
      %v1749 = vunpack.c.l.b16 %v1683
      %v1750 = vunpack.c.l.b16 %v1684
      %v1751 = vunpack.c.l.b16 %v1685
      %v1752 = vunpack.c.l.b16 %v1686
      %v1753 = vunpack.c.l.b16 %v1687
      %v1754 = vunpack.c.l.b16 %v1688
      %v1755 = vunpack.c.l.b16 %v1689
      %v1756 = vunpack.c.l.b16 %v1690
      %v1757 = vunpack.c.l.b16 %v1691
      %v1758 = vunpack.c.l.b16 %v1692
      %v1759 = vunpack.c.l.b16 %v1693
      %v1760 = vunpack.c.l.b16 %v1694
      %v1761 = vunpack.c.l.b16 %v1695
      %v1762 = vunpack.c.l.b16 %v1696
      %v1763 = vunpack.c.l.b16 %v1697
      %v1764 = vunpack.c.l.b16 %v1698
      %v1765 = vunpack.c.l.b16 %v1699
      %v1766 = vunpack.c.l.b16 %v1700
      %v1767 = vunpack.c.l.b16 %v1701
      %v1768 = vunpack.c.l.b16 %v1702
      %v1769 = vunpack.c.l.b16 %v1703
      %v1770 = vunpack.c.l.b16 %v1704
      %v1771 = vunpack.c.l.b16 %v1705
      %v1772 = vunpack.c.l.b16 %v1706
      %v1773 = vunpack.c.l.b16 %v1707
      %v1774 = vunpack.c.l.b16 %v1708
      %v1775 = vpack.c.b16 %v1744, %v1743
      %v1776 = vpack.c.b16 %v1746, %v1745
      %v1777 = vpack.c.b16 %v1748, %v1747
      %v1778 = vpack.c.b16 %v1750, %v1749
      %v1779 = vpack.c.b16 %v1752, %v1751
      %v1780 = vpack.c.b16 %v1754, %v1753
      %v1781 = vpack.c.b16 %v1756, %v1755
      %v1782 = vpack.c.b16 %v1758, %v1757
      %v1783 = vpack.c.b16 %v1760, %v1759
      %v1784 = vpack.c.b16 %v1762, %v1761
      %v1785 = vpack.c.b16 %v1764, %v1763
      %v1786 = vpack.c.b16 %v1766, %v1765
      %v1787 = vpack.c.b16 %v1768, %v1767
      %v1788 = vpack.c.b16 %v1770, %v1769
      %v1789 = vpack.c.b16 %v1772, %v1771
      %v1790 = vpack.c.b16 %v1774, %v1773
      %v1792 = vsel %vm713, %v1775, 0
      %v1795 = vsel %vm713, %v1776, 0
      %v1798 = vsel %vm713, %v1777, 0
      %v1801 = vsel %vm713, %v1778, 0
      %v1804 = vsel %vm713, %v1779, 0
      %v1807 = vsel %vm713, %v1780, 0
      %v1810 = vsel %vm713, %v1781, 0
      %v1813 = vsel %vm713, %v1782, 0
      %v1816 = vsel %vm713, %v1783, 0
      %v1819 = vsel %vm713, %v1784, 0
      %v1822 = vsel %vm713, %v1785, 0
      %v1825 = vsel %vm713, %v1786, 0
      %v1828 = vsel %vm713, %v1787, 0
      %v1831 = vsel %vm713, %v1788, 0
      %v1834 = vsel %vm713, %v1789, 0
      %v1837 = vsel %vm713, %v1790, 0
      %v1840 = vsel %vm762, %v1710, 0
      %1842 = vmatprep.subr.bf16.mxu0 0
      %1843 = vmatpush1.bf16.msra.mxu0 %v1840
      %1844 = vmatprep.subr.bf16.mxu0 0
      %1845 = vmatpush1.bf16.msra.mxu0 0
      %1846 = vmatprep.subr.bf16.mxu0 0
      %1847 = vmatpush1.bf16.msra.mxu0 0
      %1848 = vmatprep.subr.bf16.mxu0 0
      %1849 = vmatpush1.bf16.msra.mxu0 0
      %1850 = vmatprep.subr.bf16.mxu0 0
      %1851 = vmatpush1.bf16.msra.mxu0 0
      %1852 = vmatprep.subr.bf16.mxu0 0
      %1853 = vmatpush1.bf16.msra.mxu0 0
      %1854 = vmatprep.subr.bf16.mxu0 0
      %1855 = vmatpush1.bf16.msra.mxu0 0
      %1856 = vmatprep.subr.bf16.mxu0 0
      %1857 = vmatpush1.bf16.msra.mxu0 0
      %1858 = vmatprep.subr.bf16.mxu0 0
      %1859 = vmatpush1.bf16.msra.mxu0 0
      %1860 = vmatprep.subr.bf16.mxu0 0
      %1861 = vmatpush1.bf16.msra.mxu0 0
      %1862 = vmatprep.subr.bf16.mxu0 0
      %1863 = vmatpush1.bf16.msra.mxu0 0
      %1864 = vmatprep.subr.bf16.mxu0 0
      %1865 = vmatpush1.bf16.msra.mxu0 0
      %1866 = vmatprep.subr.bf16.mxu0 0
      %1867 = vmatpush1.bf16.msra.mxu0 0
      %1868 = vmatprep.subr.bf16.mxu0 0
      %1869 = vmatpush1.bf16.msra.mxu0 0
      %1870 = vmatprep.subr.bf16.mxu0 0
      %1871 = vmatpush1.bf16.msra.mxu0 0
      %1872 = vmatprep.subr.bf16.mxu0 0
      %1873 = vmatpush1.bf16.msra.mxu0 0
      %1874 = vmatprep.mubr.bf16.mxu0 0
      %1875 = vmatmul.mubr.bf16.gmra.mrb[0].mxu0 %v1792
      %v1876 = vpop.f32.mrb[0].mxu0
      %v1877 = vadd.f32 0.0, %v1876
      %v1878 = vpop.f32.mrb[0].mxu0
      %v1879 = vpop.f32.mrb[0].mxu0
      %v1880 = vadd.f32 0.0, %v1879
      %v1881 = vpop.f32.mrb[0].mxu0
      %1882 = vmatprep.mubr.bf16.mxu0 0
      %1883 = vmatmul.mubr.bf16.gmra.mrb[0].mxu0 %v1795
      %v1884 = vpop.f32.mrb[0].mxu0
      %v1885 = vadd.f32 0.0, %v1884
      %v1886 = vpop.f32.mrb[0].mxu0
      %v1887 = vpop.f32.mrb[0].mxu0
      %v1888 = vadd.f32 0.0, %v1887
      %v1889 = vpop.f32.mrb[0].mxu0
      %1890 = vmatprep.mubr.bf16.mxu0 0
      %1891 = vmatmul.mubr.bf16.gmra.mrb[0].mxu0 %v1798
      %v1892 = vpop.f32.mrb[0].mxu0
      %v1893 = vadd.f32 0.0, %v1892
      %v1894 = vpop.f32.mrb[0].mxu0
      %v1895 = vpop.f32.mrb[0].mxu0
      %v1896 = vadd.f32 0.0, %v1895
      %v1897 = vpop.f32.mrb[0].mxu0
      %1898 = vmatprep.mubr.bf16.mxu0 0
      %1899 = vmatmul.mubr.bf16.gmra.mrb[0].mxu0 %v1801
      %v1900 = vpop.f32.mrb[0].mxu0
      %v1901 = vadd.f32 0.0, %v1900
      %v1902 = vpop.f32.mrb[0].mxu0
      %v1903 = vpop.f32.mrb[0].mxu0
      %v1904 = vadd.f32 0.0, %v1903
      %v1905 = vpop.f32.mrb[0].mxu0
      %1906 = vmatprep.mubr.bf16.mxu0 0
      %1907 = vmatmul.mubr.bf16.gmra.mrb[0].mxu0 %v1804
      %v1908 = vpop.f32.mrb[0].mxu0
      %v1909 = vadd.f32 0.0, %v1908
      %v1910 = vpop.f32.mrb[0].mxu0
      %v1911 = vpop.f32.mrb[0].mxu0
      %v1912 = vadd.f32 0.0, %v1911
      %v1913 = vpop.f32.mrb[0].mxu0
      %1914 = vmatprep.mubr.bf16.mxu0 0
      %1915 = vmatmul.mubr.bf16.gmra.mrb[0].mxu0 %v1807
      %v1916 = vpop.f32.mrb[0].mxu0
      %v1917 = vadd.f32 0.0, %v1916
      %v1918 = vpop.f32.mrb[0].mxu0
      %v1919 = vpop.f32.mrb[0].mxu0
      %v1920 = vadd.f32 0.0, %v1919
      %v1921 = vpop.f32.mrb[0].mxu0
      %1922 = vmatprep.mubr.bf16.mxu0 0
      %1923 = vmatmul.mubr.bf16.gmra.mrb[0].mxu0 %v1810
      %v1924 = vpop.f32.mrb[0].mxu0
      %v1925 = vadd.f32 0.0, %v1924
      %v1926 = vpop.f32.mrb[0].mxu0
      %v1927 = vpop.f32.mrb[0].mxu0
      %v1928 = vadd.f32 0.0, %v1927
      %v1929 = vpop.f32.mrb[0].mxu0
      %1930 = vmatprep.mubr.bf16.mxu0 0
      %1931 = vmatmul.mubr.bf16.gmra.mrb[0].mxu0 %v1813
      %v1932 = vpop.f32.mrb[0].mxu0
      %v1933 = vadd.f32 0.0, %v1932
      %v1934 = vpop.f32.mrb[0].mxu0
      %v1935 = vpop.f32.mrb[0].mxu0
      %v1936 = vadd.f32 0.0, %v1935
      %v1937 = vpop.f32.mrb[0].mxu0
      %1938 = vmatprep.mubr.bf16.mxu0 0
      %1939 = vmatmul.mubr.bf16.gmra.mrb[0].mxu0 %v1816
      %v1940 = vpop.f32.mrb[0].mxu0
      %v1941 = vadd.f32 0.0, %v1940
      %v1942 = vpop.f32.mrb[0].mxu0
      %v1943 = vpop.f32.mrb[0].mxu0
      %v1944 = vadd.f32 0.0, %v1943
      %v1945 = vpop.f32.mrb[0].mxu0
      %1946 = vmatprep.mubr.bf16.mxu0 0
      %1947 = vmatmul.mubr.bf16.gmra.mrb[0].mxu0 %v1819
      %v1948 = vpop.f32.mrb[0].mxu0
      %v1949 = vadd.f32 0.0, %v1948
      %v1950 = vpop.f32.mrb[0].mxu0
      %v1951 = vpop.f32.mrb[0].mxu0
      %v1952 = vadd.f32 0.0, %v1951
      %v1953 = vpop.f32.mrb[0].mxu0
      %1954 = vmatprep.mubr.bf16.mxu0 0
      %1955 = vmatmul.mubr.bf16.gmra.mrb[0].mxu0 %v1822
      %v1956 = vpop.f32.mrb[0].mxu0
      %v1957 = vadd.f32 0.0, %v1956
      %v1958 = vpop.f32.mrb[0].mxu0
      %v1959 = vpop.f32.mrb[0].mxu0
      %v1960 = vadd.f32 0.0, %v1959
      %v1961 = vpop.f32.mrb[0].mxu0
      %1962 = vmatprep.mubr.bf16.mxu0 0
      %1963 = vmatmul.mubr.bf16.gmra.mrb[0].mxu0 %v1825
      %v1964 = vpop.f32.mrb[0].mxu0
      %v1965 = vadd.f32 0.0, %v1964
      %v1966 = vpop.f32.mrb[0].mxu0
      %v1967 = vpop.f32.mrb[0].mxu0
      %v1968 = vadd.f32 0.0, %v1967
      %v1969 = vpop.f32.mrb[0].mxu0
      %1970 = vmatprep.mubr.bf16.mxu0 0
      %1971 = vmatmul.mubr.bf16.gmra.mrb[0].mxu0 %v1828
      %v1972 = vpop.f32.mrb[0].mxu0
      %v1973 = vadd.f32 0.0, %v1972
      %v1974 = vpop.f32.mrb[0].mxu0
      %v1975 = vpop.f32.mrb[0].mxu0
      %v1976 = vadd.f32 0.0, %v1975
      %v1977 = vpop.f32.mrb[0].mxu0
      %1978 = vmatprep.mubr.bf16.mxu0 0
      %1979 = vmatmul.mubr.bf16.gmra.mrb[0].mxu0 %v1831
      %v1980 = vpop.f32.mrb[0].mxu0
      %v1981 = vadd.f32 0.0, %v1980
      %v1982 = vpop.f32.mrb[0].mxu0
      %v1983 = vpop.f32.mrb[0].mxu0
      %v1984 = vadd.f32 0.0, %v1983
      %v1985 = vpop.f32.mrb[0].mxu0
      %1986 = vmatprep.mubr.bf16.mxu0 0
      %1987 = vmatmul.mubr.bf16.gmra.mrb[0].mxu0 %v1834
      %v1988 = vpop.f32.mrb[0].mxu0
      %v1989 = vadd.f32 0.0, %v1988
      %v1990 = vpop.f32.mrb[0].mxu0
      %v1991 = vpop.f32.mrb[0].mxu0
      %v1992 = vadd.f32 0.0, %v1991
      %v1993 = vpop.f32.mrb[0].mxu0
      %1994 = vmatprep.mubr.bf16.mxu0 0
      %1995 = vmatmul.mubr.bf16.gmra.mrb[0].mxu0 %v1837
      %v1996 = vpop.f32.mrb[0].mxu0
      %v1997 = vadd.f32 0.0, %v1996
      %v1998 = vpop.f32.mrb[0].mxu0
      %v1999 = vpop.f32.mrb[0].mxu0
      %v2000 = vadd.f32 0.0, %v1999
      %v2001 = vpop.f32.mrb[0].mxu0
      %2002 = vdwg.mxu0
      %v2003 = vadd.f32 %v1644, %v1877
      %v2004 = vadd.f32 %v1645, %v1880
      %v2005 = vadd.f32 %v1646, %v1885
      %v2006 = vadd.f32 %v1647, %v1888
      %v2007 = vadd.f32 %v1648, %v1893
      %v2008 = vadd.f32 %v1649, %v1896
      %v2009 = vadd.f32 %v1650, %v1901
      %v2010 = vadd.f32 %v1651, %v1904
      %v2011 = vadd.f32 %v1652, %v1909
      %v2012 = vadd.f32 %v1653, %v1912
      %v2013 = vadd.f32 %v1654, %v1917
      %v2014 = vadd.f32 %v1655, %v1920
      %v2015 = vadd.f32 %v1656, %v1925
      %v2016 = vadd.f32 %v1657, %v1928
      %v2017 = vadd.f32 %v1658, %v1933
      %v2018 = vadd.f32 %v1659, %v1936
      %v2019 = vadd.f32 %v1660, %v1941
      %v2020 = vadd.f32 %v1661, %v1944
      %v2021 = vadd.f32 %v1662, %v1949
      %v2022 = vadd.f32 %v1663, %v1952
      %v2023 = vadd.f32 %v1664, %v1957
      %v2024 = vadd.f32 %v1665, %v1960
      %v2025 = vadd.f32 %v1666, %v1965
      %v2026 = vadd.f32 %v1667, %v1968
      %v2027 = vadd.f32 %v1668, %v1973
      %v2028 = vadd.f32 %v1669, %v1976
      %v2029 = vadd.f32 %v1670, %v1981
      %v2030 = vadd.f32 %v1671, %v1984
      %v2031 = vadd.f32 %v1672, %v1989
      %v2032 = vadd.f32 %v1673, %v1992
      %v2033 = vadd.f32 %v1674, %v1997
      %v2034 = vadd.f32 %v1675, %v2000
      %v2035 = vld [vmem:[%s1676] sm:$0xf]
      %v2036 = vld [vmem:[%s1676 + $0x4] sm:$0xf]
      %v2037 = vld [vmem:[%s1676 + $0x8] sm:$0x1]
      %v2038 = vld [vmem:[%s1676 + $0xc] sm:$0xf]
      %v2039 = vld [vmem:[%s1676 + $0x10] sm:$0xf]
      %v2040 = vld [vmem:[%s1676 + $0x14] sm:$0x1]
      %v2041 = vld [vmem:[%s1676 + $0x18] sm:$0xf]
      %v2042 = vld [vmem:[%s1676 + $0x1c] sm:$0xf]
      %v2043 = vld [vmem:[%s1676 + $0x20] sm:$0x1]
      %v2044 = vld [vmem:[%s1676 + $0x24] sm:$0xf]
      %v2045 = vld [vmem:[%s1676 + $0x28] sm:$0xf]
      %v2046 = vld [vmem:[%s1676 + $0x2c] sm:$0x1]
      %v2047 = vld [vmem:[%s1676 + $0x30] sm:$0xf]
      %v2048 = vld [vmem:[%s1676 + $0x34] sm:$0xf]
      %v2049 = vld [vmem:[%s1676 + $0x38] sm:$0x1]
      %v2050 = vld [vmem:[%s1676 + $0x3c] sm:$0xf]
      %v2051 = vld [vmem:[%s1676 + $0x40] sm:$0xf]
      %v2052 = vld [vmem:[%s1676 + $0x44] sm:$0x1]
      %v2053 = vld [vmem:[%s1676 + $0x48] sm:$0xf]
      %v2054 = vld [vmem:[%s1676 + $0x4c] sm:$0xf]
      %v2055 = vld [vmem:[%s1676 + $0x50] sm:$0x1]
      %v2056 = vld [vmem:[%s1676 + $0x54] sm:$0xf]
      %v2057 = vld [vmem:[%s1676 + $0x58] sm:$0xf]
      %v2058 = vld [vmem:[%s1676 + $0x5c] sm:$0x1]
      %v2059 = vld [vmem:[%s1676 + $0x60] sm:$0xf]
      %v2060 = vld [vmem:[%s1676 + $0x64] sm:$0xf]
      %v2061 = vld [vmem:[%s1676 + $0x68] sm:$0x1]
      %v2062 = vld [vmem:[%s1676 + $0x6c] sm:$0xf]
      %v2063 = vld [vmem:[%s1676 + $0x70] sm:$0xf]
      %v2064 = vld [vmem:[%s1676 + $0x74] sm:$0x1]
      %v2065 = vld [vmem:[%s1676 + $0x78] sm:$0xf]
      %v2066 = vld [vmem:[%s1676 + $0x7c] sm:$0xf]
      %v2067 = vld [vmem:[%s1676 + $0x80] sm:$0x1]
      %v2068 = vld [vmem:[%s1676 + $0x84] sm:$0xf]
      %v2069 = vld [vmem:[%s1676 + $0x88] sm:$0xf]
      %v2070 = vld [vmem:[%s1676 + $0x8c] sm:$0x1]
      %v2071 = vld [vmem:[%s1676 + $0x90] sm:$0xf]
      %v2072 = vld [vmem:[%s1676 + $0x94] sm:$0xf]
      %v2073 = vld [vmem:[%s1676 + $0x98] sm:$0x1]
      %v2074 = vld [vmem:[%s1676 + $0x9c] sm:$0xf]
      %v2075 = vld [vmem:[%s1676 + $0xa0] sm:$0xf]
      %v2076 = vld [vmem:[%s1676 + $0xa4] sm:$0x1]
      %v2077 = vld [vmem:[%s1676 + $0xa8] sm:$0xf]
      %v2078 = vld [vmem:[%s1676 + $0xac] sm:$0xf]
      %v2079 = vld [vmem:[%s1676 + $0xb0] sm:$0x1]
      %v2080 = vld [vmem:[%s1676 + $0xb4] sm:$0xf]
      %v2081 = vld [vmem:[%s1676 + $0xb8] sm:$0xf]
      %v2082 = vld [vmem:[%s1676 + $0xbc] sm:$0x1]
      %v2084 = vshrl.u32 %v2035, 16
      %v2086 = vrot.slane %v2084, 4
      %v2087 = vshll.u32 %v2035, 16
      %v2089 = vrot.slane %v2087, 5
      %v2090 = vor.u32 %v2086, %v2089
      %v2091 = vrot.slane %v2090, 4
      %v2093 = vshll.u32 %v2036, 16
      %v2095 = vrot.slane %v2093, 5
      %v2096 = vsel %vm278, %v2091, %v2095
      %v2097 = vshrl.u32 %v2036, 16
      %v2099 = vrot.slane %v2097, 4
      %v2100 = vor.u32 %v2099, %v2095
      %v2101 = vrot.slane %v2100, 4
      %v2103 = vshll.u32 %v2037, 16
      %v2105 = vrot.slane %v2103, 5
      %v2106 = vsel %vm278, %v2101, %v2105
      %v2108 = vshrl.u32 %v2038, 16
      %v2110 = vrot.slane %v2108, 4
      %v2111 = vshll.u32 %v2038, 16
      %v2113 = vrot.slane %v2111, 5
      %v2114 = vor.u32 %v2110, %v2113
      %v2115 = vrot.slane %v2114, 4
      %v2117 = vshll.u32 %v2039, 16
      %v2119 = vrot.slane %v2117, 5
      %v2120 = vsel %vm278, %v2115, %v2119
      %v2121 = vshrl.u32 %v2039, 16
      %v2123 = vrot.slane %v2121, 4
      %v2124 = vor.u32 %v2123, %v2119
      %v2125 = vrot.slane %v2124, 4
      %v2127 = vshll.u32 %v2040, 16
      %v2129 = vrot.slane %v2127, 5
      %v2130 = vsel %vm278, %v2125, %v2129
      %v2132 = vshrl.u32 %v2041, 16
      %v2134 = vrot.slane %v2132, 4
      %v2135 = vshll.u32 %v2041, 16
      %v2137 = vrot.slane %v2135, 5
      %v2138 = vor.u32 %v2134, %v2137
      %v2139 = vrot.slane %v2138, 4
      %v2141 = vshll.u32 %v2042, 16
      %v2143 = vrot.slane %v2141, 5
      %v2144 = vsel %vm278, %v2139, %v2143
      %v2145 = vshrl.u32 %v2042, 16
      %v2147 = vrot.slane %v2145, 4
      %v2148 = vor.u32 %v2147, %v2143
      %v2149 = vrot.slane %v2148, 4
      %v2151 = vshll.u32 %v2043, 16
      %v2153 = vrot.slane %v2151, 5
      %v2154 = vsel %vm278, %v2149, %v2153
      %v2156 = vshrl.u32 %v2044, 16
      %v2158 = vrot.slane %v2156, 4
      %v2159 = vshll.u32 %v2044, 16
      %v2161 = vrot.slane %v2159, 5
      %v2162 = vor.u32 %v2158, %v2161
      %v2163 = vrot.slane %v2162, 4
      %v2165 = vshll.u32 %v2045, 16
      %v2167 = vrot.slane %v2165, 5
      %v2168 = vsel %vm278, %v2163, %v2167
      %v2169 = vshrl.u32 %v2045, 16
      %v2171 = vrot.slane %v2169, 4
      %v2172 = vor.u32 %v2171, %v2167
      %v2173 = vrot.slane %v2172, 4
      %v2175 = vshll.u32 %v2046, 16
      %v2177 = vrot.slane %v2175, 5
      %v2178 = vsel %vm278, %v2173, %v2177
      %v2180 = vshrl.u32 %v2047, 16
      %v2182 = vrot.slane %v2180, 4
      %v2183 = vshll.u32 %v2047, 16
      %v2185 = vrot.slane %v2183, 5
      %v2186 = vor.u32 %v2182, %v2185
      %v2187 = vrot.slane %v2186, 4
      %v2189 = vshll.u32 %v2048, 16
      %v2191 = vrot.slane %v2189, 5
      %v2192 = vsel %vm278, %v2187, %v2191
      %v2193 = vshrl.u32 %v2048, 16
      %v2195 = vrot.slane %v2193, 4
      %v2196 = vor.u32 %v2195, %v2191
      %v2197 = vrot.slane %v2196, 4
      %v2199 = vshll.u32 %v2049, 16
      %v2201 = vrot.slane %v2199, 5
      %v2202 = vsel %vm278, %v2197, %v2201
      %v2204 = vshrl.u32 %v2050, 16
      %v2206 = vrot.slane %v2204, 4
      %v2207 = vshll.u32 %v2050, 16
      %v2209 = vrot.slane %v2207, 5
      %v2210 = vor.u32 %v2206, %v2209
      %v2211 = vrot.slane %v2210, 4
      %v2213 = vshll.u32 %v2051, 16
      %v2215 = vrot.slane %v2213, 5
      %v2216 = vsel %vm278, %v2211, %v2215
      %v2217 = vshrl.u32 %v2051, 16
      %v2219 = vrot.slane %v2217, 4
      %v2220 = vor.u32 %v2219, %v2215
      %v2221 = vrot.slane %v2220, 4
      %v2223 = vshll.u32 %v2052, 16
      %v2225 = vrot.slane %v2223, 5
      %v2226 = vsel %vm278, %v2221, %v2225
      %v2228 = vshrl.u32 %v2053, 16
      %v2230 = vrot.slane %v2228, 4
      %v2231 = vshll.u32 %v2053, 16
      %v2233 = vrot.slane %v2231, 5
      %v2234 = vor.u32 %v2230, %v2233
      %v2235 = vrot.slane %v2234, 4
      %v2237 = vshll.u32 %v2054, 16
      %v2239 = vrot.slane %v2237, 5
      %v2240 = vsel %vm278, %v2235, %v2239
      %v2241 = vshrl.u32 %v2054, 16
      %v2243 = vrot.slane %v2241, 4
      %v2244 = vor.u32 %v2243, %v2239
      %v2245 = vrot.slane %v2244, 4
      %v2247 = vshll.u32 %v2055, 16
      %v2249 = vrot.slane %v2247, 5
      %v2250 = vsel %vm278, %v2245, %v2249
      %v2252 = vshrl.u32 %v2056, 16
      %v2254 = vrot.slane %v2252, 4
      %v2255 = vshll.u32 %v2056, 16
      %v2257 = vrot.slane %v2255, 5
      %v2258 = vor.u32 %v2254, %v2257
      %v2259 = vrot.slane %v2258, 4
      %v2261 = vshll.u32 %v2057, 16
      %v2263 = vrot.slane %v2261, 5
      %v2264 = vsel %vm278, %v2259, %v2263
      %v2265 = vshrl.u32 %v2057, 16
      %v2267 = vrot.slane %v2265, 4
      %v2268 = vor.u32 %v2267, %v2263
      %v2269 = vrot.slane %v2268, 4
      %v2271 = vshll.u32 %v2058, 16
      %v2273 = vrot.slane %v2271, 5
      %v2274 = vsel %vm278, %v2269, %v2273
      %v2276 = vshrl.u32 %v2059, 16
      %v2278 = vrot.slane %v2276, 4
      %v2279 = vshll.u32 %v2059, 16
      %v2281 = vrot.slane %v2279, 5
      %v2282 = vor.u32 %v2278, %v2281
      %v2283 = vrot.slane %v2282, 4
      %v2285 = vshll.u32 %v2060, 16
      %v2287 = vrot.slane %v2285, 5
      %v2288 = vsel %vm278, %v2283, %v2287
      %v2289 = vshrl.u32 %v2060, 16
      %v2291 = vrot.slane %v2289, 4
      %v2292 = vor.u32 %v2291, %v2287
      %v2293 = vrot.slane %v2292, 4
      %v2295 = vshll.u32 %v2061, 16
      %v2297 = vrot.slane %v2295, 5
      %v2298 = vsel %vm278, %v2293, %v2297
      %v2300 = vshrl.u32 %v2062, 16
      %v2302 = vrot.slane %v2300, 4
      %v2303 = vshll.u32 %v2062, 16
      %v2305 = vrot.slane %v2303, 5
      %v2306 = vor.u32 %v2302, %v2305
      %v2307 = vrot.slane %v2306, 4
      %v2309 = vshll.u32 %v2063, 16
      %v2311 = vrot.slane %v2309, 5
      %v2312 = vsel %vm278, %v2307, %v2311
      %v2313 = vshrl.u32 %v2063, 16
      %v2315 = vrot.slane %v2313, 4
      %v2316 = vor.u32 %v2315, %v2311
      %v2317 = vrot.slane %v2316, 4
      %v2319 = vshll.u32 %v2064, 16
      %v2321 = vrot.slane %v2319, 5
      %v2322 = vsel %vm278, %v2317, %v2321
      %v2324 = vshrl.u32 %v2065, 16
      %v2326 = vrot.slane %v2324, 4
      %v2327 = vshll.u32 %v2065, 16
      %v2329 = vrot.slane %v2327, 5
      %v2330 = vor.u32 %v2326, %v2329
      %v2331 = vrot.slane %v2330, 4
      %v2333 = vshll.u32 %v2066, 16
      %v2335 = vrot.slane %v2333, 5
      %v2336 = vsel %vm278, %v2331, %v2335
      %v2337 = vshrl.u32 %v2066, 16
      %v2339 = vrot.slane %v2337, 4
      %v2340 = vor.u32 %v2339, %v2335
      %v2341 = vrot.slane %v2340, 4
      %v2343 = vshll.u32 %v2067, 16
      %v2345 = vrot.slane %v2343, 5
      %v2346 = vsel %vm278, %v2341, %v2345
      %v2348 = vshrl.u32 %v2068, 16
      %v2350 = vrot.slane %v2348, 4
      %v2351 = vshll.u32 %v2068, 16
      %v2353 = vrot.slane %v2351, 5
      %v2354 = vor.u32 %v2350, %v2353
      %v2355 = vrot.slane %v2354, 4
      %v2357 = vshll.u32 %v2069, 16
      %v2359 = vrot.slane %v2357, 5
      %v2360 = vsel %vm278, %v2355, %v2359
      %v2361 = vshrl.u32 %v2069, 16
      %v2363 = vrot.slane %v2361, 4
      %v2364 = vor.u32 %v2363, %v2359
      %v2365 = vrot.slane %v2364, 4
      %v2367 = vshll.u32 %v2070, 16
      %v2369 = vrot.slane %v2367, 5
      %v2370 = vsel %vm278, %v2365, %v2369
      %v2372 = vshrl.u32 %v2071, 16
      %v2374 = vrot.slane %v2372, 4
      %v2375 = vshll.u32 %v2071, 16
      %v2377 = vrot.slane %v2375, 5
      %v2378 = vor.u32 %v2374, %v2377
      %v2379 = vrot.slane %v2378, 4
      %v2381 = vshll.u32 %v2072, 16
      %v2383 = vrot.slane %v2381, 5
      %v2384 = vsel %vm278, %v2379, %v2383
      %v2385 = vshrl.u32 %v2072, 16
      %v2387 = vrot.slane %v2385, 4
      %v2388 = vor.u32 %v2387, %v2383
      %v2389 = vrot.slane %v2388, 4
      %v2391 = vshll.u32 %v2073, 16
      %v2393 = vrot.slane %v2391, 5
      %v2394 = vsel %vm278, %v2389, %v2393
      %v2396 = vshrl.u32 %v2074, 16
      %v2398 = vrot.slane %v2396, 4
      %v2399 = vshll.u32 %v2074, 16
      %v2401 = vrot.slane %v2399, 5
      %v2402 = vor.u32 %v2398, %v2401
      %v2403 = vrot.slane %v2402, 4
      %v2405 = vshll.u32 %v2075, 16
      %v2407 = vrot.slane %v2405, 5
      %v2408 = vsel %vm278, %v2403, %v2407
      %v2409 = vshrl.u32 %v2075, 16
      %v2411 = vrot.slane %v2409, 4
      %v2412 = vor.u32 %v2411, %v2407
      %v2413 = vrot.slane %v2412, 4
      %v2415 = vshll.u32 %v2076, 16
      %v2417 = vrot.slane %v2415, 5
      %v2418 = vsel %vm278, %v2413, %v2417
      %v2420 = vshrl.u32 %v2077, 16
      %v2422 = vrot.slane %v2420, 4
      %v2423 = vshll.u32 %v2077, 16
      %v2425 = vrot.slane %v2423, 5
      %v2426 = vor.u32 %v2422, %v2425
      %v2427 = vrot.slane %v2426, 4
      %v2429 = vshll.u32 %v2078, 16
      %v2431 = vrot.slane %v2429, 5
      %v2432 = vsel %vm278, %v2427, %v2431
      %v2433 = vshrl.u32 %v2078, 16
      %v2435 = vrot.slane %v2433, 4
      %v2436 = vor.u32 %v2435, %v2431
      %v2437 = vrot.slane %v2436, 4
      %v2439 = vshll.u32 %v2079, 16
      %v2441 = vrot.slane %v2439, 5
      %v2442 = vsel %vm278, %v2437, %v2441
      %v2444 = vshrl.u32 %v2080, 16
      %v2446 = vrot.slane %v2444, 4
      %v2447 = vshll.u32 %v2080, 16
      %v2449 = vrot.slane %v2447, 5
      %v2450 = vor.u32 %v2446, %v2449
      %v2451 = vrot.slane %v2450, 4
      %v2453 = vshll.u32 %v2081, 16
      %v2455 = vrot.slane %v2453, 5
      %v2456 = vsel %vm278, %v2451, %v2455
      %v2457 = vshrl.u32 %v2081, 16
      %v2459 = vrot.slane %v2457, 4
      %v2460 = vor.u32 %v2459, %v2455
      %v2461 = vrot.slane %v2460, 4
      %v2463 = vshll.u32 %v2082, 16
      %v2465 = vrot.slane %v2463, 5
      %v2466 = vsel %vm278, %v2461, %v2465
      %s2467 = scalar_lea.vmem %s1, 8
      %v2468 = vld [vmem:[%s2467] sm:$0x3]
      %v2469 = vunpack.c.l.b16 %v2096
      %v2470 = vunpack.c.l.b16 %v2106
      %v2471 = vunpack.c.l.b16 %v2120
      %v2472 = vunpack.c.l.b16 %v2130
      %v2473 = vunpack.c.l.b16 %v2144
      %v2474 = vunpack.c.l.b16 %v2154
      %v2475 = vunpack.c.l.b16 %v2168
      %v2476 = vunpack.c.l.b16 %v2178
      %v2477 = vunpack.c.l.b16 %v2192
      %v2478 = vunpack.c.l.b16 %v2202
      %v2479 = vunpack.c.l.b16 %v2216
      %v2480 = vunpack.c.l.b16 %v2226
      %v2481 = vunpack.c.l.b16 %v2240
      %v2482 = vunpack.c.l.b16 %v2250
      %v2483 = vunpack.c.l.b16 %v2264
      %v2484 = vunpack.c.l.b16 %v2274
      %v2485 = vunpack.c.l.b16 %v2288
      %v2486 = vunpack.c.l.b16 %v2298
      %v2487 = vunpack.c.l.b16 %v2312
      %v2488 = vunpack.c.l.b16 %v2322
      %v2489 = vunpack.c.l.b16 %v2336
      %v2490 = vunpack.c.l.b16 %v2346
      %v2491 = vunpack.c.l.b16 %v2360
      %v2492 = vunpack.c.l.b16 %v2370
      %v2493 = vunpack.c.l.b16 %v2384
      %v2494 = vunpack.c.l.b16 %v2394
      %v2495 = vunpack.c.l.b16 %v2408
      %v2496 = vunpack.c.l.b16 %v2418
      %v2497 = vunpack.c.l.b16 %v2432
      %v2498 = vunpack.c.l.b16 %v2442
      %v2499 = vunpack.c.l.b16 %v2456
      %v2500 = vunpack.c.l.b16 %v2466
      %v2501 = vpack.c.b16 %v2470, %v2469
      %v2502 = vpack.c.b16 %v2472, %v2471
      %v2503 = vpack.c.b16 %v2474, %v2473
      %v2504 = vpack.c.b16 %v2476, %v2475
      %v2505 = vpack.c.b16 %v2478, %v2477
      %v2506 = vpack.c.b16 %v2480, %v2479
      %v2507 = vpack.c.b16 %v2482, %v2481
      %v2508 = vpack.c.b16 %v2484, %v2483
      %v2509 = vpack.c.b16 %v2486, %v2485
      %v2510 = vpack.c.b16 %v2488, %v2487
      %v2511 = vpack.c.b16 %v2490, %v2489
      %v2512 = vpack.c.b16 %v2492, %v2491
      %v2513 = vpack.c.b16 %v2494, %v2493
      %v2514 = vpack.c.b16 %v2496, %v2495
      %v2515 = vpack.c.b16 %v2498, %v2497
      %v2516 = vpack.c.b16 %v2500, %v2499
      %v2518 = vsel %vm713, %v2501, 0
      %v2521 = vsel %vm713, %v2502, 0
      %v2524 = vsel %vm713, %v2503, 0
      %v2527 = vsel %vm713, %v2504, 0
      %v2530 = vsel %vm713, %v2505, 0
      %v2533 = vsel %vm713, %v2506, 0
      %v2536 = vsel %vm713, %v2507, 0
      %v2539 = vsel %vm713, %v2508, 0
      %v2542 = vsel %vm713, %v2509, 0
      %v2545 = vsel %vm713, %v2510, 0
      %v2548 = vsel %vm713, %v2511, 0
      %v2551 = vsel %vm713, %v2512, 0
      %v2554 = vsel %vm713, %v2513, 0
      %v2557 = vsel %vm713, %v2514, 0
      %v2560 = vsel %vm713, %v2515, 0
      %v2563 = vsel %vm713, %v2516, 0
      %v2566 = vsel %vm762, %v2468, 0
      %2568 = vmatprep.subr.bf16.mxu0 0
      %2569 = vmatpush1.bf16.msra.mxu0 %v2566
      %2570 = vmatprep.subr.bf16.mxu0 0
      %2571 = vmatpush1.bf16.msra.mxu0 0
      %2572 = vmatprep.subr.bf16.mxu0 0
      %2573 = vmatpush1.bf16.msra.mxu0 0
      %2574 = vmatprep.subr.bf16.mxu0 0
      %2575 = vmatpush1.bf16.msra.mxu0 0
      %2576 = vmatprep.subr.bf16.mxu0 0
      %2577 = vmatpush1.bf16.msra.mxu0 0
      %2578 = vmatprep.subr.bf16.mxu0 0
      %2579 = vmatpush1.bf16.msra.mxu0 0
      %2580 = vmatprep.subr.bf16.mxu0 0
      %2581 = vmatpush1.bf16.msra.mxu0 0
      %2582 = vmatprep.subr.bf16.mxu0 0
      %2583 = vmatpush1.bf16.msra.mxu0 0
      %2584 = vmatprep.subr.bf16.mxu0 0
      %2585 = vmatpush1.bf16.msra.mxu0 0
      %2586 = vmatprep.subr.bf16.mxu0 0
      %2587 = vmatpush1.bf16.msra.mxu0 0
      %2588 = vmatprep.subr.bf16.mxu0 0
      %2589 = vmatpush1.bf16.msra.mxu0 0
      %2590 = vmatprep.subr.bf16.mxu0 0
      %2591 = vmatpush1.bf16.msra.mxu0 0
      %2592 = vmatprep.subr.bf16.mxu0 0
      %2593 = vmatpush1.bf16.msra.mxu0 0
      %2594 = vmatprep.subr.bf16.mxu0 0
      %2595 = vmatpush1.bf16.msra.mxu0 0
      %2596 = vmatprep.subr.bf16.mxu0 0
      %2597 = vmatpush1.bf16.msra.mxu0 0
      %2598 = vmatprep.subr.bf16.mxu0 0
      %2599 = vmatpush1.bf16.msra.mxu0 0
      %2600 = vmatprep.mubr.bf16.mxu0 0
      %2601 = vmatmul.mubr.bf16.gmra.mrb[0].mxu0 %v2518
      %v2602 = vpop.f32.mrb[0].mxu0
      %v2603 = vadd.f32 0.0, %v2602
      %v2604 = vpop.f32.mrb[0].mxu0
      %v2605 = vpop.f32.mrb[0].mxu0
      %v2606 = vadd.f32 0.0, %v2605
      %v2607 = vpop.f32.mrb[0].mxu0
      %2608 = vmatprep.mubr.bf16.mxu0 0
      %2609 = vmatmul.mubr.bf16.gmra.mrb[0].mxu0 %v2521
      %v2610 = vpop.f32.mrb[0].mxu0
      %v2611 = vadd.f32 0.0, %v2610
      %v2612 = vpop.f32.mrb[0].mxu0
      %v2613 = vpop.f32.mrb[0].mxu0
      %v2614 = vadd.f32 0.0, %v2613
      %v2615 = vpop.f32.mrb[0].mxu0
      %2616 = vmatprep.mubr.bf16.mxu0 0
      %2617 = vmatmul.mubr.bf16.gmra.mrb[0].mxu0 %v2524
      %v2618 = vpop.f32.mrb[0].mxu0
      %v2619 = vadd.f32 0.0, %v2618
      %v2620 = vpop.f32.mrb[0].mxu0
      %v2621 = vpop.f32.mrb[0].mxu0
      %v2622 = vadd.f32 0.0, %v2621
      %v2623 = vpop.f32.mrb[0].mxu0
      %2624 = vmatprep.mubr.bf16.mxu0 0
      %2625 = vmatmul.mubr.bf16.gmra.mrb[0].mxu0 %v2527
      %v2626 = vpop.f32.mrb[0].mxu0
      %v2627 = vadd.f32 0.0, %v2626
      %v2628 = vpop.f32.mrb[0].mxu0
      %v2629 = vpop.f32.mrb[0].mxu0
      %v2630 = vadd.f32 0.0, %v2629
      %v2631 = vpop.f32.mrb[0].mxu0
      %2632 = vmatprep.mubr.bf16.mxu0 0
      %2633 = vmatmul.mubr.bf16.gmra.mrb[0].mxu0 %v2530
      %v2634 = vpop.f32.mrb[0].mxu0
      %v2635 = vadd.f32 0.0, %v2634
      %v2636 = vpop.f32.mrb[0].mxu0
      %v2637 = vpop.f32.mrb[0].mxu0
      %v2638 = vadd.f32 0.0, %v2637
      %v2639 = vpop.f32.mrb[0].mxu0
      %2640 = vmatprep.mubr.bf16.mxu0 0
      %2641 = vmatmul.mubr.bf16.gmra.mrb[0].mxu0 %v2533
      %v2642 = vpop.f32.mrb[0].mxu0
      %v2643 = vadd.f32 0.0, %v2642
      %v2644 = vpop.f32.mrb[0].mxu0
      %v2645 = vpop.f32.mrb[0].mxu0
      %v2646 = vadd.f32 0.0, %v2645
      %v2647 = vpop.f32.mrb[0].mxu0
      %2648 = vmatprep.mubr.bf16.mxu0 0
      %2649 = vmatmul.mubr.bf16.gmra.mrb[0].mxu0 %v2536
      %v2650 = vpop.f32.mrb[0].mxu0
      %v2651 = vadd.f32 0.0, %v2650
      %v2652 = vpop.f32.mrb[0].mxu0
      %v2653 = vpop.f32.mrb[0].mxu0
      %v2654 = vadd.f32 0.0, %v2653
      %v2655 = vpop.f32.mrb[0].mxu0
      %2656 = vmatprep.mubr.bf16.mxu0 0
      %2657 = vmatmul.mubr.bf16.gmra.mrb[0].mxu0 %v2539
      %v2658 = vpop.f32.mrb[0].mxu0
      %v2659 = vadd.f32 0.0, %v2658
      %v2660 = vpop.f32.mrb[0].mxu0
      %v2661 = vpop.f32.mrb[0].mxu0
      %v2662 = vadd.f32 0.0, %v2661
      %v2663 = vpop.f32.mrb[0].mxu0
      %2664 = vmatprep.mubr.bf16.mxu0 0
      %2665 = vmatmul.mubr.bf16.gmra.mrb[0].mxu0 %v2542
      %v2666 = vpop.f32.mrb[0].mxu0
      %v2667 = vadd.f32 0.0, %v2666
      %v2668 = vpop.f32.mrb[0].mxu0
      %v2669 = vpop.f32.mrb[0].mxu0
      %v2670 = vadd.f32 0.0, %v2669
      %v2671 = vpop.f32.mrb[0].mxu0
      %2672 = vmatprep.mubr.bf16.mxu0 0
      %2673 = vmatmul.mubr.bf16.gmra.mrb[0].mxu0 %v2545
      %v2674 = vpop.f32.mrb[0].mxu0
      %v2675 = vadd.f32 0.0, %v2674
      %v2676 = vpop.f32.mrb[0].mxu0
      %v2677 = vpop.f32.mrb[0].mxu0
      %v2678 = vadd.f32 0.0, %v2677
      %v2679 = vpop.f32.mrb[0].mxu0
      %2680 = vmatprep.mubr.bf16.mxu0 0
      %2681 = vmatmul.mubr.bf16.gmra.mrb[0].mxu0 %v2548
      %v2682 = vpop.f32.mrb[0].mxu0
      %v2683 = vadd.f32 0.0, %v2682
      %v2684 = vpop.f32.mrb[0].mxu0
      %v2685 = vpop.f32.mrb[0].mxu0
      %v2686 = vadd.f32 0.0, %v2685
      %v2687 = vpop.f32.mrb[0].mxu0
      %2688 = vmatprep.mubr.bf16.mxu0 0
      %2689 = vmatmul.mubr.bf16.gmra.mrb[0].mxu0 %v2551
      %v2690 = vpop.f32.mrb[0].mxu0
      %v2691 = vadd.f32 0.0, %v2690
      %v2692 = vpop.f32.mrb[0].mxu0
      %v2693 = vpop.f32.mrb[0].mxu0
      %v2694 = vadd.f32 0.0, %v2693
      %v2695 = vpop.f32.mrb[0].mxu0
      %2696 = vmatprep.mubr.bf16.mxu0 0
      %2697 = vmatmul.mubr.bf16.gmra.mrb[0].mxu0 %v2554
      %v2698 = vpop.f32.mrb[0].mxu0
      %v2699 = vadd.f32 0.0, %v2698
      %v2700 = vpop.f32.mrb[0].mxu0
      %v2701 = vpop.f32.mrb[0].mxu0
      %v2702 = vadd.f32 0.0, %v2701
      %v2703 = vpop.f32.mrb[0].mxu0
      %2704 = vmatprep.mubr.bf16.mxu0 0
      %2705 = vmatmul.mubr.bf16.gmra.mrb[0].mxu0 %v2557
      %v2706 = vpop.f32.mrb[0].mxu0
      %v2707 = vadd.f32 0.0, %v2706
      %v2708 = vpop.f32.mrb[0].mxu0
      %v2709 = vpop.f32.mrb[0].mxu0
      %v2710 = vadd.f32 0.0, %v2709
      %v2711 = vpop.f32.mrb[0].mxu0
      %2712 = vmatprep.mubr.bf16.mxu0 0
      %2713 = vmatmul.mubr.bf16.gmra.mrb[0].mxu0 %v2560
      %v2714 = vpop.f32.mrb[0].mxu0
      %v2715 = vadd.f32 0.0, %v2714
      %v2716 = vpop.f32.mrb[0].mxu0
      %v2717 = vpop.f32.mrb[0].mxu0
      %v2718 = vadd.f32 0.0, %v2717
      %v2719 = vpop.f32.mrb[0].mxu0
      %2720 = vmatprep.mubr.bf16.mxu0 0
      %2721 = vmatmul.mubr.bf16.gmra.mrb[0].mxu0 %v2563
      %v2722 = vpop.f32.mrb[0].mxu0
      %v2723 = vadd.f32 0.0, %v2722
      %v2724 = vpop.f32.mrb[0].mxu0
      %v2725 = vpop.f32.mrb[0].mxu0
      %v2726 = vadd.f32 0.0, %v2725
      %v2727 = vpop.f32.mrb[0].mxu0
      %2728 = vdwg.mxu0
      %v2729 = vadd.f32 %v2003, %v2603
      %v2730 = vadd.f32 %v2004, %v2606
      %v2731 = vadd.f32 %v2005, %v2611
      %v2732 = vadd.f32 %v2006, %v2614
      %v2733 = vadd.f32 %v2007, %v2619
      %v2734 = vadd.f32 %v2008, %v2622
      %v2735 = vadd.f32 %v2009, %v2627
      %v2736 = vadd.f32 %v2010, %v2630
      %v2737 = vadd.f32 %v2011, %v2635
      %v2738 = vadd.f32 %v2012, %v2638
      %v2739 = vadd.f32 %v2013, %v2643
      %v2740 = vadd.f32 %v2014, %v2646
      %v2741 = vadd.f32 %v2015, %v2651
      %v2742 = vadd.f32 %v2016, %v2654
      %v2743 = vadd.f32 %v2017, %v2659
      %v2744 = vadd.f32 %v2018, %v2662
      %v2745 = vadd.f32 %v2019, %v2667
      %v2746 = vadd.f32 %v2020, %v2670
      %v2747 = vadd.f32 %v2021, %v2675
      %v2748 = vadd.f32 %v2022, %v2678
      %v2749 = vadd.f32 %v2023, %v2683
      %v2750 = vadd.f32 %v2024, %v2686
      %v2751 = vadd.f32 %v2025, %v2691
      %v2752 = vadd.f32 %v2026, %v2694
      %v2753 = vadd.f32 %v2027, %v2699
      %v2754 = vadd.f32 %v2028, %v2702
      %v2755 = vadd.f32 %v2029, %v2707
      %v2756 = vadd.f32 %v2030, %v2710
      %v2757 = vadd.f32 %v2031, %v2715
      %v2758 = vadd.f32 %v2032, %v2718
      %v2759 = vadd.f32 %v2033, %v2723
      %v2760 = vadd.f32 %v2034, %v2726
      %v2761 = vld [vmem:[%s1676] sm:$0xe]
      %v2762 = vld [vmem:[%s1676 + $0xc] sm:$0xe]
      %v2763 = vld [vmem:[%s1676 + $0x18] sm:$0xe]
      %v2764 = vld [vmem:[%s1676 + $0x24] sm:$0xe]
      %v2765 = vld [vmem:[%s1676 + $0x30] sm:$0xe]
      %v2766 = vld [vmem:[%s1676 + $0x3c] sm:$0xe]
      %v2767 = vld [vmem:[%s1676 + $0x48] sm:$0xe]
      %v2768 = vld [vmem:[%s1676 + $0x54] sm:$0xe]
      %v2769 = vld [vmem:[%s1676 + $0x60] sm:$0xe]
      %v2770 = vld [vmem:[%s1676 + $0x6c] sm:$0xe]
      %v2771 = vld [vmem:[%s1676 + $0x78] sm:$0xe]
      %v2772 = vld [vmem:[%s1676 + $0x84] sm:$0xe]
      %v2773 = vld [vmem:[%s1676 + $0x90] sm:$0xe]
      %v2774 = vld [vmem:[%s1676 + $0x9c] sm:$0xe]
      %v2775 = vld [vmem:[%s1676 + $0xa8] sm:$0xe]
      %v2776 = vld [vmem:[%s1676 + $0xb4] sm:$0xe]
      %v2825 = vrot.slane %v2761, 5
      %v2826 = vrot.slane %v2825, 4
      %v2827 = vrot.slane %v2036, 5
      %v2828 = vsel %vm1269, %v2826, %v2827
      %v2829 = vrot.slane %v2827, 4
      %v2830 = vrot.slane %v2037, 5
      %v2831 = vsel %vm1269, %v2829, %v2830
      %v2832 = vrot.slane %v2762, 5
      %v2833 = vrot.slane %v2832, 4
      %v2834 = vrot.slane %v2039, 5
      %v2835 = vsel %vm1269, %v2833, %v2834
      %v2836 = vrot.slane %v2834, 4
      %v2837 = vrot.slane %v2040, 5
      %v2838 = vsel %vm1269, %v2836, %v2837
      %v2839 = vrot.slane %v2763, 5
      %v2840 = vrot.slane %v2839, 4
      %v2841 = vrot.slane %v2042, 5
      %v2842 = vsel %vm1269, %v2840, %v2841
      %v2843 = vrot.slane %v2841, 4
      %v2844 = vrot.slane %v2043, 5
      %v2845 = vsel %vm1269, %v2843, %v2844
      %v2846 = vrot.slane %v2764, 5
      %v2847 = vrot.slane %v2846, 4
      %v2848 = vrot.slane %v2045, 5
      %v2849 = vsel %vm1269, %v2847, %v2848
      %v2850 = vrot.slane %v2848, 4
      %v2851 = vrot.slane %v2046, 5
      %v2852 = vsel %vm1269, %v2850, %v2851
      %v2853 = vrot.slane %v2765, 5
      %v2854 = vrot.slane %v2853, 4
      %v2855 = vrot.slane %v2048, 5
      %v2856 = vsel %vm1269, %v2854, %v2855
      %v2857 = vrot.slane %v2855, 4
      %v2858 = vrot.slane %v2049, 5
      %v2859 = vsel %vm1269, %v2857, %v2858
      %v2860 = vrot.slane %v2766, 5
      %v2861 = vrot.slane %v2860, 4
      %v2862 = vrot.slane %v2051, 5
      %v2863 = vsel %vm1269, %v2861, %v2862
      %v2864 = vrot.slane %v2862, 4
      %v2865 = vrot.slane %v2052, 5
      %v2866 = vsel %vm1269, %v2864, %v2865
      %v2867 = vrot.slane %v2767, 5
      %v2868 = vrot.slane %v2867, 4
      %v2869 = vrot.slane %v2054, 5
      %v2870 = vsel %vm1269, %v2868, %v2869
      %v2871 = vrot.slane %v2869, 4
      %v2872 = vrot.slane %v2055, 5
      %v2873 = vsel %vm1269, %v2871, %v2872
      %v2874 = vrot.slane %v2768, 5
      %v2875 = vrot.slane %v2874, 4
      %v2876 = vrot.slane %v2057, 5
      %v2877 = vsel %vm1269, %v2875, %v2876
      %v2878 = vrot.slane %v2876, 4
      %v2879 = vrot.slane %v2058, 5
      %v2880 = vsel %vm1269, %v2878, %v2879
      %v2881 = vrot.slane %v2769, 5
      %v2882 = vrot.slane %v2881, 4
      %v2883 = vrot.slane %v2060, 5
      %v2884 = vsel %vm1269, %v2882, %v2883
      %v2885 = vrot.slane %v2883, 4
      %v2886 = vrot.slane %v2061, 5
      %v2887 = vsel %vm1269, %v2885, %v2886
      %v2888 = vrot.slane %v2770, 5
      %v2889 = vrot.slane %v2888, 4
      %v2890 = vrot.slane %v2063, 5
      %v2891 = vsel %vm1269, %v2889, %v2890
      %v2892 = vrot.slane %v2890, 4
      %v2893 = vrot.slane %v2064, 5
      %v2894 = vsel %vm1269, %v2892, %v2893
      %v2895 = vrot.slane %v2771, 5
      %v2896 = vrot.slane %v2895, 4
      %v2897 = vrot.slane %v2066, 5
      %v2898 = vsel %vm1269, %v2896, %v2897
      %v2899 = vrot.slane %v2897, 4
      %v2900 = vrot.slane %v2067, 5
      %v2901 = vsel %vm1269, %v2899, %v2900
      %v2902 = vrot.slane %v2772, 5
      %v2903 = vrot.slane %v2902, 4
      %v2904 = vrot.slane %v2069, 5
      %v2905 = vsel %vm1269, %v2903, %v2904
      %v2906 = vrot.slane %v2904, 4
      %v2907 = vrot.slane %v2070, 5
      %v2908 = vsel %vm1269, %v2906, %v2907
      %v2909 = vrot.slane %v2773, 5
      %v2910 = vrot.slane %v2909, 4
      %v2911 = vrot.slane %v2072, 5
      %v2912 = vsel %vm1269, %v2910, %v2911
      %v2913 = vrot.slane %v2911, 4
      %v2914 = vrot.slane %v2073, 5
      %v2915 = vsel %vm1269, %v2913, %v2914
      %v2916 = vrot.slane %v2774, 5
      %v2917 = vrot.slane %v2916, 4
      %v2918 = vrot.slane %v2075, 5
      %v2919 = vsel %vm1269, %v2917, %v2918
      %v2920 = vrot.slane %v2918, 4
      %v2921 = vrot.slane %v2076, 5
      %v2922 = vsel %vm1269, %v2920, %v2921
      %v2923 = vrot.slane %v2775, 5
      %v2924 = vrot.slane %v2923, 4
      %v2925 = vrot.slane %v2078, 5
      %v2926 = vsel %vm1269, %v2924, %v2925
      %v2927 = vrot.slane %v2925, 4
      %v2928 = vrot.slane %v2079, 5
      %v2929 = vsel %vm1269, %v2927, %v2928
      %v2930 = vrot.slane %v2776, 5
      %v2931 = vrot.slane %v2930, 4
      %v2932 = vrot.slane %v2081, 5
      %v2933 = vsel %vm1269, %v2931, %v2932
      %v2934 = vrot.slane %v2932, 4
      %v2935 = vrot.slane %v2082, 5
      %v2936 = vsel %vm1269, %v2934, %v2935
      %s2937 = scalar_lea.vmem %s1, 10
      %v2938 = vld [vmem:[%s2937] sm:$0x3]
      %v2939 = vunpack.c.l.b16 %v2828
      %v2940 = vunpack.c.l.b16 %v2831
      %v2941 = vunpack.c.l.b16 %v2835
      %v2942 = vunpack.c.l.b16 %v2838
      %v2943 = vunpack.c.l.b16 %v2842
      %v2944 = vunpack.c.l.b16 %v2845
      %v2945 = vunpack.c.l.b16 %v2849
      %v2946 = vunpack.c.l.b16 %v2852
      %v2947 = vunpack.c.l.b16 %v2856
      %v2948 = vunpack.c.l.b16 %v2859
      %v2949 = vunpack.c.l.b16 %v2863
      %v2950 = vunpack.c.l.b16 %v2866
      %v2951 = vunpack.c.l.b16 %v2870
      %v2952 = vunpack.c.l.b16 %v2873
      %v2953 = vunpack.c.l.b16 %v2877
      %v2954 = vunpack.c.l.b16 %v2880
      %v2955 = vunpack.c.l.b16 %v2884
      %v2956 = vunpack.c.l.b16 %v2887
      %v2957 = vunpack.c.l.b16 %v2891
      %v2958 = vunpack.c.l.b16 %v2894
      %v2959 = vunpack.c.l.b16 %v2898
      %v2960 = vunpack.c.l.b16 %v2901
      %v2961 = vunpack.c.l.b16 %v2905
      %v2962 = vunpack.c.l.b16 %v2908
      %v2963 = vunpack.c.l.b16 %v2912
      %v2964 = vunpack.c.l.b16 %v2915
      %v2965 = vunpack.c.l.b16 %v2919
      %v2966 = vunpack.c.l.b16 %v2922
      %v2967 = vunpack.c.l.b16 %v2926
      %v2968 = vunpack.c.l.b16 %v2929
      %v2969 = vunpack.c.l.b16 %v2933
      %v2970 = vunpack.c.l.b16 %v2936
      %v2971 = vpack.c.b16 %v2940, %v2939
      %v2972 = vpack.c.b16 %v2942, %v2941
      %v2973 = vpack.c.b16 %v2944, %v2943
      %v2974 = vpack.c.b16 %v2946, %v2945
      %v2975 = vpack.c.b16 %v2948, %v2947
      %v2976 = vpack.c.b16 %v2950, %v2949
      %v2977 = vpack.c.b16 %v2952, %v2951
      %v2978 = vpack.c.b16 %v2954, %v2953
      %v2979 = vpack.c.b16 %v2956, %v2955
      %v2980 = vpack.c.b16 %v2958, %v2957
      %v2981 = vpack.c.b16 %v2960, %v2959
      %v2982 = vpack.c.b16 %v2962, %v2961
      %v2983 = vpack.c.b16 %v2964, %v2963
      %v2984 = vpack.c.b16 %v2966, %v2965
      %v2985 = vpack.c.b16 %v2968, %v2967
      %v2986 = vpack.c.b16 %v2970, %v2969
      %v2988 = vsel %vm713, %v2971, 0
      %v2991 = vsel %vm713, %v2972, 0
      %v2994 = vsel %vm713, %v2973, 0
      %v2997 = vsel %vm713, %v2974, 0
      %v3000 = vsel %vm713, %v2975, 0
      %v3003 = vsel %vm713, %v2976, 0
      %v3006 = vsel %vm713, %v2977, 0
      %v3009 = vsel %vm713, %v2978, 0
      %v3012 = vsel %vm713, %v2979, 0
      %v3015 = vsel %vm713, %v2980, 0
      %v3018 = vsel %vm713, %v2981, 0
      %v3021 = vsel %vm713, %v2982, 0
      %v3024 = vsel %vm713, %v2983, 0
      %v3027 = vsel %vm713, %v2984, 0
      %v3030 = vsel %vm713, %v2985, 0
      %v3033 = vsel %vm713, %v2986, 0
      %v3036 = vsel %vm762, %v2938, 0
      %3038 = vmatprep.subr.bf16.mxu0 0
      %3039 = vmatpush1.bf16.msra.mxu0 %v3036
      %3040 = vmatprep.subr.bf16.mxu0 0
      %3041 = vmatpush1.bf16.msra.mxu0 0
      %3042 = vmatprep.subr.bf16.mxu0 0
      %3043 = vmatpush1.bf16.msra.mxu0 0
      %3044 = vmatprep.subr.bf16.mxu0 0
      %3045 = vmatpush1.bf16.msra.mxu0 0
      %3046 = vmatprep.subr.bf16.mxu0 0
      %3047 = vmatpush1.bf16.msra.mxu0 0
      %3048 = vmatprep.subr.bf16.mxu0 0
      %3049 = vmatpush1.bf16.msra.mxu0 0
      %3050 = vmatprep.subr.bf16.mxu0 0
      %3051 = vmatpush1.bf16.msra.mxu0 0
      %3052 = vmatprep.subr.bf16.mxu0 0
      %3053 = vmatpush1.bf16.msra.mxu0 0
      %3054 = vmatprep.subr.bf16.mxu0 0
      %3055 = vmatpush1.bf16.msra.mxu0 0
      %3056 = vmatprep.subr.bf16.mxu0 0
      %3057 = vmatpush1.bf16.msra.mxu0 0
      %3058 = vmatprep.subr.bf16.mxu0 0
      %3059 = vmatpush1.bf16.msra.mxu0 0
      %3060 = vmatprep.subr.bf16.mxu0 0
      %3061 = vmatpush1.bf16.msra.mxu0 0
      %3062 = vmatprep.subr.bf16.mxu0 0
      %3063 = vmatpush1.bf16.msra.mxu0 0
      %3064 = vmatprep.subr.bf16.mxu0 0
      %3065 = vmatpush1.bf16.msra.mxu0 0
      %3066 = vmatprep.subr.bf16.mxu0 0
      %3067 = vmatpush1.bf16.msra.mxu0 0
      %3068 = vmatprep.subr.bf16.mxu0 0
      %3069 = vmatpush1.bf16.msra.mxu0 0
      %3070 = vmatprep.mubr.bf16.mxu0 0
      %3071 = vmatmul.mubr.bf16.gmra.mrb[0].mxu0 %v2988
      %v3072 = vpop.f32.mrb[0].mxu0
      %v3073 = vadd.f32 0.0, %v3072
      %v3074 = vpop.f32.mrb[0].mxu0
      %v3075 = vpop.f32.mrb[0].mxu0
      %v3076 = vadd.f32 0.0, %v3075
      %v3077 = vpop.f32.mrb[0].mxu0
      %3078 = vmatprep.mubr.bf16.mxu0 0
      %3079 = vmatmul.mubr.bf16.gmra.mrb[0].mxu0 %v2991
      %v3080 = vpop.f32.mrb[0].mxu0
      %v3081 = vadd.f32 0.0, %v3080
      %v3082 = vpop.f32.mrb[0].mxu0
      %v3083 = vpop.f32.mrb[0].mxu0
      %v3084 = vadd.f32 0.0, %v3083
      %v3085 = vpop.f32.mrb[0].mxu0
      %3086 = vmatprep.mubr.bf16.mxu0 0
      %3087 = vmatmul.mubr.bf16.gmra.mrb[0].mxu0 %v2994
      %v3088 = vpop.f32.mrb[0].mxu0
      %v3089 = vadd.f32 0.0, %v3088
      %v3090 = vpop.f32.mrb[0].mxu0
      %v3091 = vpop.f32.mrb[0].mxu0
      %v3092 = vadd.f32 0.0, %v3091
      %v3093 = vpop.f32.mrb[0].mxu0
      %3094 = vmatprep.mubr.bf16.mxu0 0
      %3095 = vmatmul.mubr.bf16.gmra.mrb[0].mxu0 %v2997
      %v3096 = vpop.f32.mrb[0].mxu0
      %v3097 = vadd.f32 0.0, %v3096
      %v3098 = vpop.f32.mrb[0].mxu0
      %v3099 = vpop.f32.mrb[0].mxu0
      %v3100 = vadd.f32 0.0, %v3099
      %v3101 = vpop.f32.mrb[0].mxu0
      %3102 = vmatprep.mubr.bf16.mxu0 0
      %3103 = vmatmul.mubr.bf16.gmra.mrb[0].mxu0 %v3000
      %v3104 = vpop.f32.mrb[0].mxu0
      %v3105 = vadd.f32 0.0, %v3104
      %v3106 = vpop.f32.mrb[0].mxu0
      %v3107 = vpop.f32.mrb[0].mxu0
      %v3108 = vadd.f32 0.0, %v3107
      %v3109 = vpop.f32.mrb[0].mxu0
      %3110 = vmatprep.mubr.bf16.mxu0 0
      %3111 = vmatmul.mubr.bf16.gmra.mrb[0].mxu0 %v3003
      %v3112 = vpop.f32.mrb[0].mxu0
      %v3113 = vadd.f32 0.0, %v3112
      %v3114 = vpop.f32.mrb[0].mxu0
      %v3115 = vpop.f32.mrb[0].mxu0
      %v3116 = vadd.f32 0.0, %v3115
      %v3117 = vpop.f32.mrb[0].mxu0
      %3118 = vmatprep.mubr.bf16.mxu0 0
      %3119 = vmatmul.mubr.bf16.gmra.mrb[0].mxu0 %v3006
      %v3120 = vpop.f32.mrb[0].mxu0
      %v3121 = vadd.f32 0.0, %v3120
      %v3122 = vpop.f32.mrb[0].mxu0
      %v3123 = vpop.f32.mrb[0].mxu0
      %v3124 = vadd.f32 0.0, %v3123
      %v3125 = vpop.f32.mrb[0].mxu0
      %3126 = vmatprep.mubr.bf16.mxu0 0
      %3127 = vmatmul.mubr.bf16.gmra.mrb[0].mxu0 %v3009
      %v3128 = vpop.f32.mrb[0].mxu0
      %v3129 = vadd.f32 0.0, %v3128
      %v3130 = vpop.f32.mrb[0].mxu0
      %v3131 = vpop.f32.mrb[0].mxu0
      %v3132 = vadd.f32 0.0, %v3131
      %v3133 = vpop.f32.mrb[0].mxu0
      %3134 = vmatprep.mubr.bf16.mxu0 0
      %3135 = vmatmul.mubr.bf16.gmra.mrb[0].mxu0 %v3012
      %v3136 = vpop.f32.mrb[0].mxu0
      %v3137 = vadd.f32 0.0, %v3136
      %v3138 = vpop.f32.mrb[0].mxu0
      %v3139 = vpop.f32.mrb[0].mxu0
      %v3140 = vadd.f32 0.0, %v3139
      %v3141 = vpop.f32.mrb[0].mxu0
      %3142 = vmatprep.mubr.bf16.mxu0 0
      %3143 = vmatmul.mubr.bf16.gmra.mrb[0].mxu0 %v3015
      %v3144 = vpop.f32.mrb[0].mxu0
      %v3145 = vadd.f32 0.0, %v3144
      %v3146 = vpop.f32.mrb[0].mxu0
      %v3147 = vpop.f32.mrb[0].mxu0
      %v3148 = vadd.f32 0.0, %v3147
      %v3149 = vpop.f32.mrb[0].mxu0
      %3150 = vmatprep.mubr.bf16.mxu0 0
      %3151 = vmatmul.mubr.bf16.gmra.mrb[0].mxu0 %v3018
      %v3152 = vpop.f32.mrb[0].mxu0
      %v3153 = vadd.f32 0.0, %v3152
      %v3154 = vpop.f32.mrb[0].mxu0
      %v3155 = vpop.f32.mrb[0].mxu0
      %v3156 = vadd.f32 0.0, %v3155
      %v3157 = vpop.f32.mrb[0].mxu0
      %3158 = vmatprep.mubr.bf16.mxu0 0
      %3159 = vmatmul.mubr.bf16.gmra.mrb[0].mxu0 %v3021
      %v3160 = vpop.f32.mrb[0].mxu0
      %v3161 = vadd.f32 0.0, %v3160
      %v3162 = vpop.f32.mrb[0].mxu0
      %v3163 = vpop.f32.mrb[0].mxu0
      %v3164 = vadd.f32 0.0, %v3163
      %v3165 = vpop.f32.mrb[0].mxu0
      %3166 = vmatprep.mubr.bf16.mxu0 0
      %3167 = vmatmul.mubr.bf16.gmra.mrb[0].mxu0 %v3024
      %v3168 = vpop.f32.mrb[0].mxu0
      %v3169 = vadd.f32 0.0, %v3168
      %v3170 = vpop.f32.mrb[0].mxu0
      %v3171 = vpop.f32.mrb[0].mxu0
      %v3172 = vadd.f32 0.0, %v3171
      %v3173 = vpop.f32.mrb[0].mxu0
      %3174 = vmatprep.mubr.bf16.mxu0 0
      %3175 = vmatmul.mubr.bf16.gmra.mrb[0].mxu0 %v3027
      %v3176 = vpop.f32.mrb[0].mxu0
      %v3177 = vadd.f32 0.0, %v3176
      %v3178 = vpop.f32.mrb[0].mxu0
      %v3179 = vpop.f32.mrb[0].mxu0
      %v3180 = vadd.f32 0.0, %v3179
      %v3181 = vpop.f32.mrb[0].mxu0
      %3182 = vmatprep.mubr.bf16.mxu0 0
      %3183 = vmatmul.mubr.bf16.gmra.mrb[0].mxu0 %v3030
      %v3184 = vpop.f32.mrb[0].mxu0
      %v3185 = vadd.f32 0.0, %v3184
      %v3186 = vpop.f32.mrb[0].mxu0
      %v3187 = vpop.f32.mrb[0].mxu0
      %v3188 = vadd.f32 0.0, %v3187
      %v3189 = vpop.f32.mrb[0].mxu0
      %3190 = vmatprep.mubr.bf16.mxu0 0
      %3191 = vmatmul.mubr.bf16.gmra.mrb[0].mxu0 %v3033
      %v3192 = vpop.f32.mrb[0].mxu0
      %v3193 = vadd.f32 0.0, %v3192
      %v3194 = vpop.f32.mrb[0].mxu0
      %v3195 = vpop.f32.mrb[0].mxu0
      %v3196 = vadd.f32 0.0, %v3195
      %v3197 = vpop.f32.mrb[0].mxu0
      %3198 = vdwg.mxu0
      %v3199 = vadd.f32 %v2729, %v3073
      %v3200 = vadd.f32 %v2730, %v3076
      %v3201 = vadd.f32 %v2731, %v3081
      %v3202 = vadd.f32 %v2732, %v3084
      %v3203 = vadd.f32 %v2733, %v3089
      %v3204 = vadd.f32 %v2734, %v3092
      %v3205 = vadd.f32 %v2735, %v3097
      %v3206 = vadd.f32 %v2736, %v3100
      %v3207 = vadd.f32 %v2737, %v3105
      %v3208 = vadd.f32 %v2738, %v3108
      %v3209 = vadd.f32 %v2739, %v3113
      %v3210 = vadd.f32 %v2740, %v3116
      %v3211 = vadd.f32 %v2741, %v3121
      %v3212 = vadd.f32 %v2742, %v3124
      %v3213 = vadd.f32 %v2743, %v3129
      %v3214 = vadd.f32 %v2744, %v3132
      %v3215 = vadd.f32 %v2745, %v3137
      %v3216 = vadd.f32 %v2746, %v3140
      %v3217 = vadd.f32 %v2747, %v3145
      %v3218 = vadd.f32 %v2748, %v3148
      %v3219 = vadd.f32 %v2749, %v3153
      %v3220 = vadd.f32 %v2750, %v3156
      %v3221 = vadd.f32 %v2751, %v3161
      %v3222 = vadd.f32 %v2752, %v3164
      %v3223 = vadd.f32 %v2753, %v3169
      %v3224 = vadd.f32 %v2754, %v3172
      %v3225 = vadd.f32 %v2755, %v3177
      %v3226 = vadd.f32 %v2756, %v3180
      %v3227 = vadd.f32 %v2757, %v3185
      %v3228 = vadd.f32 %v2758, %v3188
      %v3229 = vadd.f32 %v2759, %v3193
      %v3230 = vadd.f32 %v2760, %v3196
      %s3231 = scalar_lea.vmem %s219, 24
      %v3232 = vld [vmem:[%s3231] sm:$0xf]
      %v3233 = vld [vmem:[%s3231 + $0x4] sm:$0xf]
      %v3234 = vld [vmem:[%s3231 + $0xc] sm:$0xf]
      %v3235 = vld [vmem:[%s3231 + $0x10] sm:$0xf]
      %v3236 = vld [vmem:[%s3231 + $0x18] sm:$0xf]
      %v3237 = vld [vmem:[%s3231 + $0x1c] sm:$0xf]
      %v3238 = vld [vmem:[%s3231 + $0x24] sm:$0xf]
      %v3239 = vld [vmem:[%s3231 + $0x28] sm:$0xf]
      %v3240 = vld [vmem:[%s3231 + $0x30] sm:$0xf]
      %v3241 = vld [vmem:[%s3231 + $0x34] sm:$0xf]
      %v3242 = vld [vmem:[%s3231 + $0x3c] sm:$0xf]
      %v3243 = vld [vmem:[%s3231 + $0x40] sm:$0xf]
      %v3244 = vld [vmem:[%s3231 + $0x48] sm:$0xf]
      %v3245 = vld [vmem:[%s3231 + $0x4c] sm:$0xf]
      %v3246 = vld [vmem:[%s3231 + $0x54] sm:$0xf]
      %v3247 = vld [vmem:[%s3231 + $0x58] sm:$0xf]
      %v3248 = vld [vmem:[%s3231 + $0x60] sm:$0xf]
      %v3249 = vld [vmem:[%s3231 + $0x64] sm:$0xf]
      %v3250 = vld [vmem:[%s3231 + $0x6c] sm:$0xf]
      %v3251 = vld [vmem:[%s3231 + $0x70] sm:$0xf]
      %v3252 = vld [vmem:[%s3231 + $0x78] sm:$0xf]
      %v3253 = vld [vmem:[%s3231 + $0x7c] sm:$0xf]
      %v3254 = vld [vmem:[%s3231 + $0x84] sm:$0xf]
      %v3255 = vld [vmem:[%s3231 + $0x88] sm:$0xf]
      %v3256 = vld [vmem:[%s3231 + $0x90] sm:$0xf]
      %v3257 = vld [vmem:[%s3231 + $0x94] sm:$0xf]
      %v3258 = vld [vmem:[%s3231 + $0x9c] sm:$0xf]
      %v3259 = vld [vmem:[%s3231 + $0xa0] sm:$0xf]
      %v3260 = vld [vmem:[%s3231 + $0xa8] sm:$0xf]
      %v3261 = vld [vmem:[%s3231 + $0xac] sm:$0xf]
      %v3262 = vld [vmem:[%s3231 + $0xb4] sm:$0xf]
      %v3263 = vld [vmem:[%s3231 + $0xb8] sm:$0xf]
      %s3264 = scalar_lea.vmem %s1, 12
      %v3265 = vld [vmem:[%s3264] sm:$0x3]
      %v3298 = vunpack.c.l.b16 %v3232
      %v3299 = vunpack.c.l.b16 %v3233
      %v3300 = vunpack.c.l.b16 %v3234
      %v3301 = vunpack.c.l.b16 %v3235
      %v3302 = vunpack.c.l.b16 %v3236
      %v3303 = vunpack.c.l.b16 %v3237
      %v3304 = vunpack.c.l.b16 %v3238
      %v3305 = vunpack.c.l.b16 %v3239
      %v3306 = vunpack.c.l.b16 %v3240
      %v3307 = vunpack.c.l.b16 %v3241
      %v3308 = vunpack.c.l.b16 %v3242
      %v3309 = vunpack.c.l.b16 %v3243
      %v3310 = vunpack.c.l.b16 %v3244
      %v3311 = vunpack.c.l.b16 %v3245
      %v3312 = vunpack.c.l.b16 %v3246
      %v3313 = vunpack.c.l.b16 %v3247
      %v3314 = vunpack.c.l.b16 %v3248
      %v3315 = vunpack.c.l.b16 %v3249
      %v3316 = vunpack.c.l.b16 %v3250
      %v3317 = vunpack.c.l.b16 %v3251
      %v3318 = vunpack.c.l.b16 %v3252
      %v3319 = vunpack.c.l.b16 %v3253
      %v3320 = vunpack.c.l.b16 %v3254
      %v3321 = vunpack.c.l.b16 %v3255
      %v3322 = vunpack.c.l.b16 %v3256
      %v3323 = vunpack.c.l.b16 %v3257
      %v3324 = vunpack.c.l.b16 %v3258
      %v3325 = vunpack.c.l.b16 %v3259
      %v3326 = vunpack.c.l.b16 %v3260
      %v3327 = vunpack.c.l.b16 %v3261
      %v3328 = vunpack.c.l.b16 %v3262
      %v3329 = vunpack.c.l.b16 %v3263
      %v3330 = vpack.c.b16 %v3299, %v3298
      %v3331 = vpack.c.b16 %v3301, %v3300
      %v3332 = vpack.c.b16 %v3303, %v3302
      %v3333 = vpack.c.b16 %v3305, %v3304
      %v3334 = vpack.c.b16 %v3307, %v3306
      %v3335 = vpack.c.b16 %v3309, %v3308
      %v3336 = vpack.c.b16 %v3311, %v3310
      %v3337 = vpack.c.b16 %v3313, %v3312
      %v3338 = vpack.c.b16 %v3315, %v3314
      %v3339 = vpack.c.b16 %v3317, %v3316
      %v3340 = vpack.c.b16 %v3319, %v3318
      %v3341 = vpack.c.b16 %v3321, %v3320
      %v3342 = vpack.c.b16 %v3323, %v3322
      %v3343 = vpack.c.b16 %v3325, %v3324
      %v3344 = vpack.c.b16 %v3327, %v3326
      %v3345 = vpack.c.b16 %v3329, %v3328
      %v3347 = vsel %vm713, %v3330, 0
      %v3350 = vsel %vm713, %v3331, 0
      %v3353 = vsel %vm713, %v3332, 0
      %v3356 = vsel %vm713, %v3333, 0
      %v3359 = vsel %vm713, %v3334, 0
      %v3362 = vsel %vm713, %v3335, 0
      %v3365 = vsel %vm713, %v3336, 0
      %v3368 = vsel %vm713, %v3337, 0
      %v3371 = vsel %vm713, %v3338, 0
      %v3374 = vsel %vm713, %v3339, 0
      %v3377 = vsel %vm713, %v3340, 0
      %v3380 = vsel %vm713, %v3341, 0
      %v3383 = vsel %vm713, %v3342, 0
      %v3386 = vsel %vm713, %v3343, 0
      %v3389 = vsel %vm713, %v3344, 0
      %v3392 = vsel %vm713, %v3345, 0
      %v3395 = vsel %vm762, %v3265, 0
      %3397 = vmatprep.subr.bf16.mxu0 0
      %3398 = vmatpush1.bf16.msra.mxu0 %v3395
      %3399 = vmatprep.subr.bf16.mxu0 0
      %3400 = vmatpush1.bf16.msra.mxu0 0
      %3401 = vmatprep.subr.bf16.mxu0 0
      %3402 = vmatpush1.bf16.msra.mxu0 0
      %3403 = vmatprep.subr.bf16.mxu0 0
      %3404 = vmatpush1.bf16.msra.mxu0 0
      %3405 = vmatprep.subr.bf16.mxu0 0
      %3406 = vmatpush1.bf16.msra.mxu0 0
      %3407 = vmatprep.subr.bf16.mxu0 0
      %3408 = vmatpush1.bf16.msra.mxu0 0
      %3409 = vmatprep.subr.bf16.mxu0 0
      %3410 = vmatpush1.bf16.msra.mxu0 0
      %3411 = vmatprep.subr.bf16.mxu0 0
      %3412 = vmatpush1.bf16.msra.mxu0 0
      %3413 = vmatprep.subr.bf16.mxu0 0
      %3414 = vmatpush1.bf16.msra.mxu0 0
      %3415 = vmatprep.subr.bf16.mxu0 0
      %3416 = vmatpush1.bf16.msra.mxu0 0
      %3417 = vmatprep.subr.bf16.mxu0 0
      %3418 = vmatpush1.bf16.msra.mxu0 0
      %3419 = vmatprep.subr.bf16.mxu0 0
      %3420 = vmatpush1.bf16.msra.mxu0 0
      %3421 = vmatprep.subr.bf16.mxu0 0
      %3422 = vmatpush1.bf16.msra.mxu0 0
      %3423 = vmatprep.subr.bf16.mxu0 0
      %3424 = vmatpush1.bf16.msra.mxu0 0
      %3425 = vmatprep.subr.bf16.mxu0 0
      %3426 = vmatpush1.bf16.msra.mxu0 0
      %3427 = vmatprep.subr.bf16.mxu0 0
      %3428 = vmatpush1.bf16.msra.mxu0 0
      %3429 = vmatprep.mubr.bf16.mxu0 0
      %3430 = vmatmul.mubr.bf16.gmra.mrb[0].mxu0 %v3347
      %v3431 = vpop.f32.mrb[0].mxu0
      %v3432 = vadd.f32 0.0, %v3431
      %v3433 = vpop.f32.mrb[0].mxu0
      %v3434 = vpop.f32.mrb[0].mxu0
      %v3435 = vadd.f32 0.0, %v3434
      %v3436 = vpop.f32.mrb[0].mxu0
      %3437 = vmatprep.mubr.bf16.mxu0 0
      %3438 = vmatmul.mubr.bf16.gmra.mrb[0].mxu0 %v3350
      %v3439 = vpop.f32.mrb[0].mxu0
      %v3440 = vadd.f32 0.0, %v3439
      %v3441 = vpop.f32.mrb[0].mxu0
      %v3442 = vpop.f32.mrb[0].mxu0
      %v3443 = vadd.f32 0.0, %v3442
      %v3444 = vpop.f32.mrb[0].mxu0
      %3445 = vmatprep.mubr.bf16.mxu0 0
      %3446 = vmatmul.mubr.bf16.gmra.mrb[0].mxu0 %v3353
      %v3447 = vpop.f32.mrb[0].mxu0
      %v3448 = vadd.f32 0.0, %v3447
      %v3449 = vpop.f32.mrb[0].mxu0
      %v3450 = vpop.f32.mrb[0].mxu0
      %v3451 = vadd.f32 0.0, %v3450
      %v3452 = vpop.f32.mrb[0].mxu0
      %3453 = vmatprep.mubr.bf16.mxu0 0
      %3454 = vmatmul.mubr.bf16.gmra.mrb[0].mxu0 %v3356
      %v3455 = vpop.f32.mrb[0].mxu0
      %v3456 = vadd.f32 0.0, %v3455
      %v3457 = vpop.f32.mrb[0].mxu0
      %v3458 = vpop.f32.mrb[0].mxu0
      %v3459 = vadd.f32 0.0, %v3458
      %v3460 = vpop.f32.mrb[0].mxu0
      %3461 = vmatprep.mubr.bf16.mxu0 0
      %3462 = vmatmul.mubr.bf16.gmra.mrb[0].mxu0 %v3359
      %v3463 = vpop.f32.mrb[0].mxu0
      %v3464 = vadd.f32 0.0, %v3463
      %v3465 = vpop.f32.mrb[0].mxu0
      %v3466 = vpop.f32.mrb[0].mxu0
      %v3467 = vadd.f32 0.0, %v3466
      %v3468 = vpop.f32.mrb[0].mxu0
      %3469 = vmatprep.mubr.bf16.mxu0 0
      %3470 = vmatmul.mubr.bf16.gmra.mrb[0].mxu0 %v3362
      %v3471 = vpop.f32.mrb[0].mxu0
      %v3472 = vadd.f32 0.0, %v3471
      %v3473 = vpop.f32.mrb[0].mxu0
      %v3474 = vpop.f32.mrb[0].mxu0
      %v3475 = vadd.f32 0.0, %v3474
      %v3476 = vpop.f32.mrb[0].mxu0
      %3477 = vmatprep.mubr.bf16.mxu0 0
      %3478 = vmatmul.mubr.bf16.gmra.mrb[0].mxu0 %v3365
      %v3479 = vpop.f32.mrb[0].mxu0
      %v3480 = vadd.f32 0.0, %v3479
      %v3481 = vpop.f32.mrb[0].mxu0
      %v3482 = vpop.f32.mrb[0].mxu0
      %v3483 = vadd.f32 0.0, %v3482
      %v3484 = vpop.f32.mrb[0].mxu0
      %3485 = vmatprep.mubr.bf16.mxu0 0
      %3486 = vmatmul.mubr.bf16.gmra.mrb[0].mxu0 %v3368
      %v3487 = vpop.f32.mrb[0].mxu0
      %v3488 = vadd.f32 0.0, %v3487
      %v3489 = vpop.f32.mrb[0].mxu0
      %v3490 = vpop.f32.mrb[0].mxu0
      %v3491 = vadd.f32 0.0, %v3490
      %v3492 = vpop.f32.mrb[0].mxu0
      %3493 = vmatprep.mubr.bf16.mxu0 0
      %3494 = vmatmul.mubr.bf16.gmra.mrb[0].mxu0 %v3371
      %v3495 = vpop.f32.mrb[0].mxu0
      %v3496 = vadd.f32 0.0, %v3495
      %v3497 = vpop.f32.mrb[0].mxu0
      %v3498 = vpop.f32.mrb[0].mxu0
      %v3499 = vadd.f32 0.0, %v3498
      %v3500 = vpop.f32.mrb[0].mxu0
      %3501 = vmatprep.mubr.bf16.mxu0 0
      %3502 = vmatmul.mubr.bf16.gmra.mrb[0].mxu0 %v3374
      %v3503 = vpop.f32.mrb[0].mxu0
      %v3504 = vadd.f32 0.0, %v3503
      %v3505 = vpop.f32.mrb[0].mxu0
      %v3506 = vpop.f32.mrb[0].mxu0
      %v3507 = vadd.f32 0.0, %v3506
      %v3508 = vpop.f32.mrb[0].mxu0
      %3509 = vmatprep.mubr.bf16.mxu0 0
      %3510 = vmatmul.mubr.bf16.gmra.mrb[0].mxu0 %v3377
      %v3511 = vpop.f32.mrb[0].mxu0
      %v3512 = vadd.f32 0.0, %v3511
      %v3513 = vpop.f32.mrb[0].mxu0
      %v3514 = vpop.f32.mrb[0].mxu0
      %v3515 = vadd.f32 0.0, %v3514
      %v3516 = vpop.f32.mrb[0].mxu0
      %3517 = vmatprep.mubr.bf16.mxu0 0
      %3518 = vmatmul.mubr.bf16.gmra.mrb[0].mxu0 %v3380
      %v3519 = vpop.f32.mrb[0].mxu0
      %v3520 = vadd.f32 0.0, %v3519
      %v3521 = vpop.f32.mrb[0].mxu0
      %v3522 = vpop.f32.mrb[0].mxu0
      %v3523 = vadd.f32 0.0, %v3522
      %v3524 = vpop.f32.mrb[0].mxu0
      %3525 = vmatprep.mubr.bf16.mxu0 0
      %3526 = vmatmul.mubr.bf16.gmra.mrb[0].mxu0 %v3383
      %v3527 = vpop.f32.mrb[0].mxu0
      %v3528 = vadd.f32 0.0, %v3527
      %v3529 = vpop.f32.mrb[0].mxu0
      %v3530 = vpop.f32.mrb[0].mxu0
      %v3531 = vadd.f32 0.0, %v3530
      %v3532 = vpop.f32.mrb[0].mxu0
      %3533 = vmatprep.mubr.bf16.mxu0 0
      %3534 = vmatmul.mubr.bf16.gmra.mrb[0].mxu0 %v3386
      %v3535 = vpop.f32.mrb[0].mxu0
      %v3536 = vadd.f32 0.0, %v3535
      %v3537 = vpop.f32.mrb[0].mxu0
      %v3538 = vpop.f32.mrb[0].mxu0
      %v3539 = vadd.f32 0.0, %v3538
      %v3540 = vpop.f32.mrb[0].mxu0
      %3541 = vmatprep.mubr.bf16.mxu0 0
      %3542 = vmatmul.mubr.bf16.gmra.mrb[0].mxu0 %v3389
      %v3543 = vpop.f32.mrb[0].mxu0
      %v3544 = vadd.f32 0.0, %v3543
      %v3545 = vpop.f32.mrb[0].mxu0
      %v3546 = vpop.f32.mrb[0].mxu0
      %v3547 = vadd.f32 0.0, %v3546
      %v3548 = vpop.f32.mrb[0].mxu0
      %3549 = vmatprep.mubr.bf16.mxu0 0
      %3550 = vmatmul.mubr.bf16.gmra.mrb[0].mxu0 %v3392
      %v3551 = vpop.f32.mrb[0].mxu0
      %v3552 = vadd.f32 0.0, %v3551
      %v3553 = vpop.f32.mrb[0].mxu0
      %v3554 = vpop.f32.mrb[0].mxu0
      %v3555 = vadd.f32 0.0, %v3554
      %v3556 = vpop.f32.mrb[0].mxu0
      %3557 = vdwg.mxu0
      %v3558 = vadd.f32 %v3199, %v3432
      %v3559 = vadd.f32 %v3200, %v3435
      %v3560 = vadd.f32 %v3201, %v3440
      %v3561 = vadd.f32 %v3202, %v3443
      %v3562 = vadd.f32 %v3203, %v3448
      %v3563 = vadd.f32 %v3204, %v3451
      %v3564 = vadd.f32 %v3205, %v3456
      %v3565 = vadd.f32 %v3206, %v3459
      %v3566 = vadd.f32 %v3207, %v3464
      %v3567 = vadd.f32 %v3208, %v3467
      %v3568 = vadd.f32 %v3209, %v3472
      %v3569 = vadd.f32 %v3210, %v3475
      %v3570 = vadd.f32 %v3211, %v3480
      %v3571 = vadd.f32 %v3212, %v3483
      %v3572 = vadd.f32 %v3213, %v3488
      %v3573 = vadd.f32 %v3214, %v3491
      %v3574 = vadd.f32 %v3215, %v3496
      %v3575 = vadd.f32 %v3216, %v3499
      %v3576 = vadd.f32 %v3217, %v3504
      %v3577 = vadd.f32 %v3218, %v3507
      %v3578 = vadd.f32 %v3219, %v3512
      %v3579 = vadd.f32 %v3220, %v3515
      %v3580 = vadd.f32 %v3221, %v3520
      %v3581 = vadd.f32 %v3222, %v3523
      %v3582 = vadd.f32 %v3223, %v3528
      %v3583 = vadd.f32 %v3224, %v3531
      %v3584 = vadd.f32 %v3225, %v3536
      %v3585 = vadd.f32 %v3226, %v3539
      %v3586 = vadd.f32 %v3227, %v3544
      %v3587 = vadd.f32 %v3228, %v3547
      %v3588 = vadd.f32 %v3229, %v3552
      %v3589 = vadd.f32 %v3230, %v3555
      %v3590 = vld [vmem:[%s3231] sm:$0xf]
      %v3591 = vld [vmem:[%s3231 + $0x4] sm:$0xf]
      %v3592 = vld [vmem:[%s3231 + $0x8] sm:$0x1]
      %v3593 = vld [vmem:[%s3231 + $0xc] sm:$0xf]
      %v3594 = vld [vmem:[%s3231 + $0x10] sm:$0xf]
      %v3595 = vld [vmem:[%s3231 + $0x14] sm:$0x1]
      %v3596 = vld [vmem:[%s3231 + $0x18] sm:$0xf]
      %v3597 = vld [vmem:[%s3231 + $0x1c] sm:$0xf]
      %v3598 = vld [vmem:[%s3231 + $0x20] sm:$0x1]
      %v3599 = vld [vmem:[%s3231 + $0x24] sm:$0xf]
      %v3600 = vld [vmem:[%s3231 + $0x28] sm:$0xf]
      %v3601 = vld [vmem:[%s3231 + $0x2c] sm:$0x1]
      %v3602 = vld [vmem:[%s3231 + $0x30] sm:$0xf]
      %v3603 = vld [vmem:[%s3231 + $0x34] sm:$0xf]
      %v3604 = vld [vmem:[%s3231 + $0x38] sm:$0x1]
      %v3605 = vld [vmem:[%s3231 + $0x3c] sm:$0xf]
      %v3606 = vld [vmem:[%s3231 + $0x40] sm:$0xf]
      %v3607 = vld [vmem:[%s3231 + $0x44] sm:$0x1]
      %v3608 = vld [vmem:[%s3231 + $0x48] sm:$0xf]
      %v3609 = vld [vmem:[%s3231 + $0x4c] sm:$0xf]
      %v3610 = vld [vmem:[%s3231 + $0x50] sm:$0x1]
      %v3611 = vld [vmem:[%s3231 + $0x54] sm:$0xf]
      %v3612 = vld [vmem:[%s3231 + $0x58] sm:$0xf]
      %v3613 = vld [vmem:[%s3231 + $0x5c] sm:$0x1]
      %v3614 = vld [vmem:[%s3231 + $0x60] sm:$0xf]
      %v3615 = vld [vmem:[%s3231 + $0x64] sm:$0xf]
      %v3616 = vld [vmem:[%s3231 + $0x68] sm:$0x1]
      %v3617 = vld [vmem:[%s3231 + $0x6c] sm:$0xf]
      %v3618 = vld [vmem:[%s3231 + $0x70] sm:$0xf]
      %v3619 = vld [vmem:[%s3231 + $0x74] sm:$0x1]
      %v3620 = vld [vmem:[%s3231 + $0x78] sm:$0xf]
      %v3621 = vld [vmem:[%s3231 + $0x7c] sm:$0xf]
      %v3622 = vld [vmem:[%s3231 + $0x80] sm:$0x1]
      %v3623 = vld [vmem:[%s3231 + $0x84] sm:$0xf]
      %v3624 = vld [vmem:[%s3231 + $0x88] sm:$0xf]
      %v3625 = vld [vmem:[%s3231 + $0x8c] sm:$0x1]
      %v3626 = vld [vmem:[%s3231 + $0x90] sm:$0xf]
      %v3627 = vld [vmem:[%s3231 + $0x94] sm:$0xf]
      %v3628 = vld [vmem:[%s3231 + $0x98] sm:$0x1]
      %v3629 = vld [vmem:[%s3231 + $0x9c] sm:$0xf]
      %v3630 = vld [vmem:[%s3231 + $0xa0] sm:$0xf]
      %v3631 = vld [vmem:[%s3231 + $0xa4] sm:$0x1]
      %v3632 = vld [vmem:[%s3231 + $0xa8] sm:$0xf]
      %v3633 = vld [vmem:[%s3231 + $0xac] sm:$0xf]
      %v3634 = vld [vmem:[%s3231 + $0xb0] sm:$0x1]
      %v3635 = vld [vmem:[%s3231 + $0xb4] sm:$0xf]
      %v3636 = vld [vmem:[%s3231 + $0xb8] sm:$0xf]
      %v3637 = vld [vmem:[%s3231 + $0xbc] sm:$0x1]
      %v3639 = vshrl.u32 %v3590, 16
      %v3641 = vrot.slane %v3639, 4
      %v3642 = vshll.u32 %v3590, 16
      %v3644 = vrot.slane %v3642, 5
      %v3645 = vor.u32 %v3641, %v3644
      %v3646 = vrot.slane %v3645, 4
      %v3648 = vshll.u32 %v3591, 16
      %v3650 = vrot.slane %v3648, 5
      %v3651 = vsel %vm278, %v3646, %v3650
      %v3652 = vshrl.u32 %v3591, 16
      %v3654 = vrot.slane %v3652, 4
      %v3655 = vor.u32 %v3654, %v3650
      %v3656 = vrot.slane %v3655, 4
      %v3658 = vshll.u32 %v3592, 16
      %v3660 = vrot.slane %v3658, 5
      %v3661 = vsel %vm278, %v3656, %v3660
      %v3663 = vshrl.u32 %v3593, 16
      %v3665 = vrot.slane %v3663, 4
      %v3666 = vshll.u32 %v3593, 16
      %v3668 = vrot.slane %v3666, 5
      %v3669 = vor.u32 %v3665, %v3668
      %v3670 = vrot.slane %v3669, 4
      %v3672 = vshll.u32 %v3594, 16
      %v3674 = vrot.slane %v3672, 5
      %v3675 = vsel %vm278, %v3670, %v3674
      %v3676 = vshrl.u32 %v3594, 16
      %v3678 = vrot.slane %v3676, 4
      %v3679 = vor.u32 %v3678, %v3674
      %v3680 = vrot.slane %v3679, 4
      %v3682 = vshll.u32 %v3595, 16
      %v3684 = vrot.slane %v3682, 5
      %v3685 = vsel %vm278, %v3680, %v3684
      %v3687 = vshrl.u32 %v3596, 16
      %v3689 = vrot.slane %v3687, 4
      %v3690 = vshll.u32 %v3596, 16
      %v3692 = vrot.slane %v3690, 5
      %v3693 = vor.u32 %v3689, %v3692
      %v3694 = vrot.slane %v3693, 4
      %v3696 = vshll.u32 %v3597, 16
      %v3698 = vrot.slane %v3696, 5
      %v3699 = vsel %vm278, %v3694, %v3698
      %v3700 = vshrl.u32 %v3597, 16
      %v3702 = vrot.slane %v3700, 4
      %v3703 = vor.u32 %v3702, %v3698
      %v3704 = vrot.slane %v3703, 4
      %v3706 = vshll.u32 %v3598, 16
      %v3708 = vrot.slane %v3706, 5
      %v3709 = vsel %vm278, %v3704, %v3708
      %v3711 = vshrl.u32 %v3599, 16
      %v3713 = vrot.slane %v3711, 4
      %v3714 = vshll.u32 %v3599, 16
      %v3716 = vrot.slane %v3714, 5
      %v3717 = vor.u32 %v3713, %v3716
      %v3718 = vrot.slane %v3717, 4
      %v3720 = vshll.u32 %v3600, 16
      %v3722 = vrot.slane %v3720, 5
      %v3723 = vsel %vm278, %v3718, %v3722
      %v3724 = vshrl.u32 %v3600, 16
      %v3726 = vrot.slane %v3724, 4
      %v3727 = vor.u32 %v3726, %v3722
      %v3728 = vrot.slane %v3727, 4
      %v3730 = vshll.u32 %v3601, 16
      %v3732 = vrot.slane %v3730, 5
      %v3733 = vsel %vm278, %v3728, %v3732
      %v3735 = vshrl.u32 %v3602, 16
      %v3737 = vrot.slane %v3735, 4
      %v3738 = vshll.u32 %v3602, 16
      %v3740 = vrot.slane %v3738, 5
      %v3741 = vor.u32 %v3737, %v3740
      %v3742 = vrot.slane %v3741, 4
      %v3744 = vshll.u32 %v3603, 16
      %v3746 = vrot.slane %v3744, 5
      %v3747 = vsel %vm278, %v3742, %v3746
      %v3748 = vshrl.u32 %v3603, 16
      %v3750 = vrot.slane %v3748, 4
      %v3751 = vor.u32 %v3750, %v3746
      %v3752 = vrot.slane %v3751, 4
      %v3754 = vshll.u32 %v3604, 16
      %v3756 = vrot.slane %v3754, 5
      %v3757 = vsel %vm278, %v3752, %v3756
      %v3759 = vshrl.u32 %v3605, 16
      %v3761 = vrot.slane %v3759, 4
      %v3762 = vshll.u32 %v3605, 16
      %v3764 = vrot.slane %v3762, 5
      %v3765 = vor.u32 %v3761, %v3764
      %v3766 = vrot.slane %v3765, 4
      %v3768 = vshll.u32 %v3606, 16
      %v3770 = vrot.slane %v3768, 5
      %v3771 = vsel %vm278, %v3766, %v3770
      %v3772 = vshrl.u32 %v3606, 16
      %v3774 = vrot.slane %v3772, 4
      %v3775 = vor.u32 %v3774, %v3770
      %v3776 = vrot.slane %v3775, 4
      %v3778 = vshll.u32 %v3607, 16
      %v3780 = vrot.slane %v3778, 5
      %v3781 = vsel %vm278, %v3776, %v3780
      %v3783 = vshrl.u32 %v3608, 16
      %v3785 = vrot.slane %v3783, 4
      %v3786 = vshll.u32 %v3608, 16
      %v3788 = vrot.slane %v3786, 5
      %v3789 = vor.u32 %v3785, %v3788
      %v3790 = vrot.slane %v3789, 4
      %v3792 = vshll.u32 %v3609, 16
      %v3794 = vrot.slane %v3792, 5
      %v3795 = vsel %vm278, %v3790, %v3794
      %v3796 = vshrl.u32 %v3609, 16
      %v3798 = vrot.slane %v3796, 4
      %v3799 = vor.u32 %v3798, %v3794
      %v3800 = vrot.slane %v3799, 4
      %v3802 = vshll.u32 %v3610, 16
      %v3804 = vrot.slane %v3802, 5
      %v3805 = vsel %vm278, %v3800, %v3804
      %v3807 = vshrl.u32 %v3611, 16
      %v3809 = vrot.slane %v3807, 4
      %v3810 = vshll.u32 %v3611, 16
      %v3812 = vrot.slane %v3810, 5
      %v3813 = vor.u32 %v3809, %v3812
      %v3814 = vrot.slane %v3813, 4
      %v3816 = vshll.u32 %v3612, 16
      %v3818 = vrot.slane %v3816, 5
      %v3819 = vsel %vm278, %v3814, %v3818
      %v3820 = vshrl.u32 %v3612, 16
      %v3822 = vrot.slane %v3820, 4
      %v3823 = vor.u32 %v3822, %v3818
      %v3824 = vrot.slane %v3823, 4
      %v3826 = vshll.u32 %v3613, 16
      %v3828 = vrot.slane %v3826, 5
      %v3829 = vsel %vm278, %v3824, %v3828
      %v3831 = vshrl.u32 %v3614, 16
      %v3833 = vrot.slane %v3831, 4
      %v3834 = vshll.u32 %v3614, 16
      %v3836 = vrot.slane %v3834, 5
      %v3837 = vor.u32 %v3833, %v3836
      %v3838 = vrot.slane %v3837, 4
      %v3840 = vshll.u32 %v3615, 16
      %v3842 = vrot.slane %v3840, 5
      %v3843 = vsel %vm278, %v3838, %v3842
      %v3844 = vshrl.u32 %v3615, 16
      %v3846 = vrot.slane %v3844, 4
      %v3847 = vor.u32 %v3846, %v3842
      %v3848 = vrot.slane %v3847, 4
      %v3850 = vshll.u32 %v3616, 16
      %v3852 = vrot.slane %v3850, 5
      %v3853 = vsel %vm278, %v3848, %v3852
      %v3855 = vshrl.u32 %v3617, 16
      %v3857 = vrot.slane %v3855, 4
      %v3858 = vshll.u32 %v3617, 16
      %v3860 = vrot.slane %v3858, 5
      %v3861 = vor.u32 %v3857, %v3860
      %v3862 = vrot.slane %v3861, 4
      %v3864 = vshll.u32 %v3618, 16
      %v3866 = vrot.slane %v3864, 5
      %v3867 = vsel %vm278, %v3862, %v3866
      %v3868 = vshrl.u32 %v3618, 16
      %v3870 = vrot.slane %v3868, 4
      %v3871 = vor.u32 %v3870, %v3866
      %v3872 = vrot.slane %v3871, 4
      %v3874 = vshll.u32 %v3619, 16
      %v3876 = vrot.slane %v3874, 5
      %v3877 = vsel %vm278, %v3872, %v3876
      %v3879 = vshrl.u32 %v3620, 16
      %v3881 = vrot.slane %v3879, 4
      %v3882 = vshll.u32 %v3620, 16
      %v3884 = vrot.slane %v3882, 5
      %v3885 = vor.u32 %v3881, %v3884
      %v3886 = vrot.slane %v3885, 4
      %v3888 = vshll.u32 %v3621, 16
      %v3890 = vrot.slane %v3888, 5
      %v3891 = vsel %vm278, %v3886, %v3890
      %v3892 = vshrl.u32 %v3621, 16
      %v3894 = vrot.slane %v3892, 4
      %v3895 = vor.u32 %v3894, %v3890
      %v3896 = vrot.slane %v3895, 4
      %v3898 = vshll.u32 %v3622, 16
      %v3900 = vrot.slane %v3898, 5
      %v3901 = vsel %vm278, %v3896, %v3900
      %v3903 = vshrl.u32 %v3623, 16
      %v3905 = vrot.slane %v3903, 4
      %v3906 = vshll.u32 %v3623, 16
      %v3908 = vrot.slane %v3906, 5
      %v3909 = vor.u32 %v3905, %v3908
      %v3910 = vrot.slane %v3909, 4
      %v3912 = vshll.u32 %v3624, 16
      %v3914 = vrot.slane %v3912, 5
      %v3915 = vsel %vm278, %v3910, %v3914
      %v3916 = vshrl.u32 %v3624, 16
      %v3918 = vrot.slane %v3916, 4
      %v3919 = vor.u32 %v3918, %v3914
      %v3920 = vrot.slane %v3919, 4
      %v3922 = vshll.u32 %v3625, 16
      %v3924 = vrot.slane %v3922, 5
      %v3925 = vsel %vm278, %v3920, %v3924
      %v3927 = vshrl.u32 %v3626, 16
      %v3929 = vrot.slane %v3927, 4
      %v3930 = vshll.u32 %v3626, 16
      %v3932 = vrot.slane %v3930, 5
      %v3933 = vor.u32 %v3929, %v3932
      %v3934 = vrot.slane %v3933, 4
      %v3936 = vshll.u32 %v3627, 16
      %v3938 = vrot.slane %v3936, 5
      %v3939 = vsel %vm278, %v3934, %v3938
      %v3940 = vshrl.u32 %v3627, 16
      %v3942 = vrot.slane %v3940, 4
      %v3943 = vor.u32 %v3942, %v3938
      %v3944 = vrot.slane %v3943, 4
      %v3946 = vshll.u32 %v3628, 16
      %v3948 = vrot.slane %v3946, 5
      %v3949 = vsel %vm278, %v3944, %v3948
      %v3951 = vshrl.u32 %v3629, 16
      %v3953 = vrot.slane %v3951, 4
      %v3954 = vshll.u32 %v3629, 16
      %v3956 = vrot.slane %v3954, 5
      %v3957 = vor.u32 %v3953, %v3956
      %v3958 = vrot.slane %v3957, 4
      %v3960 = vshll.u32 %v3630, 16
      %v3962 = vrot.slane %v3960, 5
      %v3963 = vsel %vm278, %v3958, %v3962
      %v3964 = vshrl.u32 %v3630, 16
      %v3966 = vrot.slane %v3964, 4
      %v3967 = vor.u32 %v3966, %v3962
      %v3968 = vrot.slane %v3967, 4
      %v3970 = vshll.u32 %v3631, 16
      %v3972 = vrot.slane %v3970, 5
      %v3973 = vsel %vm278, %v3968, %v3972
      %v3975 = vshrl.u32 %v3632, 16
      %v3977 = vrot.slane %v3975, 4
      %v3978 = vshll.u32 %v3632, 16
      %v3980 = vrot.slane %v3978, 5
      %v3981 = vor.u32 %v3977, %v3980
      %v3982 = vrot.slane %v3981, 4
      %v3984 = vshll.u32 %v3633, 16
      %v3986 = vrot.slane %v3984, 5
      %v3987 = vsel %vm278, %v3982, %v3986
      %v3988 = vshrl.u32 %v3633, 16
      %v3990 = vrot.slane %v3988, 4
      %v3991 = vor.u32 %v3990, %v3986
      %v3992 = vrot.slane %v3991, 4
      %v3994 = vshll.u32 %v3634, 16
      %v3996 = vrot.slane %v3994, 5
      %v3997 = vsel %vm278, %v3992, %v3996
      %v3999 = vshrl.u32 %v3635, 16
      %v4001 = vrot.slane %v3999, 4
      %v4002 = vshll.u32 %v3635, 16
      %v4004 = vrot.slane %v4002, 5
      %v4005 = vor.u32 %v4001, %v4004
      %v4006 = vrot.slane %v4005, 4
      %v4008 = vshll.u32 %v3636, 16
      %v4010 = vrot.slane %v4008, 5
      %v4011 = vsel %vm278, %v4006, %v4010
      %v4012 = vshrl.u32 %v3636, 16
      %v4014 = vrot.slane %v4012, 4
      %v4015 = vor.u32 %v4014, %v4010
      %v4016 = vrot.slane %v4015, 4
      %v4018 = vshll.u32 %v3637, 16
      %v4020 = vrot.slane %v4018, 5
      %v4021 = vsel %vm278, %v4016, %v4020
      %s4022 = scalar_lea.vmem %s1, 14
      %v4023 = vld [vmem:[%s4022] sm:$0x3]
      %v4024 = vunpack.c.l.b16 %v3651
      %v4025 = vunpack.c.l.b16 %v3661
      %v4026 = vunpack.c.l.b16 %v3675
      %v4027 = vunpack.c.l.b16 %v3685
      %v4028 = vunpack.c.l.b16 %v3699
      %v4029 = vunpack.c.l.b16 %v3709
      %v4030 = vunpack.c.l.b16 %v3723
      %v4031 = vunpack.c.l.b16 %v3733
      %v4032 = vunpack.c.l.b16 %v3747
      %v4033 = vunpack.c.l.b16 %v3757
      %v4034 = vunpack.c.l.b16 %v3771
      %v4035 = vunpack.c.l.b16 %v3781
      %v4036 = vunpack.c.l.b16 %v3795
      %v4037 = vunpack.c.l.b16 %v3805
      %v4038 = vunpack.c.l.b16 %v3819
      %v4039 = vunpack.c.l.b16 %v3829
      %v4040 = vunpack.c.l.b16 %v3843
      %v4041 = vunpack.c.l.b16 %v3853
      %v4042 = vunpack.c.l.b16 %v3867
      %v4043 = vunpack.c.l.b16 %v3877
      %v4044 = vunpack.c.l.b16 %v3891
      %v4045 = vunpack.c.l.b16 %v3901
      %v4046 = vunpack.c.l.b16 %v3915
      %v4047 = vunpack.c.l.b16 %v3925
      %v4048 = vunpack.c.l.b16 %v3939
      %v4049 = vunpack.c.l.b16 %v3949
      %v4050 = vunpack.c.l.b16 %v3963
      %v4051 = vunpack.c.l.b16 %v3973
      %v4052 = vunpack.c.l.b16 %v3987
      %v4053 = vunpack.c.l.b16 %v3997
      %v4054 = vunpack.c.l.b16 %v4011
      %v4055 = vunpack.c.l.b16 %v4021
      %v4056 = vpack.c.b16 %v4025, %v4024
      %v4057 = vpack.c.b16 %v4027, %v4026
      %v4058 = vpack.c.b16 %v4029, %v4028
      %v4059 = vpack.c.b16 %v4031, %v4030
      %v4060 = vpack.c.b16 %v4033, %v4032
      %v4061 = vpack.c.b16 %v4035, %v4034
      %v4062 = vpack.c.b16 %v4037, %v4036
      %v4063 = vpack.c.b16 %v4039, %v4038
      %v4064 = vpack.c.b16 %v4041, %v4040
      %v4065 = vpack.c.b16 %v4043, %v4042
      %v4066 = vpack.c.b16 %v4045, %v4044
      %v4067 = vpack.c.b16 %v4047, %v4046
      %v4068 = vpack.c.b16 %v4049, %v4048
      %v4069 = vpack.c.b16 %v4051, %v4050
      %v4070 = vpack.c.b16 %v4053, %v4052
      %v4071 = vpack.c.b16 %v4055, %v4054
      %v4073 = vsel %vm713, %v4056, 0
      %v4076 = vsel %vm713, %v4057, 0
      %v4079 = vsel %vm713, %v4058, 0
      %v4082 = vsel %vm713, %v4059, 0
      %v4085 = vsel %vm713, %v4060, 0
      %v4088 = vsel %vm713, %v4061, 0
      %v4091 = vsel %vm713, %v4062, 0
      %v4094 = vsel %vm713, %v4063, 0
      %v4097 = vsel %vm713, %v4064, 0
      %v4100 = vsel %vm713, %v4065, 0
      %v4103 = vsel %vm713, %v4066, 0
      %v4106 = vsel %vm713, %v4067, 0
      %v4109 = vsel %vm713, %v4068, 0
      %v4112 = vsel %vm713, %v4069, 0
      %v4115 = vsel %vm713, %v4070, 0
      %v4118 = vsel %vm713, %v4071, 0
      %v4121 = vsel %vm762, %v4023, 0
      %4123 = vmatprep.subr.bf16.mxu0 0
      %4124 = vmatpush1.bf16.msra.mxu0 %v4121
      %4125 = vmatprep.subr.bf16.mxu0 0
      %4126 = vmatpush1.bf16.msra.mxu0 0
      %4127 = vmatprep.subr.bf16.mxu0 0
      %4128 = vmatpush1.bf16.msra.mxu0 0
      %4129 = vmatprep.subr.bf16.mxu0 0
      %4130 = vmatpush1.bf16.msra.mxu0 0
      %4131 = vmatprep.subr.bf16.mxu0 0
      %4132 = vmatpush1.bf16.msra.mxu0 0
      %4133 = vmatprep.subr.bf16.mxu0 0
      %4134 = vmatpush1.bf16.msra.mxu0 0
      %4135 = vmatprep.subr.bf16.mxu0 0
      %4136 = vmatpush1.bf16.msra.mxu0 0
      %4137 = vmatprep.subr.bf16.mxu0 0
      %4138 = vmatpush1.bf16.msra.mxu0 0
      %4139 = vmatprep.subr.bf16.mxu0 0
      %4140 = vmatpush1.bf16.msra.mxu0 0
      %4141 = vmatprep.subr.bf16.mxu0 0
      %4142 = vmatpush1.bf16.msra.mxu0 0
      %4143 = vmatprep.subr.bf16.mxu0 0
      %4144 = vmatpush1.bf16.msra.mxu0 0
      %4145 = vmatprep.subr.bf16.mxu0 0
      %4146 = vmatpush1.bf16.msra.mxu0 0
      %4147 = vmatprep.subr.bf16.mxu0 0
      %4148 = vmatpush1.bf16.msra.mxu0 0
      %4149 = vmatprep.subr.bf16.mxu0 0
      %4150 = vmatpush1.bf16.msra.mxu0 0
      %4151 = vmatprep.subr.bf16.mxu0 0
      %4152 = vmatpush1.bf16.msra.mxu0 0
      %4153 = vmatprep.subr.bf16.mxu0 0
      %4154 = vmatpush1.bf16.msra.mxu0 0
      %4155 = vmatprep.mubr.bf16.mxu0 0
      %4156 = vmatmul.mubr.bf16.gmra.mrb[0].mxu0 %v4073
      %v4157 = vpop.f32.mrb[0].mxu0
      %v4158 = vadd.f32 0.0, %v4157
      %v4159 = vpop.f32.mrb[0].mxu0
      %v4160 = vpop.f32.mrb[0].mxu0
      %v4161 = vadd.f32 0.0, %v4160
      %v4162 = vpop.f32.mrb[0].mxu0
      %4163 = vmatprep.mubr.bf16.mxu0 0
      %4164 = vmatmul.mubr.bf16.gmra.mrb[0].mxu0 %v4076
      %v4165 = vpop.f32.mrb[0].mxu0
      %v4166 = vadd.f32 0.0, %v4165
      %v4167 = vpop.f32.mrb[0].mxu0
      %v4168 = vpop.f32.mrb[0].mxu0
      %v4169 = vadd.f32 0.0, %v4168
      %v4170 = vpop.f32.mrb[0].mxu0
      %4171 = vmatprep.mubr.bf16.mxu0 0
      %4172 = vmatmul.mubr.bf16.gmra.mrb[0].mxu0 %v4079
      %v4173 = vpop.f32.mrb[0].mxu0
      %v4174 = vadd.f32 0.0, %v4173
      %v4175 = vpop.f32.mrb[0].mxu0
      %v4176 = vpop.f32.mrb[0].mxu0
      %v4177 = vadd.f32 0.0, %v4176
      %v4178 = vpop.f32.mrb[0].mxu0
      %4179 = vmatprep.mubr.bf16.mxu0 0
      %4180 = vmatmul.mubr.bf16.gmra.mrb[0].mxu0 %v4082
      %v4181 = vpop.f32.mrb[0].mxu0
      %v4182 = vadd.f32 0.0, %v4181
      %v4183 = vpop.f32.mrb[0].mxu0
      %v4184 = vpop.f32.mrb[0].mxu0
      %v4185 = vadd.f32 0.0, %v4184
      %v4186 = vpop.f32.mrb[0].mxu0
      %4187 = vmatprep.mubr.bf16.mxu0 0
      %4188 = vmatmul.mubr.bf16.gmra.mrb[0].mxu0 %v4085
      %v4189 = vpop.f32.mrb[0].mxu0
      %v4190 = vadd.f32 0.0, %v4189
      %v4191 = vpop.f32.mrb[0].mxu0
      %v4192 = vpop.f32.mrb[0].mxu0
      %v4193 = vadd.f32 0.0, %v4192
      %v4194 = vpop.f32.mrb[0].mxu0
      %4195 = vmatprep.mubr.bf16.mxu0 0
      %4196 = vmatmul.mubr.bf16.gmra.mrb[0].mxu0 %v4088
      %v4197 = vpop.f32.mrb[0].mxu0
      %v4198 = vadd.f32 0.0, %v4197
      %v4199 = vpop.f32.mrb[0].mxu0
      %v4200 = vpop.f32.mrb[0].mxu0
      %v4201 = vadd.f32 0.0, %v4200
      %v4202 = vpop.f32.mrb[0].mxu0
      %4203 = vmatprep.mubr.bf16.mxu0 0
      %4204 = vmatmul.mubr.bf16.gmra.mrb[0].mxu0 %v4091
      %v4205 = vpop.f32.mrb[0].mxu0
      %v4206 = vadd.f32 0.0, %v4205
      %v4207 = vpop.f32.mrb[0].mxu0
      %v4208 = vpop.f32.mrb[0].mxu0
      %v4209 = vadd.f32 0.0, %v4208
      %v4210 = vpop.f32.mrb[0].mxu0
      %4211 = vmatprep.mubr.bf16.mxu0 0
      %4212 = vmatmul.mubr.bf16.gmra.mrb[0].mxu0 %v4094
      %v4213 = vpop.f32.mrb[0].mxu0
      %v4214 = vadd.f32 0.0, %v4213
      %v4215 = vpop.f32.mrb[0].mxu0
      %v4216 = vpop.f32.mrb[0].mxu0
      %v4217 = vadd.f32 0.0, %v4216
      %v4218 = vpop.f32.mrb[0].mxu0
      %4219 = vmatprep.mubr.bf16.mxu0 0
      %4220 = vmatmul.mubr.bf16.gmra.mrb[0].mxu0 %v4097
      %v4221 = vpop.f32.mrb[0].mxu0
      %v4222 = vadd.f32 0.0, %v4221
      %v4223 = vpop.f32.mrb[0].mxu0
      %v4224 = vpop.f32.mrb[0].mxu0
      %v4225 = vadd.f32 0.0, %v4224
      %v4226 = vpop.f32.mrb[0].mxu0
      %4227 = vmatprep.mubr.bf16.mxu0 0
      %4228 = vmatmul.mubr.bf16.gmra.mrb[0].mxu0 %v4100
      %v4229 = vpop.f32.mrb[0].mxu0
      %v4230 = vadd.f32 0.0, %v4229
      %v4231 = vpop.f32.mrb[0].mxu0
      %v4232 = vpop.f32.mrb[0].mxu0
      %v4233 = vadd.f32 0.0, %v4232
      %v4234 = vpop.f32.mrb[0].mxu0
      %4235 = vmatprep.mubr.bf16.mxu0 0
      %4236 = vmatmul.mubr.bf16.gmra.mrb[0].mxu0 %v4103
      %v4237 = vpop.f32.mrb[0].mxu0
      %v4238 = vadd.f32 0.0, %v4237
      %v4239 = vpop.f32.mrb[0].mxu0
      %v4240 = vpop.f32.mrb[0].mxu0
      %v4241 = vadd.f32 0.0, %v4240
      %v4242 = vpop.f32.mrb[0].mxu0
      %4243 = vmatprep.mubr.bf16.mxu0 0
      %4244 = vmatmul.mubr.bf16.gmra.mrb[0].mxu0 %v4106
      %v4245 = vpop.f32.mrb[0].mxu0
      %v4246 = vadd.f32 0.0, %v4245
      %v4247 = vpop.f32.mrb[0].mxu0
      %v4248 = vpop.f32.mrb[0].mxu0
      %v4249 = vadd.f32 0.0, %v4248
      %v4250 = vpop.f32.mrb[0].mxu0
      %4251 = vmatprep.mubr.bf16.mxu0 0
      %4252 = vmatmul.mubr.bf16.gmra.mrb[0].mxu0 %v4109
      %v4253 = vpop.f32.mrb[0].mxu0
      %v4254 = vadd.f32 0.0, %v4253
      %v4255 = vpop.f32.mrb[0].mxu0
      %v4256 = vpop.f32.mrb[0].mxu0
      %v4257 = vadd.f32 0.0, %v4256
      %v4258 = vpop.f32.mrb[0].mxu0
      %4259 = vmatprep.mubr.bf16.mxu0 0
      %4260 = vmatmul.mubr.bf16.gmra.mrb[0].mxu0 %v4112
      %v4261 = vpop.f32.mrb[0].mxu0
      %v4262 = vadd.f32 0.0, %v4261
      %v4263 = vpop.f32.mrb[0].mxu0
      %v4264 = vpop.f32.mrb[0].mxu0
      %v4265 = vadd.f32 0.0, %v4264
      %v4266 = vpop.f32.mrb[0].mxu0
      %4267 = vmatprep.mubr.bf16.mxu0 0
      %4268 = vmatmul.mubr.bf16.gmra.mrb[0].mxu0 %v4115
      %v4269 = vpop.f32.mrb[0].mxu0
      %v4270 = vadd.f32 0.0, %v4269
      %v4271 = vpop.f32.mrb[0].mxu0
      %v4272 = vpop.f32.mrb[0].mxu0
      %v4273 = vadd.f32 0.0, %v4272
      %v4274 = vpop.f32.mrb[0].mxu0
      %4275 = vmatprep.mubr.bf16.mxu0 0
      %4276 = vmatmul.mubr.bf16.gmra.mrb[0].mxu0 %v4118
      %v4277 = vpop.f32.mrb[0].mxu0
      %v4278 = vadd.f32 0.0, %v4277
      %v4279 = vpop.f32.mrb[0].mxu0
      %v4280 = vpop.f32.mrb[0].mxu0
      %v4281 = vadd.f32 0.0, %v4280
      %v4282 = vpop.f32.mrb[0].mxu0
      %4283 = vdwg.mxu0
      %v4284 = vadd.f32 %v3558, %v4158
      %v4285 = vadd.f32 %v3559, %v4161
      %v4286 = vadd.f32 %v3560, %v4166
      %v4287 = vadd.f32 %v3561, %v4169
      %v4288 = vadd.f32 %v3562, %v4174
      %v4289 = vadd.f32 %v3563, %v4177
      %v4290 = vadd.f32 %v3564, %v4182
      %v4291 = vadd.f32 %v3565, %v4185
      %v4292 = vadd.f32 %v3566, %v4190
      %v4293 = vadd.f32 %v3567, %v4193
      %v4294 = vadd.f32 %v3568, %v4198
      %v4295 = vadd.f32 %v3569, %v4201
      %v4296 = vadd.f32 %v3570, %v4206
      %v4297 = vadd.f32 %v3571, %v4209
      %v4298 = vadd.f32 %v3572, %v4214
      %v4299 = vadd.f32 %v3573, %v4217
      %v4300 = vadd.f32 %v3574, %v4222
      %v4301 = vadd.f32 %v3575, %v4225
      %v4302 = vadd.f32 %v3576, %v4230
      %v4303 = vadd.f32 %v3577, %v4233
      %v4304 = vadd.f32 %v3578, %v4238
      %v4305 = vadd.f32 %v3579, %v4241
      %v4306 = vadd.f32 %v3580, %v4246
      %v4307 = vadd.f32 %v3581, %v4249
      %v4308 = vadd.f32 %v3582, %v4254
      %v4309 = vadd.f32 %v3583, %v4257
      %v4310 = vadd.f32 %v3584, %v4262
      %v4311 = vadd.f32 %v3585, %v4265
      %v4312 = vadd.f32 %v3586, %v4270
      %v4313 = vadd.f32 %v3587, %v4273
      %v4314 = vadd.f32 %v3588, %v4278
      %v4315 = vadd.f32 %v3589, %v4281
      %v4316 = vld [vmem:[%s3231] sm:$0xe]
      %v4317 = vld [vmem:[%s3231 + $0xc] sm:$0xe]
      %v4318 = vld [vmem:[%s3231 + $0x18] sm:$0xe]
      %v4319 = vld [vmem:[%s3231 + $0x24] sm:$0xe]
      %v4320 = vld [vmem:[%s3231 + $0x30] sm:$0xe]
      %v4321 = vld [vmem:[%s3231 + $0x3c] sm:$0xe]
      %v4322 = vld [vmem:[%s3231 + $0x48] sm:$0xe]
      %v4323 = vld [vmem:[%s3231 + $0x54] sm:$0xe]
      %v4324 = vld [vmem:[%s3231 + $0x60] sm:$0xe]
      %v4325 = vld [vmem:[%s3231 + $0x6c] sm:$0xe]
      %v4326 = vld [vmem:[%s3231 + $0x78] sm:$0xe]
      %v4327 = vld [vmem:[%s3231 + $0x84] sm:$0xe]
      %v4328 = vld [vmem:[%s3231 + $0x90] sm:$0xe]
      %v4329 = vld [vmem:[%s3231 + $0x9c] sm:$0xe]
      %v4330 = vld [vmem:[%s3231 + $0xa8] sm:$0xe]
      %v4331 = vld [vmem:[%s3231 + $0xb4] sm:$0xe]
      %v4380 = vrot.slane %v4316, 5
      %v4381 = vrot.slane %v4380, 4
      %v4382 = vrot.slane %v3591, 5
      %v4383 = vsel %vm1269, %v4381, %v4382
      %v4384 = vrot.slane %v4382, 4
      %v4385 = vrot.slane %v3592, 5
      %v4386 = vsel %vm1269, %v4384, %v4385
      %v4387 = vrot.slane %v4317, 5
      %v4388 = vrot.slane %v4387, 4
      %v4389 = vrot.slane %v3594, 5
      %v4390 = vsel %vm1269, %v4388, %v4389
      %v4391 = vrot.slane %v4389, 4
      %v4392 = vrot.slane %v3595, 5
      %v4393 = vsel %vm1269, %v4391, %v4392
      %v4394 = vrot.slane %v4318, 5
      %v4395 = vrot.slane %v4394, 4
      %v4396 = vrot.slane %v3597, 5
      %v4397 = vsel %vm1269, %v4395, %v4396
      %v4398 = vrot.slane %v4396, 4
      %v4399 = vrot.slane %v3598, 5
      %v4400 = vsel %vm1269, %v4398, %v4399
      %v4401 = vrot.slane %v4319, 5
      %v4402 = vrot.slane %v4401, 4
      %v4403 = vrot.slane %v3600, 5
      %v4404 = vsel %vm1269, %v4402, %v4403
      %v4405 = vrot.slane %v4403, 4
      %v4406 = vrot.slane %v3601, 5
      %v4407 = vsel %vm1269, %v4405, %v4406
      %v4408 = vrot.slane %v4320, 5
      %v4409 = vrot.slane %v4408, 4
      %v4410 = vrot.slane %v3603, 5
      %v4411 = vsel %vm1269, %v4409, %v4410
      %v4412 = vrot.slane %v4410, 4
      %v4413 = vrot.slane %v3604, 5
      %v4414 = vsel %vm1269, %v4412, %v4413
      %v4415 = vrot.slane %v4321, 5
      %v4416 = vrot.slane %v4415, 4
      %v4417 = vrot.slane %v3606, 5
      %v4418 = vsel %vm1269, %v4416, %v4417
      %v4419 = vrot.slane %v4417, 4
      %v4420 = vrot.slane %v3607, 5
      %v4421 = vsel %vm1269, %v4419, %v4420
      %v4422 = vrot.slane %v4322, 5
      %v4423 = vrot.slane %v4422, 4
      %v4424 = vrot.slane %v3609, 5
      %v4425 = vsel %vm1269, %v4423, %v4424
      %v4426 = vrot.slane %v4424, 4
      %v4427 = vrot.slane %v3610, 5
      %v4428 = vsel %vm1269, %v4426, %v4427
      %v4429 = vrot.slane %v4323, 5
      %v4430 = vrot.slane %v4429, 4
      %v4431 = vrot.slane %v3612, 5
      %v4432 = vsel %vm1269, %v4430, %v4431
      %v4433 = vrot.slane %v4431, 4
      %v4434 = vrot.slane %v3613, 5
      %v4435 = vsel %vm1269, %v4433, %v4434
      %v4436 = vrot.slane %v4324, 5
      %v4437 = vrot.slane %v4436, 4
      %v4438 = vrot.slane %v3615, 5
      %v4439 = vsel %vm1269, %v4437, %v4438
      %v4440 = vrot.slane %v4438, 4
      %v4441 = vrot.slane %v3616, 5
      %v4442 = vsel %vm1269, %v4440, %v4441
      %v4443 = vrot.slane %v4325, 5
      %v4444 = vrot.slane %v4443, 4
      %v4445 = vrot.slane %v3618, 5
      %v4446 = vsel %vm1269, %v4444, %v4445
      %v4447 = vrot.slane %v4445, 4
      %v4448 = vrot.slane %v3619, 5
      %v4449 = vsel %vm1269, %v4447, %v4448
      %v4450 = vrot.slane %v4326, 5
      %v4451 = vrot.slane %v4450, 4
      %v4452 = vrot.slane %v3621, 5
      %v4453 = vsel %vm1269, %v4451, %v4452
      %v4454 = vrot.slane %v4452, 4
      %v4455 = vrot.slane %v3622, 5
      %v4456 = vsel %vm1269, %v4454, %v4455
      %v4457 = vrot.slane %v4327, 5
      %v4458 = vrot.slane %v4457, 4
      %v4459 = vrot.slane %v3624, 5
      %v4460 = vsel %vm1269, %v4458, %v4459
      %v4461 = vrot.slane %v4459, 4
      %v4462 = vrot.slane %v3625, 5
      %v4463 = vsel %vm1269, %v4461, %v4462
      %v4464 = vrot.slane %v4328, 5
      %v4465 = vrot.slane %v4464, 4
      %v4466 = vrot.slane %v3627, 5
      %v4467 = vsel %vm1269, %v4465, %v4466
      %v4468 = vrot.slane %v4466, 4
      %v4469 = vrot.slane %v3628, 5
      %v4470 = vsel %vm1269, %v4468, %v4469
      %v4471 = vrot.slane %v4329, 5
      %v4472 = vrot.slane %v4471, 4
      %v4473 = vrot.slane %v3630, 5
      %v4474 = vsel %vm1269, %v4472, %v4473
      %v4475 = vrot.slane %v4473, 4
      %v4476 = vrot.slane %v3631, 5
      %v4477 = vsel %vm1269, %v4475, %v4476
      %v4478 = vrot.slane %v4330, 5
      %v4479 = vrot.slane %v4478, 4
      %v4480 = vrot.slane %v3633, 5
      %v4481 = vsel %vm1269, %v4479, %v4480
      %v4482 = vrot.slane %v4480, 4
      %v4483 = vrot.slane %v3634, 5
      %v4484 = vsel %vm1269, %v4482, %v4483
      %v4485 = vrot.slane %v4331, 5
      %v4486 = vrot.slane %v4485, 4
      %v4487 = vrot.slane %v3636, 5
      %v4488 = vsel %vm1269, %v4486, %v4487
      %v4489 = vrot.slane %v4487, 4
      %v4490 = vrot.slane %v3637, 5
      %v4491 = vsel %vm1269, %v4489, %v4490
      %s4492 = scalar_lea.vmem %s1, 16
      %v4493 = vld [vmem:[%s4492] sm:$0x3]
      %v4494 = vunpack.c.l.b16 %v4383
      %v4495 = vunpack.c.l.b16 %v4386
      %v4496 = vunpack.c.l.b16 %v4390
      %v4497 = vunpack.c.l.b16 %v4393
      %v4498 = vunpack.c.l.b16 %v4397
      %v4499 = vunpack.c.l.b16 %v4400
      %v4500 = vunpack.c.l.b16 %v4404
      %v4501 = vunpack.c.l.b16 %v4407
      %v4502 = vunpack.c.l.b16 %v4411
      %v4503 = vunpack.c.l.b16 %v4414
      %v4504 = vunpack.c.l.b16 %v4418
      %v4505 = vunpack.c.l.b16 %v4421
      %v4506 = vunpack.c.l.b16 %v4425
      %v4507 = vunpack.c.l.b16 %v4428
      %v4508 = vunpack.c.l.b16 %v4432
      %v4509 = vunpack.c.l.b16 %v4435
      %v4510 = vunpack.c.l.b16 %v4439
      %v4511 = vunpack.c.l.b16 %v4442
      %v4512 = vunpack.c.l.b16 %v4446
      %v4513 = vunpack.c.l.b16 %v4449
      %v4514 = vunpack.c.l.b16 %v4453
      %v4515 = vunpack.c.l.b16 %v4456
      %v4516 = vunpack.c.l.b16 %v4460
      %v4517 = vunpack.c.l.b16 %v4463
      %v4518 = vunpack.c.l.b16 %v4467
      %v4519 = vunpack.c.l.b16 %v4470
      %v4520 = vunpack.c.l.b16 %v4474
      %v4521 = vunpack.c.l.b16 %v4477
      %v4522 = vunpack.c.l.b16 %v4481
      %v4523 = vunpack.c.l.b16 %v4484
      %v4524 = vunpack.c.l.b16 %v4488
      %v4525 = vunpack.c.l.b16 %v4491
      %v4526 = vpack.c.b16 %v4495, %v4494
      %v4527 = vpack.c.b16 %v4497, %v4496
      %v4528 = vpack.c.b16 %v4499, %v4498
      %v4529 = vpack.c.b16 %v4501, %v4500
      %v4530 = vpack.c.b16 %v4503, %v4502
      %v4531 = vpack.c.b16 %v4505, %v4504
      %v4532 = vpack.c.b16 %v4507, %v4506
      %v4533 = vpack.c.b16 %v4509, %v4508
      %v4534 = vpack.c.b16 %v4511, %v4510
      %v4535 = vpack.c.b16 %v4513, %v4512
      %v4536 = vpack.c.b16 %v4515, %v4514
      %v4537 = vpack.c.b16 %v4517, %v4516
      %v4538 = vpack.c.b16 %v4519, %v4518
      %v4539 = vpack.c.b16 %v4521, %v4520
      %v4540 = vpack.c.b16 %v4523, %v4522
      %v4541 = vpack.c.b16 %v4525, %v4524
      %v4543 = vsel %vm713, %v4526, 0
      %v4546 = vsel %vm713, %v4527, 0
      %v4549 = vsel %vm713, %v4528, 0
      %v4552 = vsel %vm713, %v4529, 0
      %v4555 = vsel %vm713, %v4530, 0
      %v4558 = vsel %vm713, %v4531, 0
      %v4561 = vsel %vm713, %v4532, 0
      %v4564 = vsel %vm713, %v4533, 0
      %v4567 = vsel %vm713, %v4534, 0
      %v4570 = vsel %vm713, %v4535, 0
      %v4573 = vsel %vm713, %v4536, 0
      %v4576 = vsel %vm713, %v4537, 0
      %v4579 = vsel %vm713, %v4538, 0
      %v4582 = vsel %vm713, %v4539, 0
      %v4585 = vsel %vm713, %v4540, 0
      %v4588 = vsel %vm713, %v4541, 0
      %v4591 = vsel %vm762, %v4493, 0
      %4593 = vmatprep.subr.bf16.mxu0 0
      %4594 = vmatpush1.bf16.msra.mxu0 %v4591
      %4595 = vmatprep.subr.bf16.mxu0 0
      %4596 = vmatpush1.bf16.msra.mxu0 0
      %4597 = vmatprep.subr.bf16.mxu0 0
      %4598 = vmatpush1.bf16.msra.mxu0 0
      %4599 = vmatprep.subr.bf16.mxu0 0
      %4600 = vmatpush1.bf16.msra.mxu0 0
      %4601 = vmatprep.subr.bf16.mxu0 0
      %4602 = vmatpush1.bf16.msra.mxu0 0
      %4603 = vmatprep.subr.bf16.mxu0 0
      %4604 = vmatpush1.bf16.msra.mxu0 0
      %4605 = vmatprep.subr.bf16.mxu0 0
      %4606 = vmatpush1.bf16.msra.mxu0 0
      %4607 = vmatprep.subr.bf16.mxu0 0
      %4608 = vmatpush1.bf16.msra.mxu0 0
      %4609 = vmatprep.subr.bf16.mxu0 0
      %4610 = vmatpush1.bf16.msra.mxu0 0
      %4611 = vmatprep.subr.bf16.mxu0 0
      %4612 = vmatpush1.bf16.msra.mxu0 0
      %4613 = vmatprep.subr.bf16.mxu0 0
      %4614 = vmatpush1.bf16.msra.mxu0 0
      %4615 = vmatprep.subr.bf16.mxu0 0
      %4616 = vmatpush1.bf16.msra.mxu0 0
      %4617 = vmatprep.subr.bf16.mxu0 0
      %4618 = vmatpush1.bf16.msra.mxu0 0
      %4619 = vmatprep.subr.bf16.mxu0 0
      %4620 = vmatpush1.bf16.msra.mxu0 0
      %4621 = vmatprep.subr.bf16.mxu0 0
      %4622 = vmatpush1.bf16.msra.mxu0 0
      %4623 = vmatprep.subr.bf16.mxu0 0
      %4624 = vmatpush1.bf16.msra.mxu0 0
      %4625 = vmatprep.mubr.bf16.mxu0 0
      %4626 = vmatmul.mubr.bf16.gmra.mrb[0].mxu0 %v4543
      %v4627 = vpop.f32.mrb[0].mxu0
      %v4628 = vadd.f32 0.0, %v4627
      %v4629 = vpop.f32.mrb[0].mxu0
      %v4630 = vpop.f32.mrb[0].mxu0
      %v4631 = vadd.f32 0.0, %v4630
      %v4632 = vpop.f32.mrb[0].mxu0
      %4633 = vmatprep.mubr.bf16.mxu0 0
      %4634 = vmatmul.mubr.bf16.gmra.mrb[0].mxu0 %v4546
      %v4635 = vpop.f32.mrb[0].mxu0
      %v4636 = vadd.f32 0.0, %v4635
      %v4637 = vpop.f32.mrb[0].mxu0
      %v4638 = vpop.f32.mrb[0].mxu0
      %v4639 = vadd.f32 0.0, %v4638
      %v4640 = vpop.f32.mrb[0].mxu0
      %4641 = vmatprep.mubr.bf16.mxu0 0
      %4642 = vmatmul.mubr.bf16.gmra.mrb[0].mxu0 %v4549
      %v4643 = vpop.f32.mrb[0].mxu0
      %v4644 = vadd.f32 0.0, %v4643
      %v4645 = vpop.f32.mrb[0].mxu0
      %v4646 = vpop.f32.mrb[0].mxu0
      %v4647 = vadd.f32 0.0, %v4646
      %v4648 = vpop.f32.mrb[0].mxu0
      %4649 = vmatprep.mubr.bf16.mxu0 0
      %4650 = vmatmul.mubr.bf16.gmra.mrb[0].mxu0 %v4552
      %v4651 = vpop.f32.mrb[0].mxu0
      %v4652 = vadd.f32 0.0, %v4651
      %v4653 = vpop.f32.mrb[0].mxu0
      %v4654 = vpop.f32.mrb[0].mxu0
      %v4655 = vadd.f32 0.0, %v4654
      %v4656 = vpop.f32.mrb[0].mxu0
      %4657 = vmatprep.mubr.bf16.mxu0 0
      %4658 = vmatmul.mubr.bf16.gmra.mrb[0].mxu0 %v4555
      %v4659 = vpop.f32.mrb[0].mxu0
      %v4660 = vadd.f32 0.0, %v4659
      %v4661 = vpop.f32.mrb[0].mxu0
      %v4662 = vpop.f32.mrb[0].mxu0
      %v4663 = vadd.f32 0.0, %v4662
      %v4664 = vpop.f32.mrb[0].mxu0
      %4665 = vmatprep.mubr.bf16.mxu0 0
      %4666 = vmatmul.mubr.bf16.gmra.mrb[0].mxu0 %v4558
      %v4667 = vpop.f32.mrb[0].mxu0
      %v4668 = vadd.f32 0.0, %v4667
      %v4669 = vpop.f32.mrb[0].mxu0
      %v4670 = vpop.f32.mrb[0].mxu0
      %v4671 = vadd.f32 0.0, %v4670
      %v4672 = vpop.f32.mrb[0].mxu0
      %4673 = vmatprep.mubr.bf16.mxu0 0
      %4674 = vmatmul.mubr.bf16.gmra.mrb[0].mxu0 %v4561
      %v4675 = vpop.f32.mrb[0].mxu0
      %v4676 = vadd.f32 0.0, %v4675
      %v4677 = vpop.f32.mrb[0].mxu0
      %v4678 = vpop.f32.mrb[0].mxu0
      %v4679 = vadd.f32 0.0, %v4678
      %v4680 = vpop.f32.mrb[0].mxu0
      %4681 = vmatprep.mubr.bf16.mxu0 0
      %4682 = vmatmul.mubr.bf16.gmra.mrb[0].mxu0 %v4564
      %v4683 = vpop.f32.mrb[0].mxu0
      %v4684 = vadd.f32 0.0, %v4683
      %v4685 = vpop.f32.mrb[0].mxu0
      %v4686 = vpop.f32.mrb[0].mxu0
      %v4687 = vadd.f32 0.0, %v4686
      %v4688 = vpop.f32.mrb[0].mxu0
      %4689 = vmatprep.mubr.bf16.mxu0 0
      %4690 = vmatmul.mubr.bf16.gmra.mrb[0].mxu0 %v4567
      %v4691 = vpop.f32.mrb[0].mxu0
      %v4692 = vadd.f32 0.0, %v4691
      %v4693 = vpop.f32.mrb[0].mxu0
      %v4694 = vpop.f32.mrb[0].mxu0
      %v4695 = vadd.f32 0.0, %v4694
      %v4696 = vpop.f32.mrb[0].mxu0
      %4697 = vmatprep.mubr.bf16.mxu0 0
      %4698 = vmatmul.mubr.bf16.gmra.mrb[0].mxu0 %v4570
      %v4699 = vpop.f32.mrb[0].mxu0
      %v4700 = vadd.f32 0.0, %v4699
      %v4701 = vpop.f32.mrb[0].mxu0
      %v4702 = vpop.f32.mrb[0].mxu0
      %v4703 = vadd.f32 0.0, %v4702
      %v4704 = vpop.f32.mrb[0].mxu0
      %4705 = vmatprep.mubr.bf16.mxu0 0
      %4706 = vmatmul.mubr.bf16.gmra.mrb[0].mxu0 %v4573
      %v4707 = vpop.f32.mrb[0].mxu0
      %v4708 = vadd.f32 0.0, %v4707
      %v4709 = vpop.f32.mrb[0].mxu0
      %v4710 = vpop.f32.mrb[0].mxu0
      %v4711 = vadd.f32 0.0, %v4710
      %v4712 = vpop.f32.mrb[0].mxu0
      %4713 = vmatprep.mubr.bf16.mxu0 0
      %4714 = vmatmul.mubr.bf16.gmra.mrb[0].mxu0 %v4576
      %v4715 = vpop.f32.mrb[0].mxu0
      %v4716 = vadd.f32 0.0, %v4715
      %v4717 = vpop.f32.mrb[0].mxu0
      %v4718 = vpop.f32.mrb[0].mxu0
      %v4719 = vadd.f32 0.0, %v4718
      %v4720 = vpop.f32.mrb[0].mxu0
      %4721 = vmatprep.mubr.bf16.mxu0 0
      %4722 = vmatmul.mubr.bf16.gmra.mrb[0].mxu0 %v4579
      %v4723 = vpop.f32.mrb[0].mxu0
      %v4724 = vadd.f32 0.0, %v4723
      %v4725 = vpop.f32.mrb[0].mxu0
      %v4726 = vpop.f32.mrb[0].mxu0
      %v4727 = vadd.f32 0.0, %v4726
      %v4728 = vpop.f32.mrb[0].mxu0
      %4729 = vmatprep.mubr.bf16.mxu0 0
      %4730 = vmatmul.mubr.bf16.gmra.mrb[0].mxu0 %v4582
      %v4731 = vpop.f32.mrb[0].mxu0
      %v4732 = vadd.f32 0.0, %v4731
      %v4733 = vpop.f32.mrb[0].mxu0
      %v4734 = vpop.f32.mrb[0].mxu0
      %v4735 = vadd.f32 0.0, %v4734
      %v4736 = vpop.f32.mrb[0].mxu0
      %4737 = vmatprep.mubr.bf16.mxu0 0
      %4738 = vmatmul.mubr.bf16.gmra.mrb[0].mxu0 %v4585
      %v4739 = vpop.f32.mrb[0].mxu0
      %v4740 = vadd.f32 0.0, %v4739
      %v4741 = vpop.f32.mrb[0].mxu0
      %v4742 = vpop.f32.mrb[0].mxu0
      %v4743 = vadd.f32 0.0, %v4742
      %v4744 = vpop.f32.mrb[0].mxu0
      %4745 = vmatprep.mubr.bf16.mxu0 0
      %4746 = vmatmul.mubr.bf16.gmra.mrb[0].mxu0 %v4588
      %v4747 = vpop.f32.mrb[0].mxu0
      %v4748 = vadd.f32 0.0, %v4747
      %v4749 = vpop.f32.mrb[0].mxu0
      %v4750 = vpop.f32.mrb[0].mxu0
      %v4751 = vadd.f32 0.0, %v4750
      %v4752 = vpop.f32.mrb[0].mxu0
      %4753 = vdwg.mxu0
      %v4754 = vadd.f32 %v4284, %v4628
      %v4755 = vadd.f32 %v4285, %v4631
      %v4756 = vadd.f32 %v4286, %v4636
      %v4757 = vadd.f32 %v4287, %v4639
      %v4758 = vadd.f32 %v4288, %v4644
      %v4759 = vadd.f32 %v4289, %v4647
      %v4760 = vadd.f32 %v4290, %v4652
      %v4761 = vadd.f32 %v4291, %v4655
      %v4762 = vadd.f32 %v4292, %v4660
      %v4763 = vadd.f32 %v4293, %v4663
      %v4764 = vadd.f32 %v4294, %v4668
      %v4765 = vadd.f32 %v4295, %v4671
      %v4766 = vadd.f32 %v4296, %v4676
      %v4767 = vadd.f32 %v4297, %v4679
      %v4768 = vadd.f32 %v4298, %v4684
      %v4769 = vadd.f32 %v4299, %v4687
      %v4770 = vadd.f32 %v4300, %v4692
      %v4771 = vadd.f32 %v4301, %v4695
      %v4772 = vadd.f32 %v4302, %v4700
      %v4773 = vadd.f32 %v4303, %v4703
      %v4774 = vadd.f32 %v4304, %v4708
      %v4775 = vadd.f32 %v4305, %v4711
      %v4776 = vadd.f32 %v4306, %v4716
      %v4777 = vadd.f32 %v4307, %v4719
      %v4778 = vadd.f32 %v4308, %v4724
      %v4779 = vadd.f32 %v4309, %v4727
      %v4780 = vadd.f32 %v4310, %v4732
      %v4781 = vadd.f32 %v4311, %v4735
      %v4782 = vadd.f32 %v4312, %v4740
      %v4783 = vadd.f32 %v4313, %v4743
      %v4784 = vadd.f32 %v4314, %v4748
      %v4785 = vadd.f32 %v4315, %v4751
      %v4786 = vld [vmem:[%s2] sm:$0x1]
      %v4788 = vlaneseq
      %v4789 = vshrl.u32 %v4788, 7
      %v4790 = vsub.s32 0, %v4789
      %v4791 = vrot.slane %v4786, %v4790
      %v4793 = vadd.f32 %v4754, %v4791
      %v4794 = vadd.f32 %v4755, %v4791
      %v4795 = vadd.f32 %v4756, %v4791
      %v4796 = vadd.f32 %v4757, %v4791
      %v4797 = vadd.f32 %v4758, %v4791
      %v4798 = vadd.f32 %v4759, %v4791
      %v4799 = vadd.f32 %v4760, %v4791
      %v4800 = vadd.f32 %v4761, %v4791
      %v4801 = vadd.f32 %v4762, %v4791
      %v4802 = vadd.f32 %v4763, %v4791
      %v4803 = vadd.f32 %v4764, %v4791
      %v4804 = vadd.f32 %v4765, %v4791
      %v4805 = vadd.f32 %v4766, %v4791
      %v4806 = vadd.f32 %v4767, %v4791
      %v4807 = vadd.f32 %v4768, %v4791
      %v4808 = vadd.f32 %v4769, %v4791
      %v4809 = vadd.f32 %v4770, %v4791
      %v4810 = vadd.f32 %v4771, %v4791
      %v4811 = vadd.f32 %v4772, %v4791
      %v4812 = vadd.f32 %v4773, %v4791
      %v4813 = vadd.f32 %v4774, %v4791
      %v4814 = vadd.f32 %v4775, %v4791
      %v4815 = vadd.f32 %v4776, %v4791
      %v4816 = vadd.f32 %v4777, %v4791
      %v4817 = vadd.f32 %v4778, %v4791
      %v4818 = vadd.f32 %v4779, %v4791
      %v4819 = vadd.f32 %v4780, %v4791
      %v4820 = vadd.f32 %v4781, %v4791
      %v4821 = vadd.f32 %v4782, %v4791
      %v4822 = vadd.f32 %v4783, %v4791
      %v4823 = vadd.f32 %v4784, %v4791
      %v4824 = vadd.f32 %v4785, %v4791
      %v4825 = vmax.f32 %v4793, 0.0
      %v4826 = vmax.f32 %v4794, 0.0
      %v4827 = vmax.f32 %v4795, 0.0
      %v4828 = vmax.f32 %v4796, 0.0
      %v4829 = vmax.f32 %v4797, 0.0
      %v4830 = vmax.f32 %v4798, 0.0
      %v4831 = vmax.f32 %v4799, 0.0
      %v4832 = vmax.f32 %v4800, 0.0
      %v4833 = vmax.f32 %v4801, 0.0
      %v4834 = vmax.f32 %v4802, 0.0
      %v4835 = vmax.f32 %v4803, 0.0
      %v4836 = vmax.f32 %v4804, 0.0
      %v4837 = vmax.f32 %v4805, 0.0
      %v4838 = vmax.f32 %v4806, 0.0
      %v4839 = vmax.f32 %v4807, 0.0
      %v4840 = vmax.f32 %v4808, 0.0
      %v4841 = vmax.f32 %v4809, 0.0
      %v4842 = vmax.f32 %v4810, 0.0
      %v4843 = vmax.f32 %v4811, 0.0
      %v4844 = vmax.f32 %v4812, 0.0
      %v4845 = vmax.f32 %v4813, 0.0
      %v4846 = vmax.f32 %v4814, 0.0
      %v4847 = vmax.f32 %v4815, 0.0
      %v4848 = vmax.f32 %v4816, 0.0
      %v4849 = vmax.f32 %v4817, 0.0
      %v4850 = vmax.f32 %v4818, 0.0
      %v4851 = vmax.f32 %v4819, 0.0
      %v4852 = vmax.f32 %v4820, 0.0
      %v4853 = vmax.f32 %v4821, 0.0
      %v4854 = vmax.f32 %v4822, 0.0
      %v4855 = vmax.f32 %v4823, 0.0
      %v4856 = vmax.f32 %v4824, 0.0
      %v4857 = vpack.c.bf16 %v4826, %v4825
      %v4858 = vpack.c.bf16 %v4828, %v4827
      %v4859 = vpack.c.bf16 %v4830, %v4829
      %v4860 = vpack.c.bf16 %v4832, %v4831
      %v4861 = vpack.c.bf16 %v4834, %v4833
      %v4862 = vpack.c.bf16 %v4836, %v4835
      %v4863 = vpack.c.bf16 %v4838, %v4837
      %v4864 = vpack.c.bf16 %v4840, %v4839
      %v4865 = vpack.c.bf16 %v4842, %v4841
      %v4866 = vpack.c.bf16 %v4844, %v4843
      %v4867 = vpack.c.bf16 %v4846, %v4845
      %v4868 = vpack.c.bf16 %v4848, %v4847
      %v4869 = vpack.c.bf16 %v4850, %v4849
      %v4870 = vpack.c.bf16 %v4852, %v4851
      %v4871 = vpack.c.bf16 %v4854, %v4853
      %v4872 = vpack.c.bf16 %v4856, %v4855
      %v4873 = vld [vmem:[%s3] sm:$0xf]
      %v4874 = vld [vmem:[%s3 + $0x4] sm:$0xf]
      %v4875 = vld [vmem:[%s3 + $0x8] sm:$0xf]
      %v4876 = vld [vmem:[%s3 + $0xc] sm:$0xf]
      %v4877 = vld [vmem:[%s3 + $0x10] sm:$0xf]
      %v4878 = vld [vmem:[%s3 + $0x14] sm:$0xf]
      %v4879 = vld [vmem:[%s3 + $0x18] sm:$0xf]
      %v4880 = vld [vmem:[%s3 + $0x1c] sm:$0xf]
      %v4881 = vld [vmem:[%s3 + $0x20] sm:$0xf]
      %v4882 = vld [vmem:[%s3 + $0x24] sm:$0xf]
      %v4883 = vld [vmem:[%s3 + $0x28] sm:$0xf]
      %v4884 = vld [vmem:[%s3 + $0x2c] sm:$0xf]
      %v4885 = vld [vmem:[%s3 + $0x30] sm:$0xf]
      %v4886 = vld [vmem:[%s3 + $0x34] sm:$0xf]
      %v4887 = vld [vmem:[%s3 + $0x38] sm:$0xf]
      %v4888 = vld [vmem:[%s3 + $0x3c] sm:$0xf]
      %v4889 = vld [vmem:[%s4] sm:$0x1]
      %v4891 = vlaneseq
      %v4892 = vshrl.u32 %v4891, 7
      %v4893 = vsub.s32 0, %v4892
      %v4894 = vrot.slane %v4889, %v4893
      %v4912 = vunpack.c.l.b16 %v4873
      %v4913 = vunpack.c.l.b16 %v4874
      %v4914 = vunpack.c.l.b16 %v4875
      %v4915 = vunpack.c.l.b16 %v4876
      %v4916 = vunpack.c.l.b16 %v4877
      %v4917 = vunpack.c.l.b16 %v4878
      %v4918 = vunpack.c.l.b16 %v4879
      %v4919 = vunpack.c.l.b16 %v4880
      %v4920 = vunpack.c.l.b16 %v4881
      %v4921 = vunpack.c.l.b16 %v4882
      %v4922 = vunpack.c.l.b16 %v4883
      %v4923 = vunpack.c.l.b16 %v4884
      %v4924 = vunpack.c.l.b16 %v4885
      %v4925 = vunpack.c.l.b16 %v4886
      %v4926 = vunpack.c.l.b16 %v4887
      %v4927 = vunpack.c.l.b16 %v4888
      %v4928 = vpack.c.b16 %v4913, %v4912
      %v4929 = vpack.c.b16 %v4915, %v4914
      %v4930 = vpack.c.b16 %v4917, %v4916
      %v4931 = vpack.c.b16 %v4919, %v4918
      %v4932 = vpack.c.b16 %v4921, %v4920
      %v4933 = vpack.c.b16 %v4923, %v4922
      %v4934 = vpack.c.b16 %v4925, %v4924
      %v4935 = vpack.c.b16 %v4927, %v4926
      %4944 = vmatprep.subr.bf16.mxu0 0
      %4945 = vmatpush1.bf16.msra.mxu0 %v4928
      %4946 = vmatprep.subr.bf16.mxu0 0
      %4947 = vmatpush1.bf16.msra.mxu0 %v4929
      %4948 = vmatprep.subr.bf16.mxu0 0
      %4949 = vmatpush1.bf16.msra.mxu0 %v4930
      %4950 = vmatprep.subr.bf16.mxu0 0
      %4951 = vmatpush1.bf16.msra.mxu0 %v4931
      %4952 = vmatprep.subr.bf16.mxu0 0
      %4953 = vmatpush1.bf16.msra.mxu0 %v4932
      %4954 = vmatprep.subr.bf16.mxu0 0
      %4955 = vmatpush1.bf16.msra.mxu0 %v4933
      %4956 = vmatprep.subr.bf16.mxu0 0
      %4957 = vmatpush1.bf16.msra.mxu0 %v4934
      %4958 = vmatprep.subr.bf16.mxu0 0
      %4959 = vmatpush1.bf16.msra.mxu0 %v4935
      %4960 = vmatprep.subr.bf16.mxu0 0
      %4961 = vmatpush1.bf16.msra.mxu0 0
      %4962 = vmatprep.subr.bf16.mxu0 0
      %4963 = vmatpush1.bf16.msra.mxu0 0
      %4964 = vmatprep.subr.bf16.mxu0 0
      %4965 = vmatpush1.bf16.msra.mxu0 0
      %4966 = vmatprep.subr.bf16.mxu0 0
      %4967 = vmatpush1.bf16.msra.mxu0 0
      %4968 = vmatprep.subr.bf16.mxu0 0
      %4969 = vmatpush1.bf16.msra.mxu0 0
      %4970 = vmatprep.subr.bf16.mxu0 0
      %4971 = vmatpush1.bf16.msra.mxu0 0
      %4972 = vmatprep.subr.bf16.mxu0 0
      %4973 = vmatpush1.bf16.msra.mxu0 0
      %4974 = vmatprep.subr.bf16.mxu0 0
      %4975 = vmatpush1.bf16.msra.mxu0 0
      %4976 = vmatprep.mubr.bf16.mxu0 0
      %4977 = vmatmul.mubr.bf16.gmra.mrb[0].mxu0 %v4857
      %v4978 = vpop.f32.mrb[0].mxu0
      %v4979 = vadd.f32 %v4894, %v4978
      %v4980 = vpop.f32.mrb[0].mxu0
      %v4981 = vpop.f32.mrb[0].mxu0
      %v4982 = vadd.f32 %v4894, %v4981
      %v4983 = vpop.f32.mrb[0].mxu0
      %4984 = vmatprep.mubr.bf16.mxu0 0
      %4985 = vmatmul.mubr.bf16.gmra.mrb[0].mxu0 %v4858
      %v4986 = vpop.f32.mrb[0].mxu0
      %v4987 = vadd.f32 %v4894, %v4986
      %v4988 = vpop.f32.mrb[0].mxu0
      %v4989 = vpop.f32.mrb[0].mxu0
      %v4990 = vadd.f32 %v4894, %v4989
      %v4991 = vpop.f32.mrb[0].mxu0
      %4992 = vmatprep.mubr.bf16.mxu0 0
      %4993 = vmatmul.mubr.bf16.gmra.mrb[0].mxu0 %v4859
      %v4994 = vpop.f32.mrb[0].mxu0
      %v4995 = vadd.f32 %v4894, %v4994
      %v4996 = vpop.f32.mrb[0].mxu0
      %v4997 = vpop.f32.mrb[0].mxu0
      %v4998 = vadd.f32 %v4894, %v4997
      %v4999 = vpop.f32.mrb[0].mxu0
      %5000 = vmatprep.mubr.bf16.mxu0 0
      %5001 = vmatmul.mubr.bf16.gmra.mrb[0].mxu0 %v4860
      %v5002 = vpop.f32.mrb[0].mxu0
      %v5003 = vadd.f32 %v4894, %v5002
      %v5004 = vpop.f32.mrb[0].mxu0
      %v5005 = vpop.f32.mrb[0].mxu0
      %v5006 = vadd.f32 %v4894, %v5005
      %v5007 = vpop.f32.mrb[0].mxu0
      %5008 = vmatprep.mubr.bf16.mxu0 0
      %5009 = vmatmul.mubr.bf16.gmra.mrb[0].mxu0 %v4861
      %v5010 = vpop.f32.mrb[0].mxu0
      %v5011 = vadd.f32 %v4894, %v5010
      %v5012 = vpop.f32.mrb[0].mxu0
      %v5013 = vpop.f32.mrb[0].mxu0
      %v5014 = vadd.f32 %v4894, %v5013
      %v5015 = vpop.f32.mrb[0].mxu0
      %5016 = vmatprep.mubr.bf16.mxu0 0
      %5017 = vmatmul.mubr.bf16.gmra.mrb[0].mxu0 %v4862
      %v5018 = vpop.f32.mrb[0].mxu0
      %v5019 = vadd.f32 %v4894, %v5018
      %v5020 = vpop.f32.mrb[0].mxu0
      %v5021 = vpop.f32.mrb[0].mxu0
      %v5022 = vadd.f32 %v4894, %v5021
      %v5023 = vpop.f32.mrb[0].mxu0
      %5024 = vmatprep.mubr.bf16.mxu0 0
      %5025 = vmatmul.mubr.bf16.gmra.mrb[0].mxu0 %v4863
      %v5026 = vpop.f32.mrb[0].mxu0
      %v5027 = vadd.f32 %v4894, %v5026
      %v5028 = vpop.f32.mrb[0].mxu0
      %v5029 = vpop.f32.mrb[0].mxu0
      %v5030 = vadd.f32 %v4894, %v5029
      %v5031 = vpop.f32.mrb[0].mxu0
      %5032 = vmatprep.mubr.bf16.mxu0 0
      %5033 = vmatmul.mubr.bf16.gmra.mrb[0].mxu0 %v4864
      %v5034 = vpop.f32.mrb[0].mxu0
      %v5035 = vadd.f32 %v4894, %v5034
      %v5036 = vpop.f32.mrb[0].mxu0
      %v5037 = vpop.f32.mrb[0].mxu0
      %v5038 = vadd.f32 %v4894, %v5037
      %v5039 = vpop.f32.mrb[0].mxu0
      %5040 = vmatprep.mubr.bf16.mxu0 0
      %5041 = vmatmul.mubr.bf16.gmra.mrb[0].mxu0 %v4865
      %v5042 = vpop.f32.mrb[0].mxu0
      %v5043 = vadd.f32 %v4894, %v5042
      %v5044 = vpop.f32.mrb[0].mxu0
      %v5045 = vpop.f32.mrb[0].mxu0
      %v5046 = vadd.f32 %v4894, %v5045
      %v5047 = vpop.f32.mrb[0].mxu0
      %5048 = vmatprep.mubr.bf16.mxu0 0
      %5049 = vmatmul.mubr.bf16.gmra.mrb[0].mxu0 %v4866
      %v5050 = vpop.f32.mrb[0].mxu0
      %v5051 = vadd.f32 %v4894, %v5050
      %v5052 = vpop.f32.mrb[0].mxu0
      %v5053 = vpop.f32.mrb[0].mxu0
      %v5054 = vadd.f32 %v4894, %v5053
      %v5055 = vpop.f32.mrb[0].mxu0
      %5056 = vmatprep.mubr.bf16.mxu0 0
      %5057 = vmatmul.mubr.bf16.gmra.mrb[0].mxu0 %v4867
      %v5058 = vpop.f32.mrb[0].mxu0
      %v5059 = vadd.f32 %v4894, %v5058
      %v5060 = vpop.f32.mrb[0].mxu0
      %v5061 = vpop.f32.mrb[0].mxu0
      %v5062 = vadd.f32 %v4894, %v5061
      %v5063 = vpop.f32.mrb[0].mxu0
      %5064 = vmatprep.mubr.bf16.mxu0 0
      %5065 = vmatmul.mubr.bf16.gmra.mrb[0].mxu0 %v4868
      %v5066 = vpop.f32.mrb[0].mxu0
      %v5067 = vadd.f32 %v4894, %v5066
      %v5068 = vpop.f32.mrb[0].mxu0
      %v5069 = vpop.f32.mrb[0].mxu0
      %v5070 = vadd.f32 %v4894, %v5069
      %v5071 = vpop.f32.mrb[0].mxu0
      %5072 = vmatprep.mubr.bf16.mxu0 0
      %5073 = vmatmul.mubr.bf16.gmra.mrb[0].mxu0 %v4869
      %v5074 = vpop.f32.mrb[0].mxu0
      %v5075 = vadd.f32 %v4894, %v5074
      %v5076 = vpop.f32.mrb[0].mxu0
      %v5077 = vpop.f32.mrb[0].mxu0
      %v5078 = vadd.f32 %v4894, %v5077
      %v5079 = vpop.f32.mrb[0].mxu0
      %5080 = vmatprep.mubr.bf16.mxu0 0
      %5081 = vmatmul.mubr.bf16.gmra.mrb[0].mxu0 %v4870
      %v5082 = vpop.f32.mrb[0].mxu0
      %v5083 = vadd.f32 %v4894, %v5082
      %v5084 = vpop.f32.mrb[0].mxu0
      %v5085 = vpop.f32.mrb[0].mxu0
      %v5086 = vadd.f32 %v4894, %v5085
      %v5087 = vpop.f32.mrb[0].mxu0
      %5088 = vmatprep.mubr.bf16.mxu0 0
      %5089 = vmatmul.mubr.bf16.gmra.mrb[0].mxu0 %v4871
      %v5090 = vpop.f32.mrb[0].mxu0
      %v5091 = vadd.f32 %v4894, %v5090
      %v5092 = vpop.f32.mrb[0].mxu0
      %v5093 = vpop.f32.mrb[0].mxu0
      %v5094 = vadd.f32 %v4894, %v5093
      %v5095 = vpop.f32.mrb[0].mxu0
      %5096 = vmatprep.mubr.bf16.mxu0 0
      %5097 = vmatmul.mubr.bf16.gmra.mrb[0].mxu0 %v4872
      %v5098 = vpop.f32.mrb[0].mxu0
      %v5099 = vadd.f32 %v4894, %v5098
      %v5100 = vpop.f32.mrb[0].mxu0
      %v5101 = vpop.f32.mrb[0].mxu0
      %v5102 = vadd.f32 %v4894, %v5101
      %v5103 = vpop.f32.mrb[0].mxu0
      %5104 = vdwg.mxu0
      %5105 = vst [vmem:[%s224] sm:$0xff] %v4979
      %5106 = vst [vmem:[%s224 + $0x8] sm:$0xff] %v4982
      %5107 = vst [vmem:[%s224 + $0x10] sm:$0xff] %v4987
      %5108 = vst [vmem:[%s224 + $0x18] sm:$0xff] %v4990
      %5109 = vst [vmem:[%s224 + $0x20] sm:$0xff] %v4995
      %5110 = vst [vmem:[%s224 + $0x28] sm:$0xff] %v4998
      %5111 = vst [vmem:[%s224 + $0x30] sm:$0xff] %v5003
      %5112 = vst [vmem:[%s224 + $0x38] sm:$0xff] %v5006
      %5113 = vst [vmem:[%s224 + $0x40] sm:$0xff] %v5011
      %5114 = vst [vmem:[%s224 + $0x48] sm:$0xff] %v5014
      %5115 = vst [vmem:[%s224 + $0x50] sm:$0xff] %v5019
      %5116 = vst [vmem:[%s224 + $0x58] sm:$0xff] %v5022
      %5117 = vst [vmem:[%s224 + $0x60] sm:$0xff] %v5027
      %5118 = vst [vmem:[%s224 + $0x68] sm:$0xff] %v5030
      %5119 = vst [vmem:[%s224 + $0x70] sm:$0xff] %v5035
      %5120 = vst [vmem:[%s224 + $0x78] sm:$0xff] %v5038
      %5121 = vst [vmem:[%s224 + $0x80] sm:$0xff] %v5043
      %5122 = vst [vmem:[%s224 + $0x88] sm:$0xff] %v5046
      %5123 = vst [vmem:[%s224 + $0x90] sm:$0xff] %v5051
      %5124 = vst [vmem:[%s224 + $0x98] sm:$0xff] %v5054
      %5125 = vst [vmem:[%s224 + $0xa0] sm:$0xff] %v5059
      %5126 = vst [vmem:[%s224 + $0xa8] sm:$0xff] %v5062
      %5127 = vst [vmem:[%s224 + $0xb0] sm:$0xff] %v5067
      %5128 = vst [vmem:[%s224 + $0xb8] sm:$0xff] %v5070
      %5129 = vst [vmem:[%s224 + $0xc0] sm:$0xff] %v5075
      %5130 = vst [vmem:[%s224 + $0xc8] sm:$0xff] %v5078
      %5131 = vst [vmem:[%s224 + $0xd0] sm:$0xff] %v5083
      %5132 = vst [vmem:[%s224 + $0xd8] sm:$0xff] %v5086
      %5133 = vst [vmem:[%s224 + $0xe0] sm:$0xff] %v5091
      %5134 = vst [vmem:[%s224 + $0xe8] sm:$0xff] %v5094
      %5135 = vst [vmem:[%s224 + $0xf0] sm:$0xff] %v5099
      %5136 = vst [vmem:[%s224 + $0xf8] sm:$0xff] %v5102
      %s5137 = smul.u32 32, %s16
      %p5138 = scmp.lt.s32.totalorder %s5137, 63
      %s5139 = scalar_select %p5138, %s5137, 63
      %s5140 = smul.addr %s5139, 8
      %s5141 = scalar_lea.vmem %s5, %s5140
      // Predicated region
      $region41: #{head_forward.1} parent=39 // pred_check
        %p5142 = pneg %p144
      $region42: #{head_forward.1} parent=39 // pred_check_branch
        %5144 = sbr.rel (%p5142) target = $region44
      $region43: #{head_forward.1} parent=39 // pred_region
        %s5145 = smul.u32 32, %s16
      $region44: #{head_forward.1} parent=39 // pred_fallthru
        _
    $region40: #{head_forward.1} parent=5 // pred_fallthru
      _
    %p5146 = scmp.le.s32.totalorder 2, %s11
    // Predicated region
    $region45: #{head_forward.1} parent=5 // pred_check
      %p5147 = pneg %p5146
    $region46: #{head_forward.1} parent=5 // pred_check_branch
      %5149 = sbr.rel (%p5147) target = $region48
    $region47: #{head_forward.1} parent=5 // pred_region
      %s5150 = ssub.s32 %s11, 2
      // Predicated region
      $region49: #{head_forward.1} parent=47 // pred_check
        %p5151 = pneg %p150
      $region50: #{head_forward.1} parent=47 // pred_check_branch
        %5153 = sbr.rel (%p5151) target = $region52
      $region51: #{head_forward.1} parent=47 // pred_region
        %s5154 = smul.u32 32, %s17
        %p5155 = scmp.lt.s32.totalorder %s5154, 63
        %s5156 = scalar_select %p5155, %s5154, 63
        %s5157 = smul.addr %s5156, 8
        %s5158 = scalar_lea.vmem %s5, %s5157
      $region52: #{head_forward.1} parent=47 // pred_fallthru
        _
    $region48: #{head_forward.1} parent=5 // pred_fallthru
      _
  $region6: #{head_forward.1} parent=0 // loop_footer
    %s15 = sadd.s32 1, %s11
  $region7: #{head_forward.1} parent=0 // loop_footer_branch
    %10 = sbr.rel target = $region3
  $region8: #{head_forward.1} parent=0 // loop_exit
    _

</llo_original>
